<compile_context>
chip_gen: v5e
topology: v5e:2x2
jax: 0.10.0
libtpu: 0.0.40
codegen_flags: <defaults>
</compile_context>

<pallas_src>
import jax
import jax.numpy as jnp
from jax import lax
from jax.experimental import pallas as pl
from jax.experimental.pallas import tpu as pltpu


def _decoder_kernel(
    onehot0_ref,     # (B, S)      f32  one-hot of initial token ids
    ctx0_ref,        # (B, H)      f32  initial context
    enc_ref,         # (B, T, H)   f32  encoder outputs
    mask_ref,        # (B, T)      f32  1.0 == masked position
    w_eg_ref,        # (S, 3H)     f32  embedding-fused gate weights  [i|g|o]
    w_cg_ref,        # (H, 3H)     f32  context gate weights          [i|g|o]
    w_ag_ref,        # (H, 3H)     f32  aligned-encoder gate weights  [i|g|o]
    b_g_ref,         # (1, 3H)     f32  b_ih + b_hh                   [i|g|o]
    w_hh_ref,        # (H, H+1+S)  f32  fused head, h_n rows: [w_att | b_att | w_slot_h]
    w_hc_ref,        # (H, H+1+S)  f32  fused head, ctx rows: [  0   |   0   | w_slot_c]
    b_slot_ref,      # (1, S)      f32
    w_int_h_ref,     # (H, I)      f32
    w_int_c_ref,     # (H, I)      f32
    b_int_ref,       # (1, I)      f32
    slot_out_ref,    # (T, B, S)   f32  out: log-softmax slot scores
    intent_out_ref,  # (B, I)      f32  out: intent scores (step 0)
):
    B, T, H = enc_ref.shape
    S = b_slot_ref.shape[1]
    f32 = jnp.float32

    # ---- hoisted loads / constants (one-time, outside the timestep loop) ----
    enc = enc_ref[...]                                   # (B, T, H)
    mask_bool = mask_ref[...] > 0.0                      # (B, T)
    w_eg, w_cg, w_ag = w_eg_ref[...], w_cg_ref[...], w_ag_ref[...]
    b_g = b_g_ref[...]
    w_hh, w_hc = w_hh_ref[...], w_hc_ref[...]
    b_slot = b_slot_ref[...]
    iota_s = lax.broadcasted_iota(jnp.int32, (B, S), 1)
    neg_big = f32(-1e12)

    # carried decoder state lives in vregs across the fully unrolled loop
    onehot = onehot0_ref[...]                            # (B, S)
    context = ctx0_ref[...]                              # (B, H)

    # T is small and static -> fully unrolled in-kernel loop (single pallas_call,
    # no per-step grid overhead, maximal scheduler visibility).
    for t in range(T):
        aligned = enc[:, t, :]                           # (B, H)

        # ---- LSTM step from zero state (forget gate is dead, dropped) ------
        gates = (jnp.dot(onehot, w_eg, preferred_element_type=f32)
                 + jnp.dot(context, w_cg, preferred_element_type=f32)
                 + jnp.dot(aligned, w_ag, preferred_element_type=f32)
                 + b_g)                                  # (B, 3H)  [i|g|o]
        i_g = jax.nn.sigmoid(gates[:, 0 * H:1 * H])
        g_g = jnp.tanh(gates[:, 1 * H:2 * H])
        o_g = jax.nn.sigmoid(gates[:, 2 * H:3 * H])
        h_n = o_g * jnp.tanh(i_g * g_g)                  # (B, H)

        # ---- fused head matmul: [ v | h_n . b_att | slot_pre ] -------------
        head = (jnp.dot(h_n, w_hh, preferred_element_type=f32)
                + jnp.dot(context, w_hc, preferred_element_type=f32))
        v = head[:, :H]                                  # (B, H)  == h_n @ w_att
        bterm = head[:, H:H + 1]                         # (B, 1)  == h_n . b_att
        slot_pre = head[:, H + 1:]                       # (B, S)

        # ---- Attention(h_n, enc, mask): flash-style batched matmuls --------
        attn_e = jnp.einsum('bqh,bth->bqt', v[:, None, :], enc,
                            preferred_element_type=f32)[:, 0, :] + bterm  # (B,T)
        attn_e = jnp.where(mask_bool, neg_big, attn_e)
        m = jnp.max(attn_e, axis=1, keepdims=True)
        p = jnp.exp(attn_e - m)
        alpha = p / jnp.sum(p, axis=1, keepdims=True)    # (B, T)
        new_ctx = jnp.einsum('bqt,bth->bqh', alpha[:, None, :], enc,
                             preferred_element_type=f32)[:, 0, :]          # (B,H)

        # ---- intent head (only at step 0; intent_context == new_ctx) -------
        if t == 0:
            intent_out_ref[...] = (
                jnp.dot(h_n, w_int_h_ref[...], preferred_element_type=f32)
                + jnp.dot(new_ctx, w_int_c_ref[...], preferred_element_type=f32)
                + b_int_ref[...])

        # ---- slot head (uses the *previous* context, already in slot_pre) --
        score = slot_pre + b_slot
        ms = jnp.max(score, axis=1, keepdims=True)
        sh = score - ms
        logsm = sh - jnp.log(jnp.sum(jnp.exp(sh), axis=1, keepdims=True))
        slot_out_ref[t] = logsm                          # (B, S)

        # ---- greedy argmax -> next one-hot (first occurrence on ties) ------
        mx = jnp.max(logsm, axis=1, keepdims=True)
        first = jnp.min(jnp.where(logsm == mx, iota_s, S), axis=1, keepdims=True)
        onehot = (iota_s == first).astype(f32)
        context = new_ctx


def decoder_forward(params, x_ids, context0, encoder_outputs, encoder_mask):
    """Mirrors Decoder.forward. Returns (slot_score (B*T, S), intent_score (B, I))."""
    B, T, H = encoder_outputs.shape
    S, E = params["embedding"].shape
    I = params["b_intent"].shape[0]

    enc = encoder_outputs.astype(jnp.float32)
    mask = encoder_mask.astype(jnp.float32)
    ctx0 = context0.reshape(B, H).astype(jnp.float32)
    onehot0 = (jnp.arange(S, dtype=jnp.int32)[None, :]
               == x_ids.reshape(B, 1).astype(jnp.int32)).astype(jnp.float32)

    # ---- one-time wrapper-side weight fusion / transposes -------------------
    w_ih = params["w_ih"]                                 # (4H, E+2H), rows [i|f|g|o]
    keep = jnp.concatenate([w_ih[0:H], w_ih[2 * H:3 * H], w_ih[3 * H:4 * H]],
                           axis=0)                        # (3H, E+2H): drop dead f gate
    w_e = keep[:, :E].T                                   # (E, 3H)
    w_c = keep[:, E:E + H].T                              # (H, 3H)
    w_a = keep[:, E + H:].T                               # (H, 3H)
    w_eg = params["embedding"] @ w_e                      # (S, 3H): fuse embedding lookup
    b_full = params["b_ih"] + params["b_hh"]
    b_g = jnp.concatenate([b_full[0:H], b_full[2 * H:3 * H],
                           b_full[3 * H:4 * H]]).reshape(1, 3 * H)

    w_slot_t = params["w_slot"].T                         # (2H, S)
    w_hh = jnp.concatenate([params["w_att"],
                            params["b_att"].reshape(H, 1),
                            w_slot_t[:H]], axis=1)        # (H, H+1+S)
    w_hc = jnp.concatenate([jnp.zeros((H, H + 1), jnp.float32),
                            w_slot_t[H:]], axis=1)        # (H, H+1+S)
    b_slot = params["b_slot"].reshape(1, S)

    w_int_t = params["w_intent"].T                        # (2H, I)
    w_int_h = w_int_t[:H]
    w_int_c = w_int_t[H:]
    b_int = params["b_intent"].reshape(1, I)

    vmem = pl.BlockSpec(memory_space=pltpu.MemorySpace.VMEM)

    slot_tbs, intent = pl.pallas_call(
        _decoder_kernel,
        out_shape=(
            jax.ShapeDtypeStruct((T, B, S), jnp.float32),
            jax.ShapeDtypeStruct((B, I), jnp.float32),
        ),
        in_specs=[vmem] * 14,
        out_specs=(vmem, vmem),
    )(onehot0, ctx0, enc, mask,
      w_eg, w_c, w_a, b_g,
      w_hh, w_hc, b_slot,
      w_int_h, w_int_c, b_int)

    # torch: stack(decode, dim=1).view(-1, S)  => batch-major rows
    slot_score = jnp.transpose(slot_tbs, (1, 0, 2)).reshape(B * T, S)
    return slot_score, intent


def decoder_reference(params, x_ids, context0, encoder_outputs, encoder_mask):
    """Pure-JAX mirror of the PyTorch Decoder.forward (for correctness check)."""
    B, T, H = encoder_outputs.shape
    S, E = params["embedding"].shape
    emb_tab = params["embedding"]
    w_ih = params["w_ih"]
    b = params["b_ih"] + params["b_hh"]
    w_att, b_att = params["w_att"], params["b_att"]
    w_slot, b_slot = params["w_slot"], params["b_slot"]
    w_int, b_int = params["w_intent"], params["b_intent"]

    def attention(h, enc, mask):
        energies = enc @ w_att.T + b_att                  # (B, T, H)
        e = jnp.einsum('bth,bh->bt', energies, h)
        e = jnp.where(mask, -1e12, e)
        a = jax.nn.softmax(e, axis=1)
        return jnp.einsum('bt,bth->bh', a, enc)

    embed = emb_tab[x_ids.reshape(B)]                     # (B, E)
    context = context0.reshape(B, H)
    decode = []
    intent_score = None
    for i in range(T):
        aligned = encoder_outputs[:, i, :]
        x_in = jnp.concatenate([embed, context, aligned], axis=1)
        gates = x_in @ w_ih.T + b
        i_g = jax.nn.sigmoid(gates[:, 0 * H:1 * H])
        g_g = jnp.tanh(gates[:, 2 * H:3 * H])
        o_g = jax.nn.sigmoid(gates[:, 3 * H:4 * H])
        h_n = o_g * jnp.tanh(i_g * g_g)
        if i == 0:
            ictx = attention(h_n, encoder_outputs, encoder_mask)
            intent_score = jnp.concatenate([h_n, ictx], axis=1) @ w_int.T + b_int
        score = jnp.concatenate([h_n, context], axis=1) @ w_slot.T + b_slot
        logsm = jax.nn.log_softmax(score, axis=1)
        decode.append(logsm)
        nxt = jnp.argmax(logsm, axis=1)
        embed = emb_tab[nxt]
        context = attention(h_n, encoder_outputs, encoder_mask)
    slot = jnp.stack(decode, axis=1).reshape(B * T, S)
    return slot, intent_score


if __name__ == "__main__":
    # config: hidden_size=16 -> decoder hidden H = 32, decoder_embed_size=16,
    #         slot_size=12, intent_size=5, num_rnn=1, T=8, B=2
    B, T = 2, 8
    H = 2 * 16
    E = 16
    S = 12
    INTENT = 5

    key = jax.random.PRNGKey(0)
    ks = jax.random.split(key, 14)
    params = {
        "embedding": 0.1 * jax.random.normal(ks[0], (S, E), jnp.float32),
        "w_ih":      0.1 * jax.random.normal(ks[1], (4 * H, E + 2 * H), jnp.float32),
        "b_ih":      0.1 * jax.random.normal(ks[2], (4 * H,), jnp.float32),
        "b_hh":      0.1 * jax.random.normal(ks[3], (4 * H,), jnp.float32),
        "w_att":     0.1 * jax.random.normal(ks[4], (H, H), jnp.float32),
        "b_att":     0.1 * jax.random.normal(ks[5], (H,), jnp.float32),
        "w_slot":    0.1 * jax.random.normal(ks[6], (S, 2 * H), jnp.float32),
        "b_slot":    0.1 * jax.random.normal(ks[7], (S,), jnp.float32),
        "w_intent":  0.1 * jax.random.normal(ks[8], (INTENT, 2 * H), jnp.float32),
        "b_intent":  0.1 * jax.random.normal(ks[9], (INTENT,), jnp.float32),
    }

    x = jax.random.randint(ks[10], (B, 1), 0, S, jnp.int32)            # token ids
    context0 = 0.1 * jax.random.normal(ks[11], (B, 1, H), jnp.float32)
    encoder_outputs = jax.random.normal(ks[12], (B, T, H), jnp.float32)
    lengths = jnp.array([T, T - 3], dtype=jnp.int32)
    encoder_mask = jnp.arange(T)[None, :] >= lengths[:, None]          # (B, T) bool

    slot_score, intent_score = decoder_forward(
        params, x, context0, encoder_outputs, encoder_mask)
    jax.block_until_ready((slot_score, intent_score))

    ref_slot, ref_intent = decoder_reference(
        params, x, context0, encoder_outputs, encoder_mask)

    assert slot_score.shape == (B * T, S), slot_score.shape
    assert intent_score.shape == (B, INTENT), intent_score.shape
    assert bool(jnp.isfinite(slot_score).all())
    assert bool(jnp.isfinite(intent_score).all())
    # slot rows are log-softmax -> each row should sum to ~1 after exp
    row_sums = jnp.exp(slot_score).sum(axis=1)
    assert bool(jnp.allclose(row_sums, 1.0, atol=1e-4))
    # match the pure-JAX reference of the torch module
    assert bool(jnp.allclose(slot_score, ref_slot, atol=2e-3, rtol=2e-3))
    assert bool(jnp.allclose(intent_score, ref_intent, atol=2e-3, rtol=2e-3))
    print("KERNEL_OK")
</pallas_src>

<mosaic_0001>
module attributes {stable_mosaic.version = 11 : i64} {
  func.func @_decoder_kernel(%arg0: memref<2x12xf32, #tpu.memory_space<vmem>>, %arg1: memref<2x32xf32, #tpu.memory_space<vmem>>, %arg2: memref<2x8x32xf32, #tpu.memory_space<vmem>>, %arg3: memref<2x8xf32, #tpu.memory_space<vmem>>, %arg4: memref<12x96xf32, #tpu.memory_space<vmem>>, %arg5: memref<32x96xf32, #tpu.memory_space<vmem>>, %arg6: memref<32x96xf32, #tpu.memory_space<vmem>>, %arg7: memref<1x96xf32, #tpu.memory_space<vmem>>, %arg8: memref<32x45xf32, #tpu.memory_space<vmem>>, %arg9: memref<32x45xf32, #tpu.memory_space<vmem>>, %arg10: memref<1x12xf32, #tpu.memory_space<vmem>>, %arg11: memref<32x5xf32, #tpu.memory_space<vmem>>, %arg12: memref<32x5xf32, #tpu.memory_space<vmem>>, %arg13: memref<1x5xf32, #tpu.memory_space<vmem>>, %arg14: memref<8x2x12xf32, #tpu.memory_space<vmem>>, %arg15: memref<2x5xf32, #tpu.memory_space<vmem>>) attributes {dimension_semantics = [], scalar_prefetch = 0 : i64, scratch_operands = 0 : i64, tpu.core_type = #tpu.core_type<tc>} {
    %c0 = arith.constant 0 : index
    %c0_0 = arith.constant 0 : index
    %c0_1 = arith.constant 0 : index
    %0 = vector.load %arg2[%c0, %c0_0, %c0_1] : memref<2x8x32xf32, #tpu.memory_space<vmem>>, vector<2x8x32xf32>
    %c0_2 = arith.constant 0 : index
    %c0_3 = arith.constant 0 : index
    %1 = vector.load %arg3[%c0_2, %c0_3] : memref<2x8xf32, #tpu.memory_space<vmem>>, vector<2x8xf32>
    %cst = arith.constant 0.000000e+00 : f32
    %2 = vector.broadcast %cst : f32 to vector<2x8xf32>
    %3 = arith.cmpf ogt, %1, %2 : vector<2x8xf32>
    %c0_4 = arith.constant 0 : index
    %c0_5 = arith.constant 0 : index
    %4 = vector.load %arg4[%c0_4, %c0_5] : memref<12x96xf32, #tpu.memory_space<vmem>>, vector<12x96xf32>
    %c0_6 = arith.constant 0 : index
    %c0_7 = arith.constant 0 : index
    %5 = vector.load %arg5[%c0_6, %c0_7] : memref<32x96xf32, #tpu.memory_space<vmem>>, vector<32x96xf32>
    %c0_8 = arith.constant 0 : index
    %c0_9 = arith.constant 0 : index
    %6 = vector.load %arg6[%c0_8, %c0_9] : memref<32x96xf32, #tpu.memory_space<vmem>>, vector<32x96xf32>
    %c0_10 = arith.constant 0 : index
    %c0_11 = arith.constant 0 : index
    %7 = vector.load %arg7[%c0_10, %c0_11] : memref<1x96xf32, #tpu.memory_space<vmem>>, vector<1x96xf32>
    %c0_12 = arith.constant 0 : index
    %c0_13 = arith.constant 0 : index
    %8 = vector.load %arg8[%c0_12, %c0_13] : memref<32x45xf32, #tpu.memory_space<vmem>>, vector<32x45xf32>
    %c0_14 = arith.constant 0 : index
    %c0_15 = arith.constant 0 : index
    %9 = vector.load %arg9[%c0_14, %c0_15] : memref<32x45xf32, #tpu.memory_space<vmem>>, vector<32x45xf32>
    %c0_16 = arith.constant 0 : index
    %c0_17 = arith.constant 0 : index
    %10 = vector.load %arg10[%c0_16, %c0_17] : memref<1x12xf32, #tpu.memory_space<vmem>>, vector<1x12xf32>
    %11 = tpu.iota {dimensions = array<i32: 1>} : vector<2x12xi32>
    %c0_18 = arith.constant 0 : index
    %c0_19 = arith.constant 0 : index
    %12 = vector.load %arg0[%c0_18, %c0_19] : memref<2x12xf32, #tpu.memory_space<vmem>>, vector<2x12xf32>
    %c0_20 = arith.constant 0 : index
    %c0_21 = arith.constant 0 : index
    %13 = vector.load %arg1[%c0_20, %c0_21] : memref<2x32xf32, #tpu.memory_space<vmem>>, vector<2x32xf32>
    %14 = vector.extract_strided_slice %0 {offsets = [0, 0, 0], sizes = [2, 1, 32], strides = [1, 1, 1]} : vector<2x8x32xf32> to vector<2x1x32xf32>
    %15 = vector.shape_cast %14 : vector<2x1x32xf32> to vector<2x32xf32>
    %cst_22 = arith.constant dense<0.000000e+00> : vector<2x96xf32>
    %16 = tpu.matmul %12, %4, %cst_22 {dimension_numbers = #tpu.dot_dimension_numbers<[1], [0], [0], [1], [0, 0, 1, 1], [], []>} : vector<2x12xf32>, vector<12x96xf32>, vector<2x96xf32> -> vector<2x96xf32>
    %cst_23 = arith.constant dense<0.000000e+00> : vector<2x96xf32>
    %17 = tpu.matmul %13, %5, %cst_23 {dimension_numbers = #tpu.dot_dimension_numbers<[1], [0], [0], [1], [0, 0, 1, 1], [], []>} : vector<2x32xf32>, vector<32x96xf32>, vector<2x96xf32> -> vector<2x96xf32>
    %18 = arith.addf %16, %17 : vector<2x96xf32>
    %cst_24 = arith.constant dense<0.000000e+00> : vector<2x96xf32>
    %19 = tpu.matmul %15, %6, %cst_24 {dimension_numbers = #tpu.dot_dimension_numbers<[1], [0], [0], [1], [0, 0, 1, 1], [], []>} : vector<2x32xf32>, vector<32x96xf32>, vector<2x96xf32> -> vector<2x96xf32>
    %20 = arith.addf %18, %19 : vector<2x96xf32>
    %21 = vector.broadcast %7 : vector<1x96xf32> to vector<2x96xf32>
    %22 = arith.addf %20, %21 : vector<2x96xf32>
    %23 = vector.extract_strided_slice %22 {offsets = [0, 0], sizes = [2, 32], strides = [1, 1]} : vector<2x96xf32> to vector<2x32xf32>
    %24 = arith.negf %23 : vector<2x32xf32>
    %25 = math.exp %24 : vector<2x32xf32>
    %cst_25 = arith.constant 1.000000e+00 : f32
    %26 = vector.broadcast %cst_25 : f32 to vector<2x32xf32>
    %27 = arith.addf %26, %25 : vector<2x32xf32>
    %28 = arith.divf %26, %27 : vector<2x32xf32>
    %29 = vector.extract_strided_slice %22 {offsets = [0, 32], sizes = [2, 32], strides = [1, 1]} : vector<2x96xf32> to vector<2x32xf32>
    %30 = math.tanh %29 : vector<2x32xf32>
    %31 = vector.extract_strided_slice %22 {offsets = [0, 64], sizes = [2, 32], strides = [1, 1]} : vector<2x96xf32> to vector<2x32xf32>
    %32 = arith.negf %31 : vector<2x32xf32>
    %33 = math.exp %32 : vector<2x32xf32>
    %cst_26 = arith.constant 1.000000e+00 : f32
    %34 = vector.broadcast %cst_26 : f32 to vector<2x32xf32>
    %35 = arith.addf %34, %33 : vector<2x32xf32>
    %36 = arith.divf %34, %35 : vector<2x32xf32>
    %37 = arith.mulf %28, %30 : vector<2x32xf32>
    %38 = math.tanh %37 : vector<2x32xf32>
    %39 = arith.mulf %36, %38 : vector<2x32xf32>
    %cst_27 = arith.constant dense<0.000000e+00> : vector<2x45xf32>
    %40 = tpu.matmul %39, %8, %cst_27 {dimension_numbers = #tpu.dot_dimension_numbers<[1], [0], [0], [1], [0, 0, 1, 1], [], []>} : vector<2x32xf32>, vector<32x45xf32>, vector<2x45xf32> -> vector<2x45xf32>
    %cst_28 = arith.constant dense<0.000000e+00> : vector<2x45xf32>
    %41 = tpu.matmul %13, %9, %cst_28 {dimension_numbers = #tpu.dot_dimension_numbers<[1], [0], [0], [1], [0, 0, 1, 1], [], []>} : vector<2x32xf32>, vector<32x45xf32>, vector<2x45xf32> -> vector<2x45xf32>
    %42 = arith.addf %40, %41 : vector<2x45xf32>
    %43 = vector.extract_strided_slice %42 {offsets = [0, 0], sizes = [2, 32], strides = [1, 1]} : vector<2x45xf32> to vector<2x32xf32>
    %44 = vector.extract_strided_slice %42 {offsets = [0, 32], sizes = [2, 1], strides = [1, 1]} : vector<2x45xf32> to vector<2x1xf32>
    %45 = vector.extract_strided_slice %42 {offsets = [0, 33], sizes = [2, 12], strides = [1, 1]} : vector<2x45xf32> to vector<2x12xf32>
    %46 = vector.shape_cast %43 : vector<2x32xf32> to vector<2x1x32xf32>
    "tpu.trace_start"() <{level = 10 : i32, message = "bqh,bth->bqt"}> : () -> ()
    %cst_29 = arith.constant dense<0.000000e+00> : vector<2x1x8xf32>
    %47 = tpu.matmul %46, %0, %cst_29 {dimension_numbers = #tpu.dot_dimension_numbers<[2], [2], [1], [1], [0, 0, 0, 1, 1, 1], [0], [0]>} : vector<2x1x32xf32>, vector<2x8x32xf32>, vector<2x1x8xf32> -> vector<2x1x8xf32>
    "tpu.trace_stop"() : () -> ()
    %48 = vector.shape_cast %47 : vector<2x1x8xf32> to vector<2x8xf32>
    %49 = vector.broadcast %44 : vector<2x1xf32> to vector<2x8xf32>
    %50 = arith.addf %48, %49 : vector<2x8xf32>
    %cst_30 = arith.constant -9.99999995E+11 : f32
    %51 = vector.broadcast %cst_30 : f32 to vector<2x8xf32>
    %52 = arith.select %3, %51, %50 : vector<2x8xi1>, vector<2x8xf32>
    %cst_31 = arith.constant dense<0xFF800000> : vector<2xf32>
    %53 = vector.multi_reduction <maximumf>, %52, %cst_31 [1] : vector<2x8xf32> to vector<2xf32>
    %54 = vector.shape_cast %53 : vector<2xf32> to vector<2x1xf32>
    %55 = vector.broadcast %54 : vector<2x1xf32> to vector<2x8xf32>
    %56 = arith.subf %52, %55 : vector<2x8xf32>
    %57 = math.exp %56 : vector<2x8xf32>
    %cst_32 = arith.constant dense<0.000000e+00> : vector<2xf32>
    %58 = vector.multi_reduction <add>, %57, %cst_32 [1] : vector<2x8xf32> to vector<2xf32>
    %59 = vector.shape_cast %58 : vector<2xf32> to vector<2x1xf32>
    %60 = vector.broadcast %59 : vector<2x1xf32> to vector<2x8xf32>
    %61 = arith.divf %57, %60 : vector<2x8xf32>
    %62 = vector.shape_cast %61 : vector<2x8xf32> to vector<2x1x8xf32>
    "tpu.trace_start"() <{level = 10 : i32, message = "bqt,bth->bqh"}> : () -> ()
    %cst_33 = arith.constant dense<0.000000e+00> : vector<2x1x32xf32>
    %63 = tpu.matmul %62, %0, %cst_33 {dimension_numbers = #tpu.dot_dimension_numbers<[2], [1], [1], [2], [0, 0, 0, 1, 1, 2], [0], [0]>} : vector<2x1x8xf32>, vector<2x8x32xf32>, vector<2x1x32xf32> -> vector<2x1x32xf32>
    "tpu.trace_stop"() : () -> ()
    %64 = vector.shape_cast %63 : vector<2x1x32xf32> to vector<2x32xf32>
    %c0_34 = arith.constant 0 : index
    %c0_35 = arith.constant 0 : index
    %65 = vector.load %arg11[%c0_34, %c0_35] : memref<32x5xf32, #tpu.memory_space<vmem>>, vector<32x5xf32>
    %cst_36 = arith.constant dense<0.000000e+00> : vector<2x5xf32>
    %66 = tpu.matmul %39, %65, %cst_36 {dimension_numbers = #tpu.dot_dimension_numbers<[1], [0], [0], [1], [0, 0, 1, 1], [], []>} : vector<2x32xf32>, vector<32x5xf32>, vector<2x5xf32> -> vector<2x5xf32>
    %c0_37 = arith.constant 0 : index
    %c0_38 = arith.constant 0 : index
    %67 = vector.load %arg12[%c0_37, %c0_38] : memref<32x5xf32, #tpu.memory_space<vmem>>, vector<32x5xf32>
    %cst_39 = arith.constant dense<0.000000e+00> : vector<2x5xf32>
    %68 = tpu.matmul %64, %67, %cst_39 {dimension_numbers = #tpu.dot_dimension_numbers<[1], [0], [0], [1], [0, 0, 1, 1], [], []>} : vector<2x32xf32>, vector<32x5xf32>, vector<2x5xf32> -> vector<2x5xf32>
    %69 = arith.addf %66, %68 : vector<2x5xf32>
    %c0_40 = arith.constant 0 : index
    %c0_41 = arith.constant 0 : index
    %70 = vector.load %arg13[%c0_40, %c0_41] : memref<1x5xf32, #tpu.memory_space<vmem>>, vector<1x5xf32>
    %71 = vector.broadcast %70 : vector<1x5xf32> to vector<2x5xf32>
    %72 = arith.addf %69, %71 : vector<2x5xf32>
    %c0_42 = arith.constant 0 : index
    %c0_43 = arith.constant 0 : index
    %73 = vector.load %arg15[%c0_42, %c0_43] : memref<2x5xf32, #tpu.memory_space<vmem>>, vector<2x5xf32>
    tpu.vector_store %arg15[%c0_42, %c0_43], %72 {strides = array<i32>} : memref<2x5xf32, #tpu.memory_space<vmem>>, vector<2x5xf32>,
    %74 = vector.broadcast %10 : vector<1x12xf32> to vector<2x12xf32>
    %75 = arith.addf %45, %74 : vector<2x12xf32>
    %cst_44 = arith.constant dense<0xFF800000> : vector<2xf32>
    %76 = vector.multi_reduction <maximumf>, %75, %cst_44 [1] : vector<2x12xf32> to vector<2xf32>
    %77 = vector.shape_cast %76 : vector<2xf32> to vector<2x1xf32>
    %78 = vector.broadcast %77 : vector<2x1xf32> to vector<2x12xf32>
    %79 = arith.subf %75, %78 : vector<2x12xf32>
    %80 = math.exp %79 : vector<2x12xf32>
    %cst_45 = arith.constant dense<0.000000e+00> : vector<2xf32>
    %81 = vector.multi_reduction <add>, %80, %cst_45 [1] : vector<2x12xf32> to vector<2xf32>
    %82 = vector.shape_cast %81 : vector<2xf32> to vector<2x1xf32>
    %83 = math.log %82 : vector<2x1xf32>
    %84 = vector.broadcast %83 : vector<2x1xf32> to vector<2x12xf32>
    %85 = arith.subf %79, %84 : vector<2x12xf32>
    %c0_46 = arith.constant 0 : index
    %c0_47 = arith.constant 0 : index
    %c0_48 = arith.constant 0 : index
    %86 = vector.load %arg14[%c0_46, %c0_47, %c0_48] : memref<8x2x12xf32, #tpu.memory_space<vmem>>, vector<1x2x12xf32>
    %87 = vector.shape_cast %86 : vector<1x2x12xf32> to vector<2x12xf32>
    %88 = vector.shape_cast %85 : vector<2x12xf32> to vector<1x2x12xf32>
    tpu.vector_store %arg14[%c0_46, %c0_47, %c0_48], %88 {strides = array<i32>} : memref<8x2x12xf32, #tpu.memory_space<vmem>>, vector<1x2x12xf32>,
    %cst_49 = arith.constant dense<0xFF800000> : vector<2xf32>
    %89 = vector.multi_reduction <maximumf>, %85, %cst_49 [1] : vector<2x12xf32> to vector<2xf32>
    %90 = vector.shape_cast %89 : vector<2xf32> to vector<2x1xf32>
    %91 = vector.broadcast %90 : vector<2x1xf32> to vector<2x12xf32>
    %92 = arith.cmpf oeq, %85, %91 : vector<2x12xf32>
    %c12_i32 = arith.constant 12 : i32
    %93 = vector.broadcast %c12_i32 : i32 to vector<2x12xi32>
    %94 = arith.select %92, %11, %93 : vector<2x12xi1>, vector<2x12xi32>
    %cst_50 = arith.constant dense<2147483647> : vector<2xi32>
    %95 = vector.multi_reduction <minsi>, %94, %cst_50 [1] : vector<2x12xi32> to vector<2xi32>
    %96 = vector.shape_cast %95 : vector<2xi32> to vector<2x1xi32>
    %97 = vector.broadcast %96 : vector<2x1xi32> to vector<2x12xi32>
    %98 = arith.cmpi eq, %11, %97 : vector<2x12xi32>
    %99 = arith.extui %98 : vector<2x12xi1> to vector<2x12xi32>
    %100 = arith.sitofp %99 : vector<2x12xi32> to vector<2x12xf32>
    %101 = vector.extract_strided_slice %0 {offsets = [0, 1, 0], sizes = [2, 1, 32], strides = [1, 1, 1]} : vector<2x8x32xf32> to vector<2x1x32xf32>
    %102 = vector.shape_cast %101 : vector<2x1x32xf32> to vector<2x32xf32>
    %cst_51 = arith.constant dense<0.000000e+00> : vector<2x96xf32>
    %103 = tpu.matmul %100, %4, %cst_51 {dimension_numbers = #tpu.dot_dimension_numbers<[1], [0], [0], [1], [0, 0, 1, 1], [], []>} : vector<2x12xf32>, vector<12x96xf32>, vector<2x96xf32> -> vector<2x96xf32>
    %cst_52 = arith.constant dense<0.000000e+00> : vector<2x96xf32>
    %104 = tpu.matmul %64, %5, %cst_52 {dimension_numbers = #tpu.dot_dimension_numbers<[1], [0], [0], [1], [0, 0, 1, 1], [], []>} : vector<2x32xf32>, vector<32x96xf32>, vector<2x96xf32> -> vector<2x96xf32>
    %105 = arith.addf %103, %104 : vector<2x96xf32>
    %cst_53 = arith.constant dense<0.000000e+00> : vector<2x96xf32>
    %106 = tpu.matmul %102, %6, %cst_53 {dimension_numbers = #tpu.dot_dimension_numbers<[1], [0], [0], [1], [0, 0, 1, 1], [], []>} : vector<2x32xf32>, vector<32x96xf32>, vector<2x96xf32> -> vector<2x96xf32>
    %107 = arith.addf %105, %106 : vector<2x96xf32>
    %108 = vector.broadcast %7 : vector<1x96xf32> to vector<2x96xf32>
    %109 = arith.addf %107, %108 : vector<2x96xf32>
    %110 = vector.extract_strided_slice %109 {offsets = [0, 0], sizes = [2, 32], strides = [1, 1]} : vector<2x96xf32> to vector<2x32xf32>
    %111 = arith.negf %110 : vector<2x32xf32>
    %112 = math.exp %111 : vector<2x32xf32>
    %cst_54 = arith.constant 1.000000e+00 : f32
    %113 = vector.broadcast %cst_54 : f32 to vector<2x32xf32>
    %114 = arith.addf %113, %112 : vector<2x32xf32>
    %115 = arith.divf %113, %114 : vector<2x32xf32>
    %116 = vector.extract_strided_slice %109 {offsets = [0, 32], sizes = [2, 32], strides = [1, 1]} : vector<2x96xf32> to vector<2x32xf32>
    %117 = math.tanh %116 : vector<2x32xf32>
    %118 = vector.extract_strided_slice %109 {offsets = [0, 64], sizes = [2, 32], strides = [1, 1]} : vector<2x96xf32> to vector<2x32xf32>
    %119 = arith.negf %118 : vector<2x32xf32>
    %120 = math.exp %119 : vector<2x32xf32>
    %cst_55 = arith.constant 1.000000e+00 : f32
    %121 = vector.broadcast %cst_55 : f32 to vector<2x32xf32>
    %122 = arith.addf %121, %120 : vector<2x32xf32>
    %123 = arith.divf %121, %122 : vector<2x32xf32>
    %124 = arith.mulf %115, %117 : vector<2x32xf32>
    %125 = math.tanh %124 : vector<2x32xf32>
    %126 = arith.mulf %123, %125 : vector<2x32xf32>
    %cst_56 = arith.constant dense<0.000000e+00> : vector<2x45xf32>
    %127 = tpu.matmul %126, %8, %cst_56 {dimension_numbers = #tpu.dot_dimension_numbers<[1], [0], [0], [1], [0, 0, 1, 1], [], []>} : vector<2x32xf32>, vector<32x45xf32>, vector<2x45xf32> -> vector<2x45xf32>
    %cst_57 = arith.constant dense<0.000000e+00> : vector<2x45xf32>
    %128 = tpu.matmul %64, %9, %cst_57 {dimension_numbers = #tpu.dot_dimension_numbers<[1], [0], [0], [1], [0, 0, 1, 1], [], []>} : vector<2x32xf32>, vector<32x45xf32>, vector<2x45xf32> -> vector<2x45xf32>
    %129 = arith.addf %127, %128 : vector<2x45xf32>
    %130 = vector.extract_strided_slice %129 {offsets = [0, 0], sizes = [2, 32], strides = [1, 1]} : vector<2x45xf32> to vector<2x32xf32>
    %131 = vector.extract_strided_slice %129 {offsets = [0, 32], sizes = [2, 1], strides = [1, 1]} : vector<2x45xf32> to vector<2x1xf32>
    %132 = vector.extract_strided_slice %129 {offsets = [0, 33], sizes = [2, 12], strides = [1, 1]} : vector<2x45xf32> to vector<2x12xf32>
    %133 = vector.shape_cast %130 : vector<2x32xf32> to vector<2x1x32xf32>
    "tpu.trace_start"() <{level = 10 : i32, message = "bqh,bth->bqt"}> : () -> ()
    %cst_58 = arith.constant dense<0.000000e+00> : vector<2x1x8xf32>
    %134 = tpu.matmul %133, %0, %cst_58 {dimension_numbers = #tpu.dot_dimension_numbers<[2], [2], [1], [1], [0, 0, 0, 1, 1, 1], [0], [0]>} : vector<2x1x32xf32>, vector<2x8x32xf32>, vector<2x1x8xf32> -> vector<2x1x8xf32>
    "tpu.trace_stop"() : () -> ()
    %135 = vector.shape_cast %134 : vector<2x1x8xf32> to vector<2x8xf32>
    %136 = vector.broadcast %131 : vector<2x1xf32> to vector<2x8xf32>
    %137 = arith.addf %135, %136 : vector<2x8xf32>
    %cst_59 = arith.constant -9.99999995E+11 : f32
    %138 = vector.broadcast %cst_59 : f32 to vector<2x8xf32>
    %139 = arith.select %3, %138, %137 : vector<2x8xi1>, vector<2x8xf32>
    %cst_60 = arith.constant dense<0xFF800000> : vector<2xf32>
    %140 = vector.multi_reduction <maximumf>, %139, %cst_60 [1] : vector<2x8xf32> to vector<2xf32>
    %141 = vector.shape_cast %140 : vector<2xf32> to vector<2x1xf32>
    %142 = vector.broadcast %141 : vector<2x1xf32> to vector<2x8xf32>
    %143 = arith.subf %139, %142 : vector<2x8xf32>
    %144 = math.exp %143 : vector<2x8xf32>
    %cst_61 = arith.constant dense<0.000000e+00> : vector<2xf32>
    %145 = vector.multi_reduction <add>, %144, %cst_61 [1] : vector<2x8xf32> to vector<2xf32>
    %146 = vector.shape_cast %145 : vector<2xf32> to vector<2x1xf32>
    %147 = vector.broadcast %146 : vector<2x1xf32> to vector<2x8xf32>
    %148 = arith.divf %144, %147 : vector<2x8xf32>
    %149 = vector.shape_cast %148 : vector<2x8xf32> to vector<2x1x8xf32>
    "tpu.trace_start"() <{level = 10 : i32, message = "bqt,bth->bqh"}> : () -> ()
    %cst_62 = arith.constant dense<0.000000e+00> : vector<2x1x32xf32>
    %150 = tpu.matmul %149, %0, %cst_62 {dimension_numbers = #tpu.dot_dimension_numbers<[2], [1], [1], [2], [0, 0, 0, 1, 1, 2], [0], [0]>} : vector<2x1x8xf32>, vector<2x8x32xf32>, vector<2x1x32xf32> -> vector<2x1x32xf32>
    "tpu.trace_stop"() : () -> ()
    %151 = vector.shape_cast %150 : vector<2x1x32xf32> to vector<2x32xf32>
    %152 = vector.broadcast %10 : vector<1x12xf32> to vector<2x12xf32>
    %153 = arith.addf %132, %152 : vector<2x12xf32>
    %cst_63 = arith.constant dense<0xFF800000> : vector<2xf32>
    %154 = vector.multi_reduction <maximumf>, %153, %cst_63 [1] : vector<2x12xf32> to vector<2xf32>
    %155 = vector.shape_cast %154 : vector<2xf32> to vector<2x1xf32>
    %156 = vector.broadcast %155 : vector<2x1xf32> to vector<2x12xf32>
    %157 = arith.subf %153, %156 : vector<2x12xf32>
    %158 = math.exp %157 : vector<2x12xf32>
    %cst_64 = arith.constant dense<0.000000e+00> : vector<2xf32>
    %159 = vector.multi_reduction <add>, %158, %cst_64 [1] : vector<2x12xf32> to vector<2xf32>
    %160 = vector.shape_cast %159 : vector<2xf32> to vector<2x1xf32>
    %161 = math.log %160 : vector<2x1xf32>
    %162 = vector.broadcast %161 : vector<2x1xf32> to vector<2x12xf32>
    %163 = arith.subf %157, %162 : vector<2x12xf32>
    %c1 = arith.constant 1 : index
    %c0_65 = arith.constant 0 : index
    %c0_66 = arith.constant 0 : index
    %164 = vector.load %arg14[%c1, %c0_65, %c0_66] : memref<8x2x12xf32, #tpu.memory_space<vmem>>, vector<1x2x12xf32>
    %165 = vector.shape_cast %164 : vector<1x2x12xf32> to vector<2x12xf32>
    %166 = vector.shape_cast %163 : vector<2x12xf32> to vector<1x2x12xf32>
    tpu.vector_store %arg14[%c1, %c0_65, %c0_66], %166 {strides = array<i32>} : memref<8x2x12xf32, #tpu.memory_space<vmem>>, vector<1x2x12xf32>,
    %cst_67 = arith.constant dense<0xFF800000> : vector<2xf32>
    %167 = vector.multi_reduction <maximumf>, %163, %cst_67 [1] : vector<2x12xf32> to vector<2xf32>
    %168 = vector.shape_cast %167 : vector<2xf32> to vector<2x1xf32>
    %169 = vector.broadcast %168 : vector<2x1xf32> to vector<2x12xf32>
    %170 = arith.cmpf oeq, %163, %169 : vector<2x12xf32>
    %c12_i32_68 = arith.constant 12 : i32
    %171 = vector.broadcast %c12_i32_68 : i32 to vector<2x12xi32>
    %172 = arith.select %170, %11, %171 : vector<2x12xi1>, vector<2x12xi32>
    %cst_69 = arith.constant dense<2147483647> : vector<2xi32>
    %173 = vector.multi_reduction <minsi>, %172, %cst_69 [1] : vector<2x12xi32> to vector<2xi32>
    %174 = vector.shape_cast %173 : vector<2xi32> to vector<2x1xi32>
    %175 = vector.broadcast %174 : vector<2x1xi32> to vector<2x12xi32>
    %176 = arith.cmpi eq, %11, %175 : vector<2x12xi32>
    %177 = arith.extui %176 : vector<2x12xi1> to vector<2x12xi32>
    %178 = arith.sitofp %177 : vector<2x12xi32> to vector<2x12xf32>
    %179 = vector.extract_strided_slice %0 {offsets = [0, 2, 0], sizes = [2, 1, 32], strides = [1, 1, 1]} : vector<2x8x32xf32> to vector<2x1x32xf32>
    %180 = vector.shape_cast %179 : vector<2x1x32xf32> to vector<2x32xf32>
    %cst_70 = arith.constant dense<0.000000e+00> : vector<2x96xf32>
    %181 = tpu.matmul %178, %4, %cst_70 {dimension_numbers = #tpu.dot_dimension_numbers<[1], [0], [0], [1], [0, 0, 1, 1], [], []>} : vector<2x12xf32>, vector<12x96xf32>, vector<2x96xf32> -> vector<2x96xf32>
    %cst_71 = arith.constant dense<0.000000e+00> : vector<2x96xf32>
    %182 = tpu.matmul %151, %5, %cst_71 {dimension_numbers = #tpu.dot_dimension_numbers<[1], [0], [0], [1], [0, 0, 1, 1], [], []>} : vector<2x32xf32>, vector<32x96xf32>, vector<2x96xf32> -> vector<2x96xf32>
    %183 = arith.addf %181, %182 : vector<2x96xf32>
    %cst_72 = arith.constant dense<0.000000e+00> : vector<2x96xf32>
    %184 = tpu.matmul %180, %6, %cst_72 {dimension_numbers = #tpu.dot_dimension_numbers<[1], [0], [0], [1], [0, 0, 1, 1], [], []>} : vector<2x32xf32>, vector<32x96xf32>, vector<2x96xf32> -> vector<2x96xf32>
    %185 = arith.addf %183, %184 : vector<2x96xf32>
    %186 = vector.broadcast %7 : vector<1x96xf32> to vector<2x96xf32>
    %187 = arith.addf %185, %186 : vector<2x96xf32>
    %188 = vector.extract_strided_slice %187 {offsets = [0, 0], sizes = [2, 32], strides = [1, 1]} : vector<2x96xf32> to vector<2x32xf32>
    %189 = arith.negf %188 : vector<2x32xf32>
    %190 = math.exp %189 : vector<2x32xf32>
    %cst_73 = arith.constant 1.000000e+00 : f32
    %191 = vector.broadcast %cst_73 : f32 to vector<2x32xf32>
    %192 = arith.addf %191, %190 : vector<2x32xf32>
    %193 = arith.divf %191, %192 : vector<2x32xf32>
    %194 = vector.extract_strided_slice %187 {offsets = [0, 32], sizes = [2, 32], strides = [1, 1]} : vector<2x96xf32> to vector<2x32xf32>
    %195 = math.tanh %194 : vector<2x32xf32>
    %196 = vector.extract_strided_slice %187 {offsets = [0, 64], sizes = [2, 32], strides = [1, 1]} : vector<2x96xf32> to vector<2x32xf32>
    %197 = arith.negf %196 : vector<2x32xf32>
    %198 = math.exp %197 : vector<2x32xf32>
    %cst_74 = arith.constant 1.000000e+00 : f32
    %199 = vector.broadcast %cst_74 : f32 to vector<2x32xf32>
    %200 = arith.addf %199, %198 : vector<2x32xf32>
    %201 = arith.divf %199, %200 : vector<2x32xf32>
    %202 = arith.mulf %193, %195 : vector<2x32xf32>
    %203 = math.tanh %202 : vector<2x32xf32>
    %204 = arith.mulf %201, %203 : vector<2x32xf32>
    %cst_75 = arith.constant dense<0.000000e+00> : vector<2x45xf32>
    %205 = tpu.matmul %204, %8, %cst_75 {dimension_numbers = #tpu.dot_dimension_numbers<[1], [0], [0], [1], [0, 0, 1, 1], [], []>} : vector<2x32xf32>, vector<32x45xf32>, vector<2x45xf32> -> vector<2x45xf32>
    %cst_76 = arith.constant dense<0.000000e+00> : vector<2x45xf32>
    %206 = tpu.matmul %151, %9, %cst_76 {dimension_numbers = #tpu.dot_dimension_numbers<[1], [0], [0], [1], [0, 0, 1, 1], [], []>} : vector<2x32xf32>, vector<32x45xf32>, vector<2x45xf32> -> vector<2x45xf32>
    %207 = arith.addf %205, %206 : vector<2x45xf32>
    %208 = vector.extract_strided_slice %207 {offsets = [0, 0], sizes = [2, 32], strides = [1, 1]} : vector<2x45xf32> to vector<2x32xf32>
    %209 = vector.extract_strided_slice %207 {offsets = [0, 32], sizes = [2, 1], strides = [1, 1]} : vector<2x45xf32> to vector<2x1xf32>
    %210 = vector.extract_strided_slice %207 {offsets = [0, 33], sizes = [2, 12], strides = [1, 1]} : vector<2x45xf32> to vector<2x12xf32>
    %211 = vector.shape_cast %208 : vector<2x32xf32> to vector<2x1x32xf32>
    "tpu.trace_start"() <{level = 10 : i32, message = "bqh,bth->bqt"}> : () -> ()
    %cst_77 = arith.constant dense<0.000000e+00> : vector<2x1x8xf32>
    %212 = tpu.matmul %211, %0, %cst_77 {dimension_numbers = #tpu.dot_dimension_numbers<[2], [2], [1], [1], [0, 0, 0, 1, 1, 1], [0], [0]>} : vector<2x1x32xf32>, vector<2x8x32xf32>, vector<2x1x8xf32> -> vector<2x1x8xf32>
    "tpu.trace_stop"() : () -> ()
    %213 = vector.shape_cast %212 : vector<2x1x8xf32> to vector<2x8xf32>
    %214 = vector.broadcast %209 : vector<2x1xf32> to vector<2x8xf32>
    %215 = arith.addf %213, %214 : vector<2x8xf32>
    %cst_78 = arith.constant -9.99999995E+11 : f32
    %216 = vector.broadcast %cst_78 : f32 to vector<2x8xf32>
    %217 = arith.select %3, %216, %215 : vector<2x8xi1>, vector<2x8xf32>
    %cst_79 = arith.constant dense<0xFF800000> : vector<2xf32>
    %218 = vector.multi_reduction <maximumf>, %217, %cst_79 [1] : vector<2x8xf32> to vector<2xf32>
    %219 = vector.shape_cast %218 : vector<2xf32> to vector<2x1xf32>
    %220 = vector.broadcast %219 : vector<2x1xf32> to vector<2x8xf32>
    %221 = arith.subf %217, %220 : vector<2x8xf32>
    %222 = math.exp %221 : vector<2x8xf32>
    %cst_80 = arith.constant dense<0.000000e+00> : vector<2xf32>
    %223 = vector.multi_reduction <add>, %222, %cst_80 [1] : vector<2x8xf32> to vector<2xf32>
    %224 = vector.shape_cast %223 : vector<2xf32> to vector<2x1xf32>
    %225 = vector.broadcast %224 : vector<2x1xf32> to vector<2x8xf32>
    %226 = arith.divf %222, %225 : vector<2x8xf32>
    %227 = vector.shape_cast %226 : vector<2x8xf32> to vector<2x1x8xf32>
    "tpu.trace_start"() <{level = 10 : i32, message = "bqt,bth->bqh"}> : () -> ()
    %cst_81 = arith.constant dense<0.000000e+00> : vector<2x1x32xf32>
    %228 = tpu.matmul %227, %0, %cst_81 {dimension_numbers = #tpu.dot_dimension_numbers<[2], [1], [1], [2], [0, 0, 0, 1, 1, 2], [0], [0]>} : vector<2x1x8xf32>, vector<2x8x32xf32>, vector<2x1x32xf32> -> vector<2x1x32xf32>
    "tpu.trace_stop"() : () -> ()
    %229 = vector.shape_cast %228 : vector<2x1x32xf32> to vector<2x32xf32>
    %230 = vector.broadcast %10 : vector<1x12xf32> to vector<2x12xf32>
    %231 = arith.addf %210, %230 : vector<2x12xf32>
    %cst_82 = arith.constant dense<0xFF800000> : vector<2xf32>
    %232 = vector.multi_reduction <maximumf>, %231, %cst_82 [1] : vector<2x12xf32> to vector<2xf32>
    %233 = vector.shape_cast %232 : vector<2xf32> to vector<2x1xf32>
    %234 = vector.broadcast %233 : vector<2x1xf32> to vector<2x12xf32>
    %235 = arith.subf %231, %234 : vector<2x12xf32>
    %236 = math.exp %235 : vector<2x12xf32>
    %cst_83 = arith.constant dense<0.000000e+00> : vector<2xf32>
    %237 = vector.multi_reduction <add>, %236, %cst_83 [1] : vector<2x12xf32> to vector<2xf32>
    %238 = vector.shape_cast %237 : vector<2xf32> to vector<2x1xf32>
    %239 = math.log %238 : vector<2x1xf32>
    %240 = vector.broadcast %239 : vector<2x1xf32> to vector<2x12xf32>
    %241 = arith.subf %235, %240 : vector<2x12xf32>
    %c2 = arith.constant 2 : index
    %c0_84 = arith.constant 0 : index
    %c0_85 = arith.constant 0 : index
    %242 = vector.load %arg14[%c2, %c0_84, %c0_85] : memref<8x2x12xf32, #tpu.memory_space<vmem>>, vector<1x2x12xf32>
    %243 = vector.shape_cast %242 : vector<1x2x12xf32> to vector<2x12xf32>
    %244 = vector.shape_cast %241 : vector<2x12xf32> to vector<1x2x12xf32>
    tpu.vector_store %arg14[%c2, %c0_84, %c0_85], %244 {strides = array<i32>} : memref<8x2x12xf32, #tpu.memory_space<vmem>>, vector<1x2x12xf32>,
    %cst_86 = arith.constant dense<0xFF800000> : vector<2xf32>
    %245 = vector.multi_reduction <maximumf>, %241, %cst_86 [1] : vector<2x12xf32> to vector<2xf32>
    %246 = vector.shape_cast %245 : vector<2xf32> to vector<2x1xf32>
    %247 = vector.broadcast %246 : vector<2x1xf32> to vector<2x12xf32>
    %248 = arith.cmpf oeq, %241, %247 : vector<2x12xf32>
    %c12_i32_87 = arith.constant 12 : i32
    %249 = vector.broadcast %c12_i32_87 : i32 to vector<2x12xi32>
    %250 = arith.select %248, %11, %249 : vector<2x12xi1>, vector<2x12xi32>
    %cst_88 = arith.constant dense<2147483647> : vector<2xi32>
    %251 = vector.multi_reduction <minsi>, %250, %cst_88 [1] : vector<2x12xi32> to vector<2xi32>
    %252 = vector.shape_cast %251 : vector<2xi32> to vector<2x1xi32>
    %253 = vector.broadcast %252 : vector<2x1xi32> to vector<2x12xi32>
    %254 = arith.cmpi eq, %11, %253 : vector<2x12xi32>
    %255 = arith.extui %254 : vector<2x12xi1> to vector<2x12xi32>
    %256 = arith.sitofp %255 : vector<2x12xi32> to vector<2x12xf32>
    %257 = vector.extract_strided_slice %0 {offsets = [0, 3, 0], sizes = [2, 1, 32], strides = [1, 1, 1]} : vector<2x8x32xf32> to vector<2x1x32xf32>
    %258 = vector.shape_cast %257 : vector<2x1x32xf32> to vector<2x32xf32>
    %cst_89 = arith.constant dense<0.000000e+00> : vector<2x96xf32>
    %259 = tpu.matmul %256, %4, %cst_89 {dimension_numbers = #tpu.dot_dimension_numbers<[1], [0], [0], [1], [0, 0, 1, 1], [], []>} : vector<2x12xf32>, vector<12x96xf32>, vector<2x96xf32> -> vector<2x96xf32>
    %cst_90 = arith.constant dense<0.000000e+00> : vector<2x96xf32>
    %260 = tpu.matmul %229, %5, %cst_90 {dimension_numbers = #tpu.dot_dimension_numbers<[1], [0], [0], [1], [0, 0, 1, 1], [], []>} : vector<2x32xf32>, vector<32x96xf32>, vector<2x96xf32> -> vector<2x96xf32>
    %261 = arith.addf %259, %260 : vector<2x96xf32>
    %cst_91 = arith.constant dense<0.000000e+00> : vector<2x96xf32>
    %262 = tpu.matmul %258, %6, %cst_91 {dimension_numbers = #tpu.dot_dimension_numbers<[1], [0], [0], [1], [0, 0, 1, 1], [], []>} : vector<2x32xf32>, vector<32x96xf32>, vector<2x96xf32> -> vector<2x96xf32>
    %263 = arith.addf %261, %262 : vector<2x96xf32>
    %264 = vector.broadcast %7 : vector<1x96xf32> to vector<2x96xf32>
    %265 = arith.addf %263, %264 : vector<2x96xf32>
    %266 = vector.extract_strided_slice %265 {offsets = [0, 0], sizes = [2, 32], strides = [1, 1]} : vector<2x96xf32> to vector<2x32xf32>
    %267 = arith.negf %266 : vector<2x32xf32>
    %268 = math.exp %267 : vector<2x32xf32>
    %cst_92 = arith.constant 1.000000e+00 : f32
    %269 = vector.broadcast %cst_92 : f32 to vector<2x32xf32>
    %270 = arith.addf %269, %268 : vector<2x32xf32>
    %271 = arith.divf %269, %270 : vector<2x32xf32>
    %272 = vector.extract_strided_slice %265 {offsets = [0, 32], sizes = [2, 32], strides = [1, 1]} : vector<2x96xf32> to vector<2x32xf32>
    %273 = math.tanh %272 : vector<2x32xf32>
    %274 = vector.extract_strided_slice %265 {offsets = [0, 64], sizes = [2, 32], strides = [1, 1]} : vector<2x96xf32> to vector<2x32xf32>
    %275 = arith.negf %274 : vector<2x32xf32>
    %276 = math.exp %275 : vector<2x32xf32>
    %cst_93 = arith.constant 1.000000e+00 : f32
    %277 = vector.broadcast %cst_93 : f32 to vector<2x32xf32>
    %278 = arith.addf %277, %276 : vector<2x32xf32>
    %279 = arith.divf %277, %278 : vector<2x32xf32>
    %280 = arith.mulf %271, %273 : vector<2x32xf32>
    %281 = math.tanh %280 : vector<2x32xf32>
    %282 = arith.mulf %279, %281 : vector<2x32xf32>
    %cst_94 = arith.constant dense<0.000000e+00> : vector<2x45xf32>
    %283 = tpu.matmul %282, %8, %cst_94 {dimension_numbers = #tpu.dot_dimension_numbers<[1], [0], [0], [1], [0, 0, 1, 1], [], []>} : vector<2x32xf32>, vector<32x45xf32>, vector<2x45xf32> -> vector<2x45xf32>
    %cst_95 = arith.constant dense<0.000000e+00> : vector<2x45xf32>
    %284 = tpu.matmul %229, %9, %cst_95 {dimension_numbers = #tpu.dot_dimension_numbers<[1], [0], [0], [1], [0, 0, 1, 1], [], []>} : vector<2x32xf32>, vector<32x45xf32>, vector<2x45xf32> -> vector<2x45xf32>
    %285 = arith.addf %283, %284 : vector<2x45xf32>
    %286 = vector.extract_strided_slice %285 {offsets = [0, 0], sizes = [2, 32], strides = [1, 1]} : vector<2x45xf32> to vector<2x32xf32>
    %287 = vector.extract_strided_slice %285 {offsets = [0, 32], sizes = [2, 1], strides = [1, 1]} : vector<2x45xf32> to vector<2x1xf32>
    %288 = vector.extract_strided_slice %285 {offsets = [0, 33], sizes = [2, 12], strides = [1, 1]} : vector<2x45xf32> to vector<2x12xf32>
    %289 = vector.shape_cast %286 : vector<2x32xf32> to vector<2x1x32xf32>
    "tpu.trace_start"() <{level = 10 : i32, message = "bqh,bth->bqt"}> : () -> ()
    %cst_96 = arith.constant dense<0.000000e+00> : vector<2x1x8xf32>
    %290 = tpu.matmul %289, %0, %cst_96 {dimension_numbers = #tpu.dot_dimension_numbers<[2], [2], [1], [1], [0, 0, 0, 1, 1, 1], [0], [0]>} : vector<2x1x32xf32>, vector<2x8x32xf32>, vector<2x1x8xf32> -> vector<2x1x8xf32>
    "tpu.trace_stop"() : () -> ()
    %291 = vector.shape_cast %290 : vector<2x1x8xf32> to vector<2x8xf32>
    %292 = vector.broadcast %287 : vector<2x1xf32> to vector<2x8xf32>
    %293 = arith.addf %291, %292 : vector<2x8xf32>
    %cst_97 = arith.constant -9.99999995E+11 : f32
    %294 = vector.broadcast %cst_97 : f32 to vector<2x8xf32>
    %295 = arith.select %3, %294, %293 : vector<2x8xi1>, vector<2x8xf32>
    %cst_98 = arith.constant dense<0xFF800000> : vector<2xf32>
    %296 = vector.multi_reduction <maximumf>, %295, %cst_98 [1] : vector<2x8xf32> to vector<2xf32>
    %297 = vector.shape_cast %296 : vector<2xf32> to vector<2x1xf32>
    %298 = vector.broadcast %297 : vector<2x1xf32> to vector<2x8xf32>
    %299 = arith.subf %295, %298 : vector<2x8xf32>
    %300 = math.exp %299 : vector<2x8xf32>
    %cst_99 = arith.constant dense<0.000000e+00> : vector<2xf32>
    %301 = vector.multi_reduction <add>, %300, %cst_99 [1] : vector<2x8xf32> to vector<2xf32>
    %302 = vector.shape_cast %301 : vector<2xf32> to vector<2x1xf32>
    %303 = vector.broadcast %302 : vector<2x1xf32> to vector<2x8xf32>
    %304 = arith.divf %300, %303 : vector<2x8xf32>
    %305 = vector.shape_cast %304 : vector<2x8xf32> to vector<2x1x8xf32>
    "tpu.trace_start"() <{level = 10 : i32, message = "bqt,bth->bqh"}> : () -> ()
    %cst_100 = arith.constant dense<0.000000e+00> : vector<2x1x32xf32>
    %306 = tpu.matmul %305, %0, %cst_100 {dimension_numbers = #tpu.dot_dimension_numbers<[2], [1], [1], [2], [0, 0, 0, 1, 1, 2], [0], [0]>} : vector<2x1x8xf32>, vector<2x8x32xf32>, vector<2x1x32xf32> -> vector<2x1x32xf32>
    "tpu.trace_stop"() : () -> ()
    %307 = vector.shape_cast %306 : vector<2x1x32xf32> to vector<2x32xf32>
    %308 = vector.broadcast %10 : vector<1x12xf32> to vector<2x12xf32>
    %309 = arith.addf %288, %308 : vector<2x12xf32>
    %cst_101 = arith.constant dense<0xFF800000> : vector<2xf32>
    %310 = vector.multi_reduction <maximumf>, %309, %cst_101 [1] : vector<2x12xf32> to vector<2xf32>
    %311 = vector.shape_cast %310 : vector<2xf32> to vector<2x1xf32>
    %312 = vector.broadcast %311 : vector<2x1xf32> to vector<2x12xf32>
    %313 = arith.subf %309, %312 : vector<2x12xf32>
    %314 = math.exp %313 : vector<2x12xf32>
    %cst_102 = arith.constant dense<0.000000e+00> : vector<2xf32>
    %315 = vector.multi_reduction <add>, %314, %cst_102 [1] : vector<2x12xf32> to vector<2xf32>
    %316 = vector.shape_cast %315 : vector<2xf32> to vector<2x1xf32>
    %317 = math.log %316 : vector<2x1xf32>
    %318 = vector.broadcast %317 : vector<2x1xf32> to vector<2x12xf32>
    %319 = arith.subf %313, %318 : vector<2x12xf32>
    %c3 = arith.constant 3 : index
    %c0_103 = arith.constant 0 : index
    %c0_104 = arith.constant 0 : index
    %320 = vector.load %arg14[%c3, %c0_103, %c0_104] : memref<8x2x12xf32, #tpu.memory_space<vmem>>, vector<1x2x12xf32>
    %321 = vector.shape_cast %320 : vector<1x2x12xf32> to vector<2x12xf32>
    %322 = vector.shape_cast %319 : vector<2x12xf32> to vector<1x2x12xf32>
    tpu.vector_store %arg14[%c3, %c0_103, %c0_104], %322 {strides = array<i32>} : memref<8x2x12xf32, #tpu.memory_space<vmem>>, vector<1x2x12xf32>,
    %cst_105 = arith.constant dense<0xFF800000> : vector<2xf32>
    %323 = vector.multi_reduction <maximumf>, %319, %cst_105 [1] : vector<2x12xf32> to vector<2xf32>
    %324 = vector.shape_cast %323 : vector<2xf32> to vector<2x1xf32>
    %325 = vector.broadcast %324 : vector<2x1xf32> to vector<2x12xf32>
    %326 = arith.cmpf oeq, %319, %325 : vector<2x12xf32>
    %c12_i32_106 = arith.constant 12 : i32
    %327 = vector.broadcast %c12_i32_106 : i32 to vector<2x12xi32>
    %328 = arith.select %326, %11, %327 : vector<2x12xi1>, vector<2x12xi32>
    %cst_107 = arith.constant dense<2147483647> : vector<2xi32>
    %329 = vector.multi_reduction <minsi>, %328, %cst_107 [1] : vector<2x12xi32> to vector<2xi32>
    %330 = vector.shape_cast %329 : vector<2xi32> to vector<2x1xi32>
    %331 = vector.broadcast %330 : vector<2x1xi32> to vector<2x12xi32>
    %332 = arith.cmpi eq, %11, %331 : vector<2x12xi32>
    %333 = arith.extui %332 : vector<2x12xi1> to vector<2x12xi32>
    %334 = arith.sitofp %333 : vector<2x12xi32> to vector<2x12xf32>
    %335 = vector.extract_strided_slice %0 {offsets = [0, 4, 0], sizes = [2, 1, 32], strides = [1, 1, 1]} : vector<2x8x32xf32> to vector<2x1x32xf32>
    %336 = vector.shape_cast %335 : vector<2x1x32xf32> to vector<2x32xf32>
    %cst_108 = arith.constant dense<0.000000e+00> : vector<2x96xf32>
    %337 = tpu.matmul %334, %4, %cst_108 {dimension_numbers = #tpu.dot_dimension_numbers<[1], [0], [0], [1], [0, 0, 1, 1], [], []>} : vector<2x12xf32>, vector<12x96xf32>, vector<2x96xf32> -> vector<2x96xf32>
    %cst_109 = arith.constant dense<0.000000e+00> : vector<2x96xf32>
    %338 = tpu.matmul %307, %5, %cst_109 {dimension_numbers = #tpu.dot_dimension_numbers<[1], [0], [0], [1], [0, 0, 1, 1], [], []>} : vector<2x32xf32>, vector<32x96xf32>, vector<2x96xf32> -> vector<2x96xf32>
    %339 = arith.addf %337, %338 : vector<2x96xf32>
    %cst_110 = arith.constant dense<0.000000e+00> : vector<2x96xf32>
    %340 = tpu.matmul %336, %6, %cst_110 {dimension_numbers = #tpu.dot_dimension_numbers<[1], [0], [0], [1], [0, 0, 1, 1], [], []>} : vector<2x32xf32>, vector<32x96xf32>, vector<2x96xf32> -> vector<2x96xf32>
    %341 = arith.addf %339, %340 : vector<2x96xf32>
    %342 = vector.broadcast %7 : vector<1x96xf32> to vector<2x96xf32>
    %343 = arith.addf %341, %342 : vector<2x96xf32>
    %344 = vector.extract_strided_slice %343 {offsets = [0, 0], sizes = [2, 32], strides = [1, 1]} : vector<2x96xf32> to vector<2x32xf32>
    %345 = arith.negf %344 : vector<2x32xf32>
    %346 = math.exp %345 : vector<2x32xf32>
    %cst_111 = arith.constant 1.000000e+00 : f32
    %347 = vector.broadcast %cst_111 : f32 to vector<2x32xf32>
    %348 = arith.addf %347, %346 : vector<2x32xf32>
    %349 = arith.divf %347, %348 : vector<2x32xf32>
    %350 = vector.extract_strided_slice %343 {offsets = [0, 32], sizes = [2, 32], strides = [1, 1]} : vector<2x96xf32> to vector<2x32xf32>
    %351 = math.tanh %350 : vector<2x32xf32>
    %352 = vector.extract_strided_slice %343 {offsets = [0, 64], sizes = [2, 32], strides = [1, 1]} : vector<2x96xf32> to vector<2x32xf32>
    %353 = arith.negf %352 : vector<2x32xf32>
    %354 = math.exp %353 : vector<2x32xf32>
    %cst_112 = arith.constant 1.000000e+00 : f32
    %355 = vector.broadcast %cst_112 : f32 to vector<2x32xf32>
    %356 = arith.addf %355, %354 : vector<2x32xf32>
    %357 = arith.divf %355, %356 : vector<2x32xf32>
    %358 = arith.mulf %349, %351 : vector<2x32xf32>
    %359 = math.tanh %358 : vector<2x32xf32>
    %360 = arith.mulf %357, %359 : vector<2x32xf32>
    %cst_113 = arith.constant dense<0.000000e+00> : vector<2x45xf32>
    %361 = tpu.matmul %360, %8, %cst_113 {dimension_numbers = #tpu.dot_dimension_numbers<[1], [0], [0], [1], [0, 0, 1, 1], [], []>} : vector<2x32xf32>, vector<32x45xf32>, vector<2x45xf32> -> vector<2x45xf32>
    %cst_114 = arith.constant dense<0.000000e+00> : vector<2x45xf32>
    %362 = tpu.matmul %307, %9, %cst_114 {dimension_numbers = #tpu.dot_dimension_numbers<[1], [0], [0], [1], [0, 0, 1, 1], [], []>} : vector<2x32xf32>, vector<32x45xf32>, vector<2x45xf32> -> vector<2x45xf32>
    %363 = arith.addf %361, %362 : vector<2x45xf32>
    %364 = vector.extract_strided_slice %363 {offsets = [0, 0], sizes = [2, 32], strides = [1, 1]} : vector<2x45xf32> to vector<2x32xf32>
    %365 = vector.extract_strided_slice %363 {offsets = [0, 32], sizes = [2, 1], strides = [1, 1]} : vector<2x45xf32> to vector<2x1xf32>
    %366 = vector.extract_strided_slice %363 {offsets = [0, 33], sizes = [2, 12], strides = [1, 1]} : vector<2x45xf32> to vector<2x12xf32>
    %367 = vector.shape_cast %364 : vector<2x32xf32> to vector<2x1x32xf32>
    "tpu.trace_start"() <{level = 10 : i32, message = "bqh,bth->bqt"}> : () -> ()
    %cst_115 = arith.constant dense<0.000000e+00> : vector<2x1x8xf32>
    %368 = tpu.matmul %367, %0, %cst_115 {dimension_numbers = #tpu.dot_dimension_numbers<[2], [2], [1], [1], [0, 0, 0, 1, 1, 1], [0], [0]>} : vector<2x1x32xf32>, vector<2x8x32xf32>, vector<2x1x8xf32> -> vector<2x1x8xf32>
    "tpu.trace_stop"() : () -> ()
    %369 = vector.shape_cast %368 : vector<2x1x8xf32> to vector<2x8xf32>
    %370 = vector.broadcast %365 : vector<2x1xf32> to vector<2x8xf32>
    %371 = arith.addf %369, %370 : vector<2x8xf32>
    %cst_116 = arith.constant -9.99999995E+11 : f32
    %372 = vector.broadcast %cst_116 : f32 to vector<2x8xf32>
    %373 = arith.select %3, %372, %371 : vector<2x8xi1>, vector<2x8xf32>
    %cst_117 = arith.constant dense<0xFF800000> : vector<2xf32>
    %374 = vector.multi_reduction <maximumf>, %373, %cst_117 [1] : vector<2x8xf32> to vector<2xf32>
    %375 = vector.shape_cast %374 : vector<2xf32> to vector<2x1xf32>
    %376 = vector.broadcast %375 : vector<2x1xf32> to vector<2x8xf32>
    %377 = arith.subf %373, %376 : vector<2x8xf32>
    %378 = math.exp %377 : vector<2x8xf32>
    %cst_118 = arith.constant dense<0.000000e+00> : vector<2xf32>
    %379 = vector.multi_reduction <add>, %378, %cst_118 [1] : vector<2x8xf32> to vector<2xf32>
    %380 = vector.shape_cast %379 : vector<2xf32> to vector<2x1xf32>
    %381 = vector.broadcast %380 : vector<2x1xf32> to vector<2x8xf32>
    %382 = arith.divf %378, %381 : vector<2x8xf32>
    %383 = vector.shape_cast %382 : vector<2x8xf32> to vector<2x1x8xf32>
    "tpu.trace_start"() <{level = 10 : i32, message = "bqt,bth->bqh"}> : () -> ()
    %cst_119 = arith.constant dense<0.000000e+00> : vector<2x1x32xf32>
    %384 = tpu.matmul %383, %0, %cst_119 {dimension_numbers = #tpu.dot_dimension_numbers<[2], [1], [1], [2], [0, 0, 0, 1, 1, 2], [0], [0]>} : vector<2x1x8xf32>, vector<2x8x32xf32>, vector<2x1x32xf32> -> vector<2x1x32xf32>
    "tpu.trace_stop"() : () -> ()
    %385 = vector.shape_cast %384 : vector<2x1x32xf32> to vector<2x32xf32>
    %386 = vector.broadcast %10 : vector<1x12xf32> to vector<2x12xf32>
    %387 = arith.addf %366, %386 : vector<2x12xf32>
    %cst_120 = arith.constant dense<0xFF800000> : vector<2xf32>
    %388 = vector.multi_reduction <maximumf>, %387, %cst_120 [1] : vector<2x12xf32> to vector<2xf32>
    %389 = vector.shape_cast %388 : vector<2xf32> to vector<2x1xf32>
    %390 = vector.broadcast %389 : vector<2x1xf32> to vector<2x12xf32>
    %391 = arith.subf %387, %390 : vector<2x12xf32>
    %392 = math.exp %391 : vector<2x12xf32>
    %cst_121 = arith.constant dense<0.000000e+00> : vector<2xf32>
    %393 = vector.multi_reduction <add>, %392, %cst_121 [1] : vector<2x12xf32> to vector<2xf32>
    %394 = vector.shape_cast %393 : vector<2xf32> to vector<2x1xf32>
    %395 = math.log %394 : vector<2x1xf32>
    %396 = vector.broadcast %395 : vector<2x1xf32> to vector<2x12xf32>
    %397 = arith.subf %391, %396 : vector<2x12xf32>
    %c4 = arith.constant 4 : index
    %c0_122 = arith.constant 0 : index
    %c0_123 = arith.constant 0 : index
    %398 = vector.load %arg14[%c4, %c0_122, %c0_123] : memref<8x2x12xf32, #tpu.memory_space<vmem>>, vector<1x2x12xf32>
    %399 = vector.shape_cast %398 : vector<1x2x12xf32> to vector<2x12xf32>
    %400 = vector.shape_cast %397 : vector<2x12xf32> to vector<1x2x12xf32>
    tpu.vector_store %arg14[%c4, %c0_122, %c0_123], %400 {strides = array<i32>} : memref<8x2x12xf32, #tpu.memory_space<vmem>>, vector<1x2x12xf32>,
    %cst_124 = arith.constant dense<0xFF800000> : vector<2xf32>
    %401 = vector.multi_reduction <maximumf>, %397, %cst_124 [1] : vector<2x12xf32> to vector<2xf32>
    %402 = vector.shape_cast %401 : vector<2xf32> to vector<2x1xf32>
    %403 = vector.broadcast %402 : vector<2x1xf32> to vector<2x12xf32>
    %404 = arith.cmpf oeq, %397, %403 : vector<2x12xf32>
    %c12_i32_125 = arith.constant 12 : i32
    %405 = vector.broadcast %c12_i32_125 : i32 to vector<2x12xi32>
    %406 = arith.select %404, %11, %405 : vector<2x12xi1>, vector<2x12xi32>
    %cst_126 = arith.constant dense<2147483647> : vector<2xi32>
    %407 = vector.multi_reduction <minsi>, %406, %cst_126 [1] : vector<2x12xi32> to vector<2xi32>
    %408 = vector.shape_cast %407 : vector<2xi32> to vector<2x1xi32>
    %409 = vector.broadcast %408 : vector<2x1xi32> to vector<2x12xi32>
    %410 = arith.cmpi eq, %11, %409 : vector<2x12xi32>
    %411 = arith.extui %410 : vector<2x12xi1> to vector<2x12xi32>
    %412 = arith.sitofp %411 : vector<2x12xi32> to vector<2x12xf32>
    %413 = vector.extract_strided_slice %0 {offsets = [0, 5, 0], sizes = [2, 1, 32], strides = [1, 1, 1]} : vector<2x8x32xf32> to vector<2x1x32xf32>
    %414 = vector.shape_cast %413 : vector<2x1x32xf32> to vector<2x32xf32>
    %cst_127 = arith.constant dense<0.000000e+00> : vector<2x96xf32>
    %415 = tpu.matmul %412, %4, %cst_127 {dimension_numbers = #tpu.dot_dimension_numbers<[1], [0], [0], [1], [0, 0, 1, 1], [], []>} : vector<2x12xf32>, vector<12x96xf32>, vector<2x96xf32> -> vector<2x96xf32>
    %cst_128 = arith.constant dense<0.000000e+00> : vector<2x96xf32>
    %416 = tpu.matmul %385, %5, %cst_128 {dimension_numbers = #tpu.dot_dimension_numbers<[1], [0], [0], [1], [0, 0, 1, 1], [], []>} : vector<2x32xf32>, vector<32x96xf32>, vector<2x96xf32> -> vector<2x96xf32>
    %417 = arith.addf %415, %416 : vector<2x96xf32>
    %cst_129 = arith.constant dense<0.000000e+00> : vector<2x96xf32>
    %418 = tpu.matmul %414, %6, %cst_129 {dimension_numbers = #tpu.dot_dimension_numbers<[1], [0], [0], [1], [0, 0, 1, 1], [], []>} : vector<2x32xf32>, vector<32x96xf32>, vector<2x96xf32> -> vector<2x96xf32>
    %419 = arith.addf %417, %418 : vector<2x96xf32>
    %420 = vector.broadcast %7 : vector<1x96xf32> to vector<2x96xf32>
    %421 = arith.addf %419, %420 : vector<2x96xf32>
    %422 = vector.extract_strided_slice %421 {offsets = [0, 0], sizes = [2, 32], strides = [1, 1]} : vector<2x96xf32> to vector<2x32xf32>
    %423 = arith.negf %422 : vector<2x32xf32>
    %424 = math.exp %423 : vector<2x32xf32>
    %cst_130 = arith.constant 1.000000e+00 : f32
    %425 = vector.broadcast %cst_130 : f32 to vector<2x32xf32>
    %426 = arith.addf %425, %424 : vector<2x32xf32>
    %427 = arith.divf %425, %426 : vector<2x32xf32>
    %428 = vector.extract_strided_slice %421 {offsets = [0, 32], sizes = [2, 32], strides = [1, 1]} : vector<2x96xf32> to vector<2x32xf32>
    %429 = math.tanh %428 : vector<2x32xf32>
    %430 = vector.extract_strided_slice %421 {offsets = [0, 64], sizes = [2, 32], strides = [1, 1]} : vector<2x96xf32> to vector<2x32xf32>
    %431 = arith.negf %430 : vector<2x32xf32>
    %432 = math.exp %431 : vector<2x32xf32>
    %cst_131 = arith.constant 1.000000e+00 : f32
    %433 = vector.broadcast %cst_131 : f32 to vector<2x32xf32>
    %434 = arith.addf %433, %432 : vector<2x32xf32>
    %435 = arith.divf %433, %434 : vector<2x32xf32>
    %436 = arith.mulf %427, %429 : vector<2x32xf32>
    %437 = math.tanh %436 : vector<2x32xf32>
    %438 = arith.mulf %435, %437 : vector<2x32xf32>
    %cst_132 = arith.constant dense<0.000000e+00> : vector<2x45xf32>
    %439 = tpu.matmul %438, %8, %cst_132 {dimension_numbers = #tpu.dot_dimension_numbers<[1], [0], [0], [1], [0, 0, 1, 1], [], []>} : vector<2x32xf32>, vector<32x45xf32>, vector<2x45xf32> -> vector<2x45xf32>
    %cst_133 = arith.constant dense<0.000000e+00> : vector<2x45xf32>
    %440 = tpu.matmul %385, %9, %cst_133 {dimension_numbers = #tpu.dot_dimension_numbers<[1], [0], [0], [1], [0, 0, 1, 1], [], []>} : vector<2x32xf32>, vector<32x45xf32>, vector<2x45xf32> -> vector<2x45xf32>
    %441 = arith.addf %439, %440 : vector<2x45xf32>
    %442 = vector.extract_strided_slice %441 {offsets = [0, 0], sizes = [2, 32], strides = [1, 1]} : vector<2x45xf32> to vector<2x32xf32>
    %443 = vector.extract_strided_slice %441 {offsets = [0, 32], sizes = [2, 1], strides = [1, 1]} : vector<2x45xf32> to vector<2x1xf32>
    %444 = vector.extract_strided_slice %441 {offsets = [0, 33], sizes = [2, 12], strides = [1, 1]} : vector<2x45xf32> to vector<2x12xf32>
    %445 = vector.shape_cast %442 : vector<2x32xf32> to vector<2x1x32xf32>
    "tpu.trace_start"() <{level = 10 : i32, message = "bqh,bth->bqt"}> : () -> ()
    %cst_134 = arith.constant dense<0.000000e+00> : vector<2x1x8xf32>
    %446 = tpu.matmul %445, %0, %cst_134 {dimension_numbers = #tpu.dot_dimension_numbers<[2], [2], [1], [1], [0, 0, 0, 1, 1, 1], [0], [0]>} : vector<2x1x32xf32>, vector<2x8x32xf32>, vector<2x1x8xf32> -> vector<2x1x8xf32>
    "tpu.trace_stop"() : () -> ()
    %447 = vector.shape_cast %446 : vector<2x1x8xf32> to vector<2x8xf32>
    %448 = vector.broadcast %443 : vector<2x1xf32> to vector<2x8xf32>
    %449 = arith.addf %447, %448 : vector<2x8xf32>
    %cst_135 = arith.constant -9.99999995E+11 : f32
    %450 = vector.broadcast %cst_135 : f32 to vector<2x8xf32>
    %451 = arith.select %3, %450, %449 : vector<2x8xi1>, vector<2x8xf32>
    %cst_136 = arith.constant dense<0xFF800000> : vector<2xf32>
    %452 = vector.multi_reduction <maximumf>, %451, %cst_136 [1] : vector<2x8xf32> to vector<2xf32>
    %453 = vector.shape_cast %452 : vector<2xf32> to vector<2x1xf32>
    %454 = vector.broadcast %453 : vector<2x1xf32> to vector<2x8xf32>
    %455 = arith.subf %451, %454 : vector<2x8xf32>
    %456 = math.exp %455 : vector<2x8xf32>
    %cst_137 = arith.constant dense<0.000000e+00> : vector<2xf32>
    %457 = vector.multi_reduction <add>, %456, %cst_137 [1] : vector<2x8xf32> to vector<2xf32>
    %458 = vector.shape_cast %457 : vector<2xf32> to vector<2x1xf32>
    %459 = vector.broadcast %458 : vector<2x1xf32> to vector<2x8xf32>
    %460 = arith.divf %456, %459 : vector<2x8xf32>
    %461 = vector.shape_cast %460 : vector<2x8xf32> to vector<2x1x8xf32>
    "tpu.trace_start"() <{level = 10 : i32, message = "bqt,bth->bqh"}> : () -> ()
    %cst_138 = arith.constant dense<0.000000e+00> : vector<2x1x32xf32>
    %462 = tpu.matmul %461, %0, %cst_138 {dimension_numbers = #tpu.dot_dimension_numbers<[2], [1], [1], [2], [0, 0, 0, 1, 1, 2], [0], [0]>} : vector<2x1x8xf32>, vector<2x8x32xf32>, vector<2x1x32xf32> -> vector<2x1x32xf32>
    "tpu.trace_stop"() : () -> ()
    %463 = vector.shape_cast %462 : vector<2x1x32xf32> to vector<2x32xf32>
    %464 = vector.broadcast %10 : vector<1x12xf32> to vector<2x12xf32>
    %465 = arith.addf %444, %464 : vector<2x12xf32>
    %cst_139 = arith.constant dense<0xFF800000> : vector<2xf32>
    %466 = vector.multi_reduction <maximumf>, %465, %cst_139 [1] : vector<2x12xf32> to vector<2xf32>
    %467 = vector.shape_cast %466 : vector<2xf32> to vector<2x1xf32>
    %468 = vector.broadcast %467 : vector<2x1xf32> to vector<2x12xf32>
    %469 = arith.subf %465, %468 : vector<2x12xf32>
    %470 = math.exp %469 : vector<2x12xf32>
    %cst_140 = arith.constant dense<0.000000e+00> : vector<2xf32>
    %471 = vector.multi_reduction <add>, %470, %cst_140 [1] : vector<2x12xf32> to vector<2xf32>
    %472 = vector.shape_cast %471 : vector<2xf32> to vector<2x1xf32>
    %473 = math.log %472 : vector<2x1xf32>
    %474 = vector.broadcast %473 : vector<2x1xf32> to vector<2x12xf32>
    %475 = arith.subf %469, %474 : vector<2x12xf32>
    %c5 = arith.constant 5 : index
    %c0_141 = arith.constant 0 : index
    %c0_142 = arith.constant 0 : index
    %476 = vector.load %arg14[%c5, %c0_141, %c0_142] : memref<8x2x12xf32, #tpu.memory_space<vmem>>, vector<1x2x12xf32>
    %477 = vector.shape_cast %476 : vector<1x2x12xf32> to vector<2x12xf32>
    %478 = vector.shape_cast %475 : vector<2x12xf32> to vector<1x2x12xf32>
    tpu.vector_store %arg14[%c5, %c0_141, %c0_142], %478 {strides = array<i32>} : memref<8x2x12xf32, #tpu.memory_space<vmem>>, vector<1x2x12xf32>,
    %cst_143 = arith.constant dense<0xFF800000> : vector<2xf32>
    %479 = vector.multi_reduction <maximumf>, %475, %cst_143 [1] : vector<2x12xf32> to vector<2xf32>
    %480 = vector.shape_cast %479 : vector<2xf32> to vector<2x1xf32>
    %481 = vector.broadcast %480 : vector<2x1xf32> to vector<2x12xf32>
    %482 = arith.cmpf oeq, %475, %481 : vector<2x12xf32>
    %c12_i32_144 = arith.constant 12 : i32
    %483 = vector.broadcast %c12_i32_144 : i32 to vector<2x12xi32>
    %484 = arith.select %482, %11, %483 : vector<2x12xi1>, vector<2x12xi32>
    %cst_145 = arith.constant dense<2147483647> : vector<2xi32>
    %485 = vector.multi_reduction <minsi>, %484, %cst_145 [1] : vector<2x12xi32> to vector<2xi32>
    %486 = vector.shape_cast %485 : vector<2xi32> to vector<2x1xi32>
    %487 = vector.broadcast %486 : vector<2x1xi32> to vector<2x12xi32>
    %488 = arith.cmpi eq, %11, %487 : vector<2x12xi32>
    %489 = arith.extui %488 : vector<2x12xi1> to vector<2x12xi32>
    %490 = arith.sitofp %489 : vector<2x12xi32> to vector<2x12xf32>
    %491 = vector.extract_strided_slice %0 {offsets = [0, 6, 0], sizes = [2, 1, 32], strides = [1, 1, 1]} : vector<2x8x32xf32> to vector<2x1x32xf32>
    %492 = vector.shape_cast %491 : vector<2x1x32xf32> to vector<2x32xf32>
    %cst_146 = arith.constant dense<0.000000e+00> : vector<2x96xf32>
    %493 = tpu.matmul %490, %4, %cst_146 {dimension_numbers = #tpu.dot_dimension_numbers<[1], [0], [0], [1], [0, 0, 1, 1], [], []>} : vector<2x12xf32>, vector<12x96xf32>, vector<2x96xf32> -> vector<2x96xf32>
    %cst_147 = arith.constant dense<0.000000e+00> : vector<2x96xf32>
    %494 = tpu.matmul %463, %5, %cst_147 {dimension_numbers = #tpu.dot_dimension_numbers<[1], [0], [0], [1], [0, 0, 1, 1], [], []>} : vector<2x32xf32>, vector<32x96xf32>, vector<2x96xf32> -> vector<2x96xf32>
    %495 = arith.addf %493, %494 : vector<2x96xf32>
    %cst_148 = arith.constant dense<0.000000e+00> : vector<2x96xf32>
    %496 = tpu.matmul %492, %6, %cst_148 {dimension_numbers = #tpu.dot_dimension_numbers<[1], [0], [0], [1], [0, 0, 1, 1], [], []>} : vector<2x32xf32>, vector<32x96xf32>, vector<2x96xf32> -> vector<2x96xf32>
    %497 = arith.addf %495, %496 : vector<2x96xf32>
    %498 = vector.broadcast %7 : vector<1x96xf32> to vector<2x96xf32>
    %499 = arith.addf %497, %498 : vector<2x96xf32>
    %500 = vector.extract_strided_slice %499 {offsets = [0, 0], sizes = [2, 32], strides = [1, 1]} : vector<2x96xf32> to vector<2x32xf32>
    %501 = arith.negf %500 : vector<2x32xf32>
    %502 = math.exp %501 : vector<2x32xf32>
    %cst_149 = arith.constant 1.000000e+00 : f32
    %503 = vector.broadcast %cst_149 : f32 to vector<2x32xf32>
    %504 = arith.addf %503, %502 : vector<2x32xf32>
    %505 = arith.divf %503, %504 : vector<2x32xf32>
    %506 = vector.extract_strided_slice %499 {offsets = [0, 32], sizes = [2, 32], strides = [1, 1]} : vector<2x96xf32> to vector<2x32xf32>
    %507 = math.tanh %506 : vector<2x32xf32>
    %508 = vector.extract_strided_slice %499 {offsets = [0, 64], sizes = [2, 32], strides = [1, 1]} : vector<2x96xf32> to vector<2x32xf32>
    %509 = arith.negf %508 : vector<2x32xf32>
    %510 = math.exp %509 : vector<2x32xf32>
    %cst_150 = arith.constant 1.000000e+00 : f32
    %511 = vector.broadcast %cst_150 : f32 to vector<2x32xf32>
    %512 = arith.addf %511, %510 : vector<2x32xf32>
    %513 = arith.divf %511, %512 : vector<2x32xf32>
    %514 = arith.mulf %505, %507 : vector<2x32xf32>
    %515 = math.tanh %514 : vector<2x32xf32>
    %516 = arith.mulf %513, %515 : vector<2x32xf32>
    %cst_151 = arith.constant dense<0.000000e+00> : vector<2x45xf32>
    %517 = tpu.matmul %516, %8, %cst_151 {dimension_numbers = #tpu.dot_dimension_numbers<[1], [0], [0], [1], [0, 0, 1, 1], [], []>} : vector<2x32xf32>, vector<32x45xf32>, vector<2x45xf32> -> vector<2x45xf32>
    %cst_152 = arith.constant dense<0.000000e+00> : vector<2x45xf32>
    %518 = tpu.matmul %463, %9, %cst_152 {dimension_numbers = #tpu.dot_dimension_numbers<[1], [0], [0], [1], [0, 0, 1, 1], [], []>} : vector<2x32xf32>, vector<32x45xf32>, vector<2x45xf32> -> vector<2x45xf32>
    %519 = arith.addf %517, %518 : vector<2x45xf32>
    %520 = vector.extract_strided_slice %519 {offsets = [0, 0], sizes = [2, 32], strides = [1, 1]} : vector<2x45xf32> to vector<2x32xf32>
    %521 = vector.extract_strided_slice %519 {offsets = [0, 32], sizes = [2, 1], strides = [1, 1]} : vector<2x45xf32> to vector<2x1xf32>
    %522 = vector.extract_strided_slice %519 {offsets = [0, 33], sizes = [2, 12], strides = [1, 1]} : vector<2x45xf32> to vector<2x12xf32>
    %523 = vector.shape_cast %520 : vector<2x32xf32> to vector<2x1x32xf32>
    "tpu.trace_start"() <{level = 10 : i32, message = "bqh,bth->bqt"}> : () -> ()
    %cst_153 = arith.constant dense<0.000000e+00> : vector<2x1x8xf32>
    %524 = tpu.matmul %523, %0, %cst_153 {dimension_numbers = #tpu.dot_dimension_numbers<[2], [2], [1], [1], [0, 0, 0, 1, 1, 1], [0], [0]>} : vector<2x1x32xf32>, vector<2x8x32xf32>, vector<2x1x8xf32> -> vector<2x1x8xf32>
    "tpu.trace_stop"() : () -> ()
    %525 = vector.shape_cast %524 : vector<2x1x8xf32> to vector<2x8xf32>
    %526 = vector.broadcast %521 : vector<2x1xf32> to vector<2x8xf32>
    %527 = arith.addf %525, %526 : vector<2x8xf32>
    %cst_154 = arith.constant -9.99999995E+11 : f32
    %528 = vector.broadcast %cst_154 : f32 to vector<2x8xf32>
    %529 = arith.select %3, %528, %527 : vector<2x8xi1>, vector<2x8xf32>
    %cst_155 = arith.constant dense<0xFF800000> : vector<2xf32>
    %530 = vector.multi_reduction <maximumf>, %529, %cst_155 [1] : vector<2x8xf32> to vector<2xf32>
    %531 = vector.shape_cast %530 : vector<2xf32> to vector<2x1xf32>
    %532 = vector.broadcast %531 : vector<2x1xf32> to vector<2x8xf32>
    %533 = arith.subf %529, %532 : vector<2x8xf32>
    %534 = math.exp %533 : vector<2x8xf32>
    %cst_156 = arith.constant dense<0.000000e+00> : vector<2xf32>
    %535 = vector.multi_reduction <add>, %534, %cst_156 [1] : vector<2x8xf32> to vector<2xf32>
    %536 = vector.shape_cast %535 : vector<2xf32> to vector<2x1xf32>
    %537 = vector.broadcast %536 : vector<2x1xf32> to vector<2x8xf32>
    %538 = arith.divf %534, %537 : vector<2x8xf32>
    %539 = vector.shape_cast %538 : vector<2x8xf32> to vector<2x1x8xf32>
    "tpu.trace_start"() <{level = 10 : i32, message = "bqt,bth->bqh"}> : () -> ()
    %cst_157 = arith.constant dense<0.000000e+00> : vector<2x1x32xf32>
    %540 = tpu.matmul %539, %0, %cst_157 {dimension_numbers = #tpu.dot_dimension_numbers<[2], [1], [1], [2], [0, 0, 0, 1, 1, 2], [0], [0]>} : vector<2x1x8xf32>, vector<2x8x32xf32>, vector<2x1x32xf32> -> vector<2x1x32xf32>
    "tpu.trace_stop"() : () -> ()
    %541 = vector.shape_cast %540 : vector<2x1x32xf32> to vector<2x32xf32>
    %542 = vector.broadcast %10 : vector<1x12xf32> to vector<2x12xf32>
    %543 = arith.addf %522, %542 : vector<2x12xf32>
    %cst_158 = arith.constant dense<0xFF800000> : vector<2xf32>
    %544 = vector.multi_reduction <maximumf>, %543, %cst_158 [1] : vector<2x12xf32> to vector<2xf32>
    %545 = vector.shape_cast %544 : vector<2xf32> to vector<2x1xf32>
    %546 = vector.broadcast %545 : vector<2x1xf32> to vector<2x12xf32>
    %547 = arith.subf %543, %546 : vector<2x12xf32>
    %548 = math.exp %547 : vector<2x12xf32>
    %cst_159 = arith.constant dense<0.000000e+00> : vector<2xf32>
    %549 = vector.multi_reduction <add>, %548, %cst_159 [1] : vector<2x12xf32> to vector<2xf32>
    %550 = vector.shape_cast %549 : vector<2xf32> to vector<2x1xf32>
    %551 = math.log %550 : vector<2x1xf32>
    %552 = vector.broadcast %551 : vector<2x1xf32> to vector<2x12xf32>
    %553 = arith.subf %547, %552 : vector<2x12xf32>
    %c6 = arith.constant 6 : index
    %c0_160 = arith.constant 0 : index
    %c0_161 = arith.constant 0 : index
    %554 = vector.load %arg14[%c6, %c0_160, %c0_161] : memref<8x2x12xf32, #tpu.memory_space<vmem>>, vector<1x2x12xf32>
    %555 = vector.shape_cast %554 : vector<1x2x12xf32> to vector<2x12xf32>
    %556 = vector.shape_cast %553 : vector<2x12xf32> to vector<1x2x12xf32>
    tpu.vector_store %arg14[%c6, %c0_160, %c0_161], %556 {strides = array<i32>} : memref<8x2x12xf32, #tpu.memory_space<vmem>>, vector<1x2x12xf32>,
    %cst_162 = arith.constant dense<0xFF800000> : vector<2xf32>
    %557 = vector.multi_reduction <maximumf>, %553, %cst_162 [1] : vector<2x12xf32> to vector<2xf32>
    %558 = vector.shape_cast %557 : vector<2xf32> to vector<2x1xf32>
    %559 = vector.broadcast %558 : vector<2x1xf32> to vector<2x12xf32>
    %560 = arith.cmpf oeq, %553, %559 : vector<2x12xf32>
    %c12_i32_163 = arith.constant 12 : i32
    %561 = vector.broadcast %c12_i32_163 : i32 to vector<2x12xi32>
    %562 = arith.select %560, %11, %561 : vector<2x12xi1>, vector<2x12xi32>
    %cst_164 = arith.constant dense<2147483647> : vector<2xi32>
    %563 = vector.multi_reduction <minsi>, %562, %cst_164 [1] : vector<2x12xi32> to vector<2xi32>
    %564 = vector.shape_cast %563 : vector<2xi32> to vector<2x1xi32>
    %565 = vector.broadcast %564 : vector<2x1xi32> to vector<2x12xi32>
    %566 = arith.cmpi eq, %11, %565 : vector<2x12xi32>
    %567 = arith.extui %566 : vector<2x12xi1> to vector<2x12xi32>
    %568 = arith.sitofp %567 : vector<2x12xi32> to vector<2x12xf32>
    %569 = vector.extract_strided_slice %0 {offsets = [0, 7, 0], sizes = [2, 1, 32], strides = [1, 1, 1]} : vector<2x8x32xf32> to vector<2x1x32xf32>
    %570 = vector.shape_cast %569 : vector<2x1x32xf32> to vector<2x32xf32>
    %cst_165 = arith.constant dense<0.000000e+00> : vector<2x96xf32>
    %571 = tpu.matmul %568, %4, %cst_165 {dimension_numbers = #tpu.dot_dimension_numbers<[1], [0], [0], [1], [0, 0, 1, 1], [], []>} : vector<2x12xf32>, vector<12x96xf32>, vector<2x96xf32> -> vector<2x96xf32>
    %cst_166 = arith.constant dense<0.000000e+00> : vector<2x96xf32>
    %572 = tpu.matmul %541, %5, %cst_166 {dimension_numbers = #tpu.dot_dimension_numbers<[1], [0], [0], [1], [0, 0, 1, 1], [], []>} : vector<2x32xf32>, vector<32x96xf32>, vector<2x96xf32> -> vector<2x96xf32>
    %573 = arith.addf %571, %572 : vector<2x96xf32>
    %cst_167 = arith.constant dense<0.000000e+00> : vector<2x96xf32>
    %574 = tpu.matmul %570, %6, %cst_167 {dimension_numbers = #tpu.dot_dimension_numbers<[1], [0], [0], [1], [0, 0, 1, 1], [], []>} : vector<2x32xf32>, vector<32x96xf32>, vector<2x96xf32> -> vector<2x96xf32>
    %575 = arith.addf %573, %574 : vector<2x96xf32>
    %576 = vector.broadcast %7 : vector<1x96xf32> to vector<2x96xf32>
    %577 = arith.addf %575, %576 : vector<2x96xf32>
    %578 = vector.extract_strided_slice %577 {offsets = [0, 0], sizes = [2, 32], strides = [1, 1]} : vector<2x96xf32> to vector<2x32xf32>
    %579 = arith.negf %578 : vector<2x32xf32>
    %580 = math.exp %579 : vector<2x32xf32>
    %cst_168 = arith.constant 1.000000e+00 : f32
    %581 = vector.broadcast %cst_168 : f32 to vector<2x32xf32>
    %582 = arith.addf %581, %580 : vector<2x32xf32>
    %583 = arith.divf %581, %582 : vector<2x32xf32>
    %584 = vector.extract_strided_slice %577 {offsets = [0, 32], sizes = [2, 32], strides = [1, 1]} : vector<2x96xf32> to vector<2x32xf32>
    %585 = math.tanh %584 : vector<2x32xf32>
    %586 = vector.extract_strided_slice %577 {offsets = [0, 64], sizes = [2, 32], strides = [1, 1]} : vector<2x96xf32> to vector<2x32xf32>
    %587 = arith.negf %586 : vector<2x32xf32>
    %588 = math.exp %587 : vector<2x32xf32>
    %cst_169 = arith.constant 1.000000e+00 : f32
    %589 = vector.broadcast %cst_169 : f32 to vector<2x32xf32>
    %590 = arith.addf %589, %588 : vector<2x32xf32>
    %591 = arith.divf %589, %590 : vector<2x32xf32>
    %592 = arith.mulf %583, %585 : vector<2x32xf32>
    %593 = math.tanh %592 : vector<2x32xf32>
    %594 = arith.mulf %591, %593 : vector<2x32xf32>
    %cst_170 = arith.constant dense<0.000000e+00> : vector<2x45xf32>
    %595 = tpu.matmul %594, %8, %cst_170 {dimension_numbers = #tpu.dot_dimension_numbers<[1], [0], [0], [1], [0, 0, 1, 1], [], []>} : vector<2x32xf32>, vector<32x45xf32>, vector<2x45xf32> -> vector<2x45xf32>
    %cst_171 = arith.constant dense<0.000000e+00> : vector<2x45xf32>
    %596 = tpu.matmul %541, %9, %cst_171 {dimension_numbers = #tpu.dot_dimension_numbers<[1], [0], [0], [1], [0, 0, 1, 1], [], []>} : vector<2x32xf32>, vector<32x45xf32>, vector<2x45xf32> -> vector<2x45xf32>
    %597 = arith.addf %595, %596 : vector<2x45xf32>
    %598 = vector.extract_strided_slice %597 {offsets = [0, 33], sizes = [2, 12], strides = [1, 1]} : vector<2x45xf32> to vector<2x12xf32>
    %599 = vector.broadcast %10 : vector<1x12xf32> to vector<2x12xf32>
    %600 = arith.addf %598, %599 : vector<2x12xf32>
    %cst_172 = arith.constant dense<0xFF800000> : vector<2xf32>
    %601 = vector.multi_reduction <maximumf>, %600, %cst_172 [1] : vector<2x12xf32> to vector<2xf32>
    %602 = vector.shape_cast %601 : vector<2xf32> to vector<2x1xf32>
    %603 = vector.broadcast %602 : vector<2x1xf32> to vector<2x12xf32>
    %604 = arith.subf %600, %603 : vector<2x12xf32>
    %605 = math.exp %604 : vector<2x12xf32>
    %cst_173 = arith.constant dense<0.000000e+00> : vector<2xf32>
    %606 = vector.multi_reduction <add>, %605, %cst_173 [1] : vector<2x12xf32> to vector<2xf32>
    %607 = vector.shape_cast %606 : vector<2xf32> to vector<2x1xf32>
    %608 = math.log %607 : vector<2x1xf32>
    %609 = vector.broadcast %608 : vector<2x1xf32> to vector<2x12xf32>
    %610 = arith.subf %604, %609 : vector<2x12xf32>
    %c7 = arith.constant 7 : index
    %c0_174 = arith.constant 0 : index
    %c0_175 = arith.constant 0 : index
    %611 = vector.load %arg14[%c7, %c0_174, %c0_175] : memref<8x2x12xf32, #tpu.memory_space<vmem>>, vector<1x2x12xf32>
    %612 = vector.shape_cast %611 : vector<1x2x12xf32> to vector<2x12xf32>
    %613 = vector.shape_cast %610 : vector<2x12xf32> to vector<1x2x12xf32>
    tpu.vector_store %arg14[%c7, %c0_174, %c0_175], %613 {strides = array<i32>} : memref<8x2x12xf32, #tpu.memory_space<vmem>>, vector<1x2x12xf32>,
    return
  }
}

</mosaic_0001>

<llo_original>
// kernel: tpu_custom_call.1
$region0: #{tpu_custom_call.1}
  #allocation0 [shape = 'u32[]', space=smem, size = 0x4, offset = 0x4, fixed_abs, tag = 'smem constant byte address 0x4 - core index']
  #allocation1 [shape = 'u32[72,128]{1,0:T(1,128)}', space=vmem, size = 0x9000, scoped, tag = 'internal scratch']
  %s0 = inlined_call_operand.vmem [shape: f32[2,12], index: 0, kind: input, shape index: {}]
  %s1 = inlined_call_operand.vmem [shape: f32[2,32], index: 1, kind: input, shape index: {}]
  %s2 = inlined_call_operand.hbm [shape: f32[2,8,32], index: 2, kind: input, shape index: {}]
  %s3 = inlined_call_operand.vmem [shape: f32[2,8], index: 3, kind: input, shape index: {}]
  %s4 = inlined_call_operand.hbm [shape: f32[12,96], index: 4, kind: input, shape index: {}]
  %s5 = inlined_call_operand.vmem [shape: f32[32,96], index: 5, kind: input, shape index: {}]
  %s6 = inlined_call_operand.vmem [shape: f32[32,96], index: 6, kind: input, shape index: {}]
  %s7 = inlined_call_operand.vmem [shape: f32[1,96], index: 7, kind: input, shape index: {}]
  %s8 = inlined_call_operand.hbm [shape: f32[32,45], index: 8, kind: input, shape index: {}]
  %s9 = inlined_call_operand.hbm [shape: f32[32,45], index: 9, kind: input, shape index: {}]
  %s10 = inlined_call_operand.vmem [shape: f32[1,12], index: 10, kind: input, shape index: {}]
  %s11 = inlined_call_operand.vmem [shape: f32[32,5], index: 11, kind: input, shape index: {}]
  %s12 = inlined_call_operand.vmem [shape: f32[32,5], index: 12, kind: input, shape index: {}]
  %s13 = inlined_call_operand.vmem [shape: f32[1,5], index: 13, kind: input, shape index: {}]
  %s14 = inlined_call_operand.hbm [shape: f32[8,2,12], index: 14, kind: output, shape index: {0}]
  %s15 = inlined_call_operand.hbm [shape: f32[2,5], index: 15, kind: output, shape index: {1}]
  %16 = xla_tuple %s14, %s15
  %s17 = sld [smem:[#allocation0]]
  $region90: #{tpu_custom_call.1} parent=0
    _
  %s19 = ssub.s32 1, %s17
  %s20 = scalar_select 0, %s19, %s17
  $region1: #{tpu_custom_call.1} parent=0
    #allocation2 [shape = 'u8[8192]{0}', space=vmem, size = 0x2000, scoped, tag = 'input window, operand 2, single buffered']
    #allocation3 [shape = 's32[1]{0}', space=sflag, size = 0x4, scoped, tag = 'scoped memory for tpu_custom_call.1']
    #allocation4 [shape = 's32[1]{0}', space=sflag, size = 0x4, scoped, tag = 'scoped memory for tpu_custom_call.1']
    #allocation5 [shape = 'u8[8192]{0}', space=vmem, size = 0x2000, scoped, tag = 'input window, operand 4, single buffered']
    #allocation6 [shape = 's32[1]{0}', space=sflag, size = 0x4, scoped, tag = 'scoped memory for tpu_custom_call.1']
    #allocation7 [shape = 'u8[16384]{0}', space=vmem, size = 0x4000, scoped, tag = 'input window, operand 8, single buffered']
    #allocation8 [shape = 'u8[16384]{0}', space=vmem, size = 0x4000, scoped, tag = 'input window, operand 9, single buffered']
    #allocation9 [shape = 's32[1]{0}', space=sflag, size = 0x4, scoped, tag = 'scoped memory for tpu_custom_call.1']
    #allocation10 [shape = 'u8[8192]{0}', space=vmem, size = 0x2000, scoped, tag = 'output window, operand 0, single buffered']
    #allocation11 [shape = 'u8[1024]{0}', space=vmem, size = 0x400, scoped, tag = 'output window, operand 1, single buffered']
    #allocation12 [shape = 's32[1]{0}', space=sflag, size = 0x4, scoped, tag = 'scoped memory for tpu_custom_call.1']
    %21 = vsyncpa [#allocation3], 0
    %22 = vsyncpa [#allocation6], 0
    %23 = vsyncpa [#allocation9], 0
    %24 = vsyncpa [#allocation4], 0
    %25 = vsyncpa [#allocation12], 0
    // Predicated region
    $region2: #{tpu_custom_call.1} parent=1 // pred_check
      _
    $region3: #{tpu_custom_call.1} parent=1 // pred_check_branch
      %27 = sbr.rel (0) target = $region5
    $region4: #{tpu_custom_call.1} parent=1 // pred_region
      _
    $region5: #{tpu_custom_call.1} parent=1 // pred_fallthru
      _
    // Predicated region
    $region6: #{tpu_custom_call.1} parent=1 // pred_check
      _
    $region7: #{tpu_custom_call.1} parent=1 // pred_check_branch
      %29 = sbr.rel (0) target = $region9
    $region8: #{tpu_custom_call.1} parent=1 // pred_region
      _
    $region9: #{tpu_custom_call.1} parent=1 // pred_fallthru
      _
    // Predicated region
    $region10: #{tpu_custom_call.1} parent=1 // pred_check
      _
    $region11: #{tpu_custom_call.1} parent=1 // pred_check_branch
      %31 = sbr.rel (0) target = $region13
    $region12: #{tpu_custom_call.1} parent=1 // pred_region
      %33 = vsyncadd [#allocation3], 0
      %s34 = sshll.u32 %s2, 4
      %s35 = int_to_ptr.hbm [resolvable:$true] %s34
      %s36 = sshll.u32 [#allocation2], 4
      %s37 = int_to_ptr.vmem [resolvable:$true] %s36
      %42 = dma.hbm_to_vmem [thread:$0]  %s35, 256, %s37, [#allocation3], 128, 128, 8
    $region13: #{tpu_custom_call.1} parent=1 // pred_fallthru
      _
    // Predicated region
    $region14: #{tpu_custom_call.1} parent=1 // pred_check
      _
    $region15: #{tpu_custom_call.1} parent=1 // pred_check_branch
      %44 = sbr.rel (0) target = $region17
    $region16: #{tpu_custom_call.1} parent=1 // pred_region
      _
    $region17: #{tpu_custom_call.1} parent=1 // pred_fallthru
      _
    // Predicated region
    $region18: #{tpu_custom_call.1} parent=1 // pred_check
      _
    $region19: #{tpu_custom_call.1} parent=1 // pred_check_branch
      %46 = sbr.rel (0) target = $region21
    $region20: #{tpu_custom_call.1} parent=1 // pred_region
      %48 = vsyncadd [#allocation6], 0
      %s49 = sshll.u32 %s4, 4
      %s50 = int_to_ptr.hbm [resolvable:$true] %s49
      %s51 = sshll.u32 [#allocation5], 4
      %s52 = int_to_ptr.vmem [resolvable:$true] %s51
      %57 = dma.hbm_to_vmem [thread:$0]  %s50, 256, %s52, [#allocation6], 128, 128, 8
    $region21: #{tpu_custom_call.1} parent=1 // pred_fallthru
      _
    // Predicated region
    $region22: #{tpu_custom_call.1} parent=1 // pred_check
      _
    $region23: #{tpu_custom_call.1} parent=1 // pred_check_branch
      %59 = sbr.rel (0) target = $region25
    $region24: #{tpu_custom_call.1} parent=1 // pred_region
      _
    $region25: #{tpu_custom_call.1} parent=1 // pred_fallthru
      _
    // Predicated region
    $region26: #{tpu_custom_call.1} parent=1 // pred_check
      _
    $region27: #{tpu_custom_call.1} parent=1 // pred_check_branch
      %61 = sbr.rel (0) target = $region29
    $region28: #{tpu_custom_call.1} parent=1 // pred_region
      _
    $region29: #{tpu_custom_call.1} parent=1 // pred_fallthru
      _
    // Predicated region
    $region30: #{tpu_custom_call.1} parent=1 // pred_check
      _
    $region31: #{tpu_custom_call.1} parent=1 // pred_check_branch
      %63 = sbr.rel (0) target = $region33
    $region32: #{tpu_custom_call.1} parent=1 // pred_region
      _
    $region33: #{tpu_custom_call.1} parent=1 // pred_fallthru
      _
    // Predicated region
    $region34: #{tpu_custom_call.1} parent=1 // pred_check
      _
    $region35: #{tpu_custom_call.1} parent=1 // pred_check_branch
      %65 = sbr.rel (0) target = $region37
    $region36: #{tpu_custom_call.1} parent=1 // pred_region
      %67 = vsyncadd [#allocation6], 0
      %s68 = sshll.u32 %s8, 4
      %s69 = int_to_ptr.hbm [resolvable:$true] %s68
      %s70 = sshll.u32 [#allocation7], 4
      %s71 = int_to_ptr.vmem [resolvable:$true] %s70
      %76 = dma.hbm_to_vmem [thread:$0]  %s69, 512, %s71, [#allocation6], 128, 128, 8
    $region37: #{tpu_custom_call.1} parent=1 // pred_fallthru
      _
    // Predicated region
    $region38: #{tpu_custom_call.1} parent=1 // pred_check
      _
    $region39: #{tpu_custom_call.1} parent=1 // pred_check_branch
      %78 = sbr.rel (0) target = $region41
    $region40: #{tpu_custom_call.1} parent=1 // pred_region
      %80 = vsyncadd [#allocation9], 0
      %s81 = sshll.u32 %s9, 4
      %s82 = int_to_ptr.hbm [resolvable:$true] %s81
      %s83 = sshll.u32 [#allocation8], 4
      %s84 = int_to_ptr.vmem [resolvable:$true] %s83
      %89 = dma.hbm_to_vmem [thread:$0]  %s82, 512, %s84, [#allocation9], 128, 128, 8
    $region41: #{tpu_custom_call.1} parent=1 // pred_fallthru
      _
    // Predicated region
    $region42: #{tpu_custom_call.1} parent=1 // pred_check
      _
    $region43: #{tpu_custom_call.1} parent=1 // pred_check_branch
      %91 = sbr.rel (0) target = $region45
    $region44: #{tpu_custom_call.1} parent=1 // pred_region
      _
    $region45: #{tpu_custom_call.1} parent=1 // pred_fallthru
      _
    // Predicated region
    $region46: #{tpu_custom_call.1} parent=1 // pred_check
      _
    $region47: #{tpu_custom_call.1} parent=1 // pred_check_branch
      %93 = sbr.rel (0) target = $region49
    $region48: #{tpu_custom_call.1} parent=1 // pred_region
      _
    $region49: #{tpu_custom_call.1} parent=1 // pred_fallthru
      _
    // Predicated region
    $region50: #{tpu_custom_call.1} parent=1 // pred_check
      _
    $region51: #{tpu_custom_call.1} parent=1 // pred_check_branch
      %95 = sbr.rel (0) target = $region53
    $region52: #{tpu_custom_call.1} parent=1 // pred_region
      _
    $region53: #{tpu_custom_call.1} parent=1 // pred_fallthru
      _
    // Predicated region
    $region54: #{tpu_custom_call.1} parent=1 // pred_check
      _
    $region55: #{tpu_custom_call.1} parent=1 // pred_check_branch
      %97 = sbr.rel (0) target = $region57
    $region56: #{tpu_custom_call.1} parent=1 // pred_region
      _
    $region57: #{tpu_custom_call.1} parent=1 // pred_fallthru
      _
    // Predicated region
    $region58: #{tpu_custom_call.1} parent=1 // pred_check
      _
    $region59: #{tpu_custom_call.1} parent=1 // pred_check_branch
      %99 = sbr.rel (0) target = $region61
    $region60: #{tpu_custom_call.1} parent=1 // pred_region
      %101 = dma.done [#allocation3], 256
    $region61: #{tpu_custom_call.1} parent=1 // pred_fallthru
      _
    // Predicated region
    $region62: #{tpu_custom_call.1} parent=1 // pred_check
      _
    $region63: #{tpu_custom_call.1} parent=1 // pred_check_branch
      %103 = sbr.rel (0) target = $region65
    $region64: #{tpu_custom_call.1} parent=1 // pred_region
      %105 = dma.done [#allocation6], 256
    $region65: #{tpu_custom_call.1} parent=1 // pred_fallthru
      _
    // Predicated region
    $region66: #{tpu_custom_call.1} parent=1 // pred_check
      _
    $region67: #{tpu_custom_call.1} parent=1 // pred_check_branch
      %107 = sbr.rel (0) target = $region69
    $region68: #{tpu_custom_call.1} parent=1 // pred_region
      %109 = dma.done [#allocation6], 512
    $region69: #{tpu_custom_call.1} parent=1 // pred_fallthru
      _
    // Predicated region
    $region70: #{tpu_custom_call.1} parent=1 // pred_check
      _
    $region71: #{tpu_custom_call.1} parent=1 // pred_check_branch
      %111 = sbr.rel (0) target = $region73
    $region72: #{tpu_custom_call.1} parent=1 // pred_region
      %113 = dma.done [#allocation9], 512
    $region73: #{tpu_custom_call.1} parent=1 // pred_fallthru
      _
    %v114 = vld [vmem:[#allocation2] sm:$0xff]
    %v115 = vld [vmem:[#allocation2 + $0x8] sm:$0xff]
    %v116 = vld [vmem:[%s3] sm:$0x3]
    %vm117 = vcmp.gt.f32.partialorder %v116, 0.0
    %v118 = vld [vmem:[#allocation5] sm:$0xff]
    %v119 = vld [vmem:[#allocation5 + $0x8] sm:$0xf]
    %v120 = vld [vmem:[%s5] sm:$0xff]
    %v121 = vld [vmem:[%s5 + $0x8] sm:$0xff]
    %v122 = vld [vmem:[%s5 + $0x10] sm:$0xff]
    %v123 = vld [vmem:[%s5 + $0x18] sm:$0xff]
    %v124 = vld [vmem:[%s6] sm:$0xff]
    %v125 = vld [vmem:[%s6 + $0x8] sm:$0xff]
    %v126 = vld [vmem:[%s6 + $0x10] sm:$0xff]
    %v127 = vld [vmem:[%s6 + $0x18] sm:$0xff]
    %v128 = vld [vmem:[%s7] sm:$0x1]
    %v129 = vld [vmem:[#allocation7] sm:$0xff]
    %v130 = vld [vmem:[#allocation7 + $0x8] sm:$0xff]
    %v131 = vld [vmem:[#allocation7 + $0x10] sm:$0xff]
    %v132 = vld [vmem:[#allocation7 + $0x18] sm:$0xff]
    %v133 = vld [vmem:[#allocation8] sm:$0xff]
    %v134 = vld [vmem:[#allocation8 + $0x8] sm:$0xff]
    %v135 = vld [vmem:[#allocation8 + $0x10] sm:$0xff]
    %v136 = vld [vmem:[#allocation8 + $0x18] sm:$0xff]
    %v137 = vld [vmem:[%s10] sm:$0x1]
    %v138 = vlaneseq
    %v139 = vand.u32 %v138, 127
    %v140 = vld [vmem:[%s0] sm:$0x3]
    %v141 = vld [vmem:[%s1] sm:$0x3]
    %vm142 = vcmask 261120
    %v144 = vsel %vm142, %v141, 0
    %146 = vmatpush.msra.mxu0 0.0
    %147 = vmatpush.msra.mxu0 0.0
    %148 = vmatpush.msra.mxu0 0.0
    %149 = vmatpush.msra.mxu0 0.0
    %150 = vmatpush.msra.mxu0 0.0
    %151 = vmatpush.msra.mxu0 0.0
    %152 = vmatpush.msra.mxu0 0.0
    %153 = vmatpush.msra.mxu0 0.0
    %154 = vmatpush.msra.mxu0 0.0
    %155 = vmatpush.msra.mxu0 0.0
    %156 = vmatpush.msra.mxu0 0.0
    %157 = vmatpush.msra.mxu0 0.0
    %158 = vmatpush.msra.mxu0 %v123
    %159 = vmatpush.msra.mxu0 %v122
    %160 = vmatpush.msra.mxu0 %v121
    %161 = vmatpush.msra.mxu0 %v120
    %162 = vmatmul.f32.gmra.mxu0 %v144
    %v163 = vpop.f32.mrf.mxu0
    %v164 = vadd.f32 0.0, %v163
    %165 = vdwg.mxu0
    %vm166 = vcmask 97280
    %v168 = vsel %vm166, %v140, 0
    %vm170 = vcmask 1043456
    %v172 = vsel %vm170, %v119, 0
    %174 = vmatpush.msra.mxu0 0.0
    %175 = vmatpush.msra.mxu0 0.0
    %176 = vmatpush.msra.mxu0 0.0
    %177 = vmatpush.msra.mxu0 0.0
    %178 = vmatpush.msra.mxu0 0.0
    %179 = vmatpush.msra.mxu0 0.0
    %180 = vmatpush.msra.mxu0 0.0
    %181 = vmatpush.msra.mxu0 0.0
    %182 = vmatpush.msra.mxu0 0.0
    %183 = vmatpush.msra.mxu0 0.0
    %184 = vmatpush.msra.mxu0 0.0
    %185 = vmatpush.msra.mxu0 0.0
    %186 = vmatpush.msra.mxu0 0.0
    %187 = vmatpush.msra.mxu0 0.0
    %188 = vmatpush.msra.mxu0 %v172
    %189 = vmatpush.msra.mxu0 %v118
    %190 = vmatmul.f32.gmra.mxu0 %v168
    %v191 = vpop.f32.mrf.mxu0
    %v192 = vadd.f32 %v164, %v191
    %193 = vdwg.mxu0
    %v196 = vrot.slane %v115, 7
    %vm197 = vcmask 1041409
    %v198 = vsel %vm197, %v196, %v114
    %v199 = vsel %vm142, %v198, 0
    %201 = vmatpush.msra.mxu0 0.0
    %202 = vmatpush.msra.mxu0 0.0
    %203 = vmatpush.msra.mxu0 0.0
    %204 = vmatpush.msra.mxu0 0.0
    %205 = vmatpush.msra.mxu0 0.0
    %206 = vmatpush.msra.mxu0 0.0
    %207 = vmatpush.msra.mxu0 0.0
    %208 = vmatpush.msra.mxu0 0.0
    %209 = vmatpush.msra.mxu0 0.0
    %210 = vmatpush.msra.mxu0 0.0
    %211 = vmatpush.msra.mxu0 0.0
    %212 = vmatpush.msra.mxu0 0.0
    %213 = vmatpush.msra.mxu0 %v127
    %214 = vmatpush.msra.mxu0 %v126
    %215 = vmatpush.msra.mxu0 %v125
    %216 = vmatpush.msra.mxu0 %v124
    %217 = vmatmul.f32.gmra.mxu0 %v199
    %v218 = vpop.f32.mrf.mxu0
    %v219 = vadd.f32 0.0, %v218
    %220 = vdwg.mxu0
    %v221 = vadd.f32 %v192, %v219
    %v223 = vperm.slane %v128, 0
    %v225 = vadd.f32 %v221, %v223
    %v226 = vxor.u32 %v225, 2147483648
    %v227 = vmul.f32 %v226, 1.442695
    %v228 = vpow.pop %v227
    %v229 = vadd.f32 %v228, 1.0
    %v230 = vrcp.pop %v229
    %v231 = vmul.f32 %v229, %v230
    %v232 = vsub.f32 1.0, %v231
    %v233 = vmul.f32 %v230, %v232
    %v234 = vadd.f32 %v230, %v233
    %vm235 = vweird.f32 %v229
    %vm236 = vweird.f32 %v230
    %vm237 = vmor %vm235, %vm236
    %v238 = vsel %vm237, %v230, %v234
    %v239 = vand.u32 2147483647, %v229
    %vm240 = vcmp.eq.f32.partialorder %v239, 8.507059e+37
    %v241 = vand.u32 %v229, 2147483648
    %v242 = vor.u32 1.1754944e-38, %v241
    %v243 = vsel %vm240, %v242, %v238
    %v244 = vmul.f32 1.0, %v243
    %v245 = vtanh.pop %v225
    %247 = vrot.lane.b32.xlu0 %v245, 96
    %v248 = vpop.permute.xlu0 %247
    %v250 = vmul.f32 %v244, %v248
    %v251 = vtanh.pop %v250
    %253 = vrot.lane.b32.xlu0 %v251, 64
    %v254 = vpop.permute.xlu0 %253
    %v256 = vmul.f32 %v244, %v254
    %257 = vmatpush.msra.mxu0 0.0
    %258 = vmatpush.msra.mxu0 0.0
    %259 = vmatpush.msra.mxu0 0.0
    %260 = vmatpush.msra.mxu0 0.0
    %261 = vmatpush.msra.mxu0 0.0
    %262 = vmatpush.msra.mxu0 0.0
    %263 = vmatpush.msra.mxu0 0.0
    %264 = vmatpush.msra.mxu0 0.0
    %265 = vmatpush.msra.mxu0 0.0
    %266 = vmatpush.msra.mxu0 0.0
    %267 = vmatpush.msra.mxu0 0.0
    %268 = vmatpush.msra.mxu0 0.0
    %269 = vmatpush.msra.mxu0 %v136
    %270 = vmatpush.msra.mxu0 %v135
    %271 = vmatpush.msra.mxu0 %v134
    %272 = vmatpush.msra.mxu0 %v133
    %273 = vmatmul.f32.gmra.mxu0 %v144
    %v274 = vpop.f32.mrf.mxu0
    %v275 = vadd.f32 0.0, %v274
    %276 = vdwg.mxu0
    %278 = vrot.lane.b32.xlu0 %v256, 64
    %v279 = vpop.permute.xlu0 %278
    %v280 = vsel %vm142, %v279, 0
    %282 = vmatpush.msra.mxu0 0.0
    %283 = vmatpush.msra.mxu0 0.0
    %284 = vmatpush.msra.mxu0 0.0
    %285 = vmatpush.msra.mxu0 0.0
    %286 = vmatpush.msra.mxu0 0.0
    %287 = vmatpush.msra.mxu0 0.0
    %288 = vmatpush.msra.mxu0 0.0
    %289 = vmatpush.msra.mxu0 0.0
    %290 = vmatpush.msra.mxu0 0.0
    %291 = vmatpush.msra.mxu0 0.0
    %292 = vmatpush.msra.mxu0 0.0
    %293 = vmatpush.msra.mxu0 0.0
    %294 = vmatpush.msra.mxu0 %v132
    %295 = vmatpush.msra.mxu0 %v131
    %296 = vmatpush.msra.mxu0 %v130
    %297 = vmatpush.msra.mxu0 %v129
    %298 = vmatmul.f32.gmra.mxu0 %v280
    %v299 = vpop.f32.mrf.mxu0
    %v300 = vadd.f32 %v275, %v299
    %301 = vdwg.mxu0
    %v303 = vrot.slane %v300, 1
    %v304 = vsel %vm142, %v300, 0
    %v306 = vsel %vm142, %v114, 0
    %308 = vmatpush.xpose.msra.mxu0 0.0
    %309 = vmatpush.xpose.msra.mxu0 0.0
    %310 = vmatpush.xpose.msra.mxu0 0.0
    %311 = vmatpush.xpose.msra.mxu0 0.0
    %312 = vmatpush.xpose.msra.mxu0 0.0
    %313 = vmatpush.xpose.msra.mxu0 0.0
    %314 = vmatpush.xpose.msra.mxu0 0.0
    %315 = vmatpush.xpose.msra.mxu0 0.0
    %316 = vmatpush.xpose.msra.mxu0 0.0
    %317 = vmatpush.xpose.msra.mxu0 0.0
    %318 = vmatpush.xpose.msra.mxu0 0.0
    %319 = vmatpush.xpose.msra.mxu0 0.0
    %320 = vmatpush.xpose.msra.mxu0 0.0
    %321 = vmatpush.xpose.msra.mxu0 0.0
    %322 = vmatpush.xpose.msra.mxu0 0.0
    %323 = vmatpush.xpose.msra.mxu0 %v306
    %324 = vmatmul.f32.gmra.mxu0 %v304
    %v325 = vpop.f32.mrf.mxu0
    %v326 = vadd.f32 0.0, %v325
    %327 = vdwg.mxu0
    %v328 = vsel %vm142, %v303, 0
    %v330 = vsel %vm142, %v115, 0
    %332 = vmatpush.xpose.msra.mxu0 0.0
    %333 = vmatpush.xpose.msra.mxu0 0.0
    %334 = vmatpush.xpose.msra.mxu0 0.0
    %335 = vmatpush.xpose.msra.mxu0 0.0
    %336 = vmatpush.xpose.msra.mxu0 0.0
    %337 = vmatpush.xpose.msra.mxu0 0.0
    %338 = vmatpush.xpose.msra.mxu0 0.0
    %339 = vmatpush.xpose.msra.mxu0 0.0
    %340 = vmatpush.xpose.msra.mxu0 0.0
    %341 = vmatpush.xpose.msra.mxu0 0.0
    %342 = vmatpush.xpose.msra.mxu0 0.0
    %343 = vmatpush.xpose.msra.mxu0 0.0
    %344 = vmatpush.xpose.msra.mxu0 0.0
    %345 = vmatpush.xpose.msra.mxu0 0.0
    %346 = vmatpush.xpose.msra.mxu0 0.0
    %347 = vmatpush.xpose.msra.mxu0 %v330
    %348 = vmatmul.f32.gmra.mxu0 %v328
    %v349 = vpop.f32.mrf.mxu0
    %v350 = vadd.f32 0.0, %v349
    %351 = vdwg.mxu0
    %352 = vset.pattern.permute.xlu0 32
    %353 = vperm.xlu0 %352, %v300
    %v354 = vpop.permute.xlu0 %353
    %v355 = vrot.slane %v354, 1
    %v358 = vadd.f32 %v326, %v354
    %v359 = vadd.f32 %v350, %v355
    %v362 = vrot.slane %v359, 7
    %v363 = vsel %vm197, %v362, %v358
    %v365 = vsel %vm117, -1e+12, %v363
    %vm366 = vcmask 58368
    %v367 = vsel %vm366, %v365, -inf
    %368 = vmax.xlane.f32.xlu0 %v367
    %v369 = vpop.xlane.xlu0 %368
    %v370 = vsub.f32 %v365, %v369
    %v371 = vmul.f32 %v370, 1.442695
    %v372 = vpow.pop %v371
    %v373 = vsel %vm366, %v372, 0.0
    %374 = vadd.xlane.f32.xlu0 %v373
    %v375 = vpop.xlane.xlu0 %374
    %v376 = vrcp.pop %v375
    %v377 = vmul.f32 %v375, %v376
    %v378 = vsub.f32 1.0, %v377
    %v379 = vmul.f32 %v376, %v378
    %v380 = vadd.f32 %v376, %v379
    %vm381 = vweird.f32 %v375
    %vm382 = vweird.f32 %v376
    %vm383 = vmor %vm381, %vm382
    %v384 = vsel %vm383, %v376, %v380
    %v385 = vand.u32 2147483647, %v375
    %vm386 = vcmp.eq.f32.partialorder %v385, 8.507059e+37
    %v387 = vand.u32 %v375, 2147483648
    %v388 = vor.u32 1.1754944e-38, %v387
    %v389 = vsel %vm386, %v388, %v384
    %v390 = vmul.f32 %v372, %v389
    %v392 = vrot.slane %v390, 1
    %vm393 = vcmask 64512
    %v394 = vsel %vm393, %v390, 0
    %396 = vmatpush.msra.mxu0 0.0
    %397 = vmatpush.msra.mxu0 0.0
    %398 = vmatpush.msra.mxu0 0.0
    %399 = vmatpush.msra.mxu0 0.0
    %400 = vmatpush.msra.mxu0 0.0
    %401 = vmatpush.msra.mxu0 0.0
    %402 = vmatpush.msra.mxu0 0.0
    %403 = vmatpush.msra.mxu0 0.0
    %404 = vmatpush.msra.mxu0 0.0
    %405 = vmatpush.msra.mxu0 0.0
    %406 = vmatpush.msra.mxu0 0.0
    %407 = vmatpush.msra.mxu0 0.0
    %408 = vmatpush.msra.mxu0 0.0
    %409 = vmatpush.msra.mxu0 0.0
    %410 = vmatpush.msra.mxu0 0.0
    %411 = vmatpush.msra.mxu0 %v114
    %412 = vmatmul.f32.gmra.mxu0 %v394
    %v413 = vpop.f32.mrf.mxu0
    %v414 = vadd.f32 0.0, %v413
    %415 = vdwg.mxu0
    %v416 = vsel %vm393, %v392, 0
    %418 = vmatpush.msra.mxu0 0.0
    %419 = vmatpush.msra.mxu0 0.0
    %420 = vmatpush.msra.mxu0 0.0
    %421 = vmatpush.msra.mxu0 0.0
    %422 = vmatpush.msra.mxu0 0.0
    %423 = vmatpush.msra.mxu0 0.0
    %424 = vmatpush.msra.mxu0 0.0
    %425 = vmatpush.msra.mxu0 0.0
    %426 = vmatpush.msra.mxu0 0.0
    %427 = vmatpush.msra.mxu0 0.0
    %428 = vmatpush.msra.mxu0 0.0
    %429 = vmatpush.msra.mxu0 0.0
    %430 = vmatpush.msra.mxu0 0.0
    %431 = vmatpush.msra.mxu0 0.0
    %432 = vmatpush.msra.mxu0 0.0
    %433 = vmatpush.msra.mxu0 %v115
    %434 = vmatmul.f32.gmra.mxu0 %v416
    %v435 = vpop.f32.mrf.mxu0
    %v436 = vadd.f32 0.0, %v435
    %437 = vdwg.mxu0
    %v438 = vld [vmem:[%s11] sm:$0xff]
    %v439 = vld [vmem:[%s11 + $0x8] sm:$0xff]
    %v440 = vld [vmem:[%s11 + $0x10] sm:$0xff]
    %v441 = vld [vmem:[%s11 + $0x18] sm:$0xff]
    %v442 = vld [vmem:[%s12] sm:$0xff]
    %v443 = vld [vmem:[%s12 + $0x8] sm:$0xff]
    %v444 = vld [vmem:[%s12 + $0x10] sm:$0xff]
    %v445 = vld [vmem:[%s12 + $0x18] sm:$0xff]
    %v448 = vrot.slane %v436, 7
    %v449 = vsel %vm197, %v448, %v414
    %v450 = vsel %vm142, %v449, 0
    %452 = vmatpush.msra.mxu0 0.0
    %453 = vmatpush.msra.mxu0 0.0
    %454 = vmatpush.msra.mxu0 0.0
    %455 = vmatpush.msra.mxu0 0.0
    %456 = vmatpush.msra.mxu0 0.0
    %457 = vmatpush.msra.mxu0 0.0
    %458 = vmatpush.msra.mxu0 0.0
    %459 = vmatpush.msra.mxu0 0.0
    %460 = vmatpush.msra.mxu0 0.0
    %461 = vmatpush.msra.mxu0 0.0
    %462 = vmatpush.msra.mxu0 0.0
    %463 = vmatpush.msra.mxu0 0.0
    %464 = vmatpush.msra.mxu0 %v445
    %465 = vmatpush.msra.mxu0 %v444
    %466 = vmatpush.msra.mxu0 %v443
    %467 = vmatpush.msra.mxu0 %v442
    %468 = vmatmul.f32.gmra.mxu0 %v450
    %v469 = vpop.f32.mrf.mxu0
    %v470 = vadd.f32 0.0, %v469
    %471 = vdwg.mxu0
    %472 = vmatpush.msra.mxu0 0.0
    %473 = vmatpush.msra.mxu0 0.0
    %474 = vmatpush.msra.mxu0 0.0
    %475 = vmatpush.msra.mxu0 0.0
    %476 = vmatpush.msra.mxu0 0.0
    %477 = vmatpush.msra.mxu0 0.0
    %478 = vmatpush.msra.mxu0 0.0
    %479 = vmatpush.msra.mxu0 0.0
    %480 = vmatpush.msra.mxu0 0.0
    %481 = vmatpush.msra.mxu0 0.0
    %482 = vmatpush.msra.mxu0 0.0
    %483 = vmatpush.msra.mxu0 0.0
    %484 = vmatpush.msra.mxu0 %v441
    %485 = vmatpush.msra.mxu0 %v440
    %486 = vmatpush.msra.mxu0 %v439
    %487 = vmatpush.msra.mxu0 %v438
    %488 = vmatmul.f32.gmra.mxu0 %v280
    %v489 = vpop.f32.mrf.mxu0
    %v490 = vadd.f32 %v470, %v489
    %491 = vdwg.mxu0
    %v492 = vld [vmem:[%s13] sm:$0x1]
    %v494 = vperm.slane %v492, 0
    %v496 = vadd.f32 %v490, %v494
    %vm497 = vcmask 33792
    %498 = vst.msk [vmem:[#allocation11] sm:$0x3] %vm497, %v496
    %v500 = vperm.slane %v137, 0
    %501 = vrot.lane.b32.xlu0 %v500, 33
    %v502 = vpop.permute.xlu0 %501
    %v504 = vadd.f32 %v300, %v502
    %vm505 = vcmask 361736
    %v506 = vsel %vm505, %v504, -inf
    %507 = vmax.xlane.f32.xlu0 %v506
    %v508 = vpop.xlane.xlu0 %507
    %v509 = vsub.f32 %v504, %v508
    %v510 = vmul.f32 %v509, 1.442695
    %v511 = vpow.pop %v510
    %513 = vrot.lane.b32.xlu0 %v511, 95
    %v514 = vpop.permute.xlu0 %513
    %vm516 = vcmask 91136
    %v517 = vsel %vm516, %v514, 0.0
    %518 = vadd.xlane.f32.xlu0 %v517
    %v519 = vpop.xlane.xlu0 %518
    %v520 = vlog2.pop %v519
    %v521 = vmul.f32 %v520, 0.6931472
    %v522 = vsub.f32 %v509, %v521
    %524 = vrot.lane.b32.xlu0 %v522, 95
    %v525 = vpop.permute.xlu0 %524
    %527 = vst.msk [vmem:[#allocation10] sm:$0x3] %vm516, %v525
    %v528 = vsel %vm505, %v522, -inf
    %529 = vmax.xlane.f32.xlu0 %v528
    %v530 = vpop.xlane.xlu0 %529
    %vm531 = vcmp.eq.f32.partialorder %v522, %v530
    %532 = vrot.lane.b32.xlu0 %v139, 33
    %v533 = vpop.permute.xlu0 %532
    %v534 = vsel %vm531, %v533, 12
    %v535 = vsel %vm505, %v534, 2147483647
    %v536 = vand.u32 %v535, 65535
    %v537 = vshra.s32 %v535, 16
    %v538 = vcvt.s32.f32 %v536
    %v539 = vcvt.s32.f32 %v537
    %540 = vmin.xlane.f32.xlu0 %v539
    %v541 = vpop.xlane.xlu0 %540
    %vm542 = vcmp.eq.f32.partialorder %v539, %v541
    %v543 = vsel %vm542, %v538, inf
    %544 = vmin.xlane.f32.xlu0 %v543
    %v545 = vpop.xlane.xlu0 %544
    %v546 = vcvt.f32.s32 %v545
    %v547 = vcvt.f32.s32 %v541
    %v548 = vshll.u32 %v547, 16
    %v549 = vadd.s32 %v548, %v546
    %vm550 = vcmp.eq.s32.totalorder %v139, %v549
    %v551 = vsel %vm550, 1, 0
    %v552 = vcvt.s32.f32 %v551
    %553 = vmatpush.msra.mxu0 0.0
    %554 = vmatpush.msra.mxu0 0.0
    %555 = vmatpush.msra.mxu0 0.0
    %556 = vmatpush.msra.mxu0 0.0
    %557 = vmatpush.msra.mxu0 0.0
    %558 = vmatpush.msra.mxu0 0.0
    %559 = vmatpush.msra.mxu0 0.0
    %560 = vmatpush.msra.mxu0 0.0
    %561 = vmatpush.msra.mxu0 0.0
    %562 = vmatpush.msra.mxu0 0.0
    %563 = vmatpush.msra.mxu0 0.0
    %564 = vmatpush.msra.mxu0 0.0
    %565 = vmatpush.msra.mxu0 %v123
    %566 = vmatpush.msra.mxu0 %v122
    %567 = vmatpush.msra.mxu0 %v121
    %568 = vmatpush.msra.mxu0 %v120
    %569 = vmatmul.f32.gmra.mxu0 %v450
    %v570 = vpop.f32.mrf.mxu0
    %v571 = vadd.f32 0.0, %v570
    %572 = vdwg.mxu0
    %v574 = vsel %vm166, %v552, 0
    %576 = vmatpush.msra.mxu0 0.0
    %577 = vmatpush.msra.mxu0 0.0
    %578 = vmatpush.msra.mxu0 0.0
    %579 = vmatpush.msra.mxu0 0.0
    %580 = vmatpush.msra.mxu0 0.0
    %581 = vmatpush.msra.mxu0 0.0
    %582 = vmatpush.msra.mxu0 0.0
    %583 = vmatpush.msra.mxu0 0.0
    %584 = vmatpush.msra.mxu0 0.0
    %585 = vmatpush.msra.mxu0 0.0
    %586 = vmatpush.msra.mxu0 0.0
    %587 = vmatpush.msra.mxu0 0.0
    %588 = vmatpush.msra.mxu0 0.0
    %589 = vmatpush.msra.mxu0 0.0
    %590 = vmatpush.msra.mxu0 %v172
    %591 = vmatpush.msra.mxu0 %v118
    %592 = vmatmul.f32.gmra.mxu0 %v574
    %v593 = vpop.f32.mrf.mxu0
    %v594 = vadd.f32 %v571, %v593
    %595 = vdwg.mxu0
    %v596 = vrot.slane %v114, 1
    %v597 = vsel %vm197, %v115, %v596
    %v598 = vsel %vm142, %v597, 0
    %600 = vmatpush.msra.mxu0 0.0
    %601 = vmatpush.msra.mxu0 0.0
    %602 = vmatpush.msra.mxu0 0.0
    %603 = vmatpush.msra.mxu0 0.0
    %604 = vmatpush.msra.mxu0 0.0
    %605 = vmatpush.msra.mxu0 0.0
    %606 = vmatpush.msra.mxu0 0.0
    %607 = vmatpush.msra.mxu0 0.0
    %608 = vmatpush.msra.mxu0 0.0
    %609 = vmatpush.msra.mxu0 0.0
    %610 = vmatpush.msra.mxu0 0.0
    %611 = vmatpush.msra.mxu0 0.0
    %612 = vmatpush.msra.mxu0 %v127
    %613 = vmatpush.msra.mxu0 %v126
    %614 = vmatpush.msra.mxu0 %v125
    %615 = vmatpush.msra.mxu0 %v124
    %616 = vmatmul.f32.gmra.mxu0 %v598
    %v617 = vpop.f32.mrf.mxu0
    %v618 = vadd.f32 0.0, %v617
    %619 = vdwg.mxu0
    %v620 = vadd.f32 %v594, %v618
    %v621 = vadd.f32 %v620, %v223
    %v622 = vxor.u32 %v621, 2147483648
    %v623 = vmul.f32 %v622, 1.442695
    %v624 = vpow.pop %v623
    %v625 = vadd.f32 %v624, 1.0
    %v626 = vrcp.pop %v625
    %v627 = vmul.f32 %v625, %v626
    %v628 = vsub.f32 1.0, %v627
    %v629 = vmul.f32 %v626, %v628
    %v630 = vadd.f32 %v626, %v629
    %vm631 = vweird.f32 %v625
    %vm632 = vweird.f32 %v626
    %vm633 = vmor %vm631, %vm632
    %v634 = vsel %vm633, %v626, %v630
    %v635 = vand.u32 2147483647, %v625
    %vm636 = vcmp.eq.f32.partialorder %v635, 8.507059e+37
    %v637 = vand.u32 %v625, 2147483648
    %v638 = vor.u32 1.1754944e-38, %v637
    %v639 = vsel %vm636, %v638, %v634
    %v640 = vmul.f32 1.0, %v639
    %v641 = vtanh.pop %v621
    %643 = vrot.lane.b32.xlu0 %v641, 96
    %v644 = vpop.permute.xlu0 %643
    %v646 = vmul.f32 %v640, %v644
    %v647 = vtanh.pop %v646
    %649 = vrot.lane.b32.xlu0 %v647, 64
    %v650 = vpop.permute.xlu0 %649
    %v652 = vmul.f32 %v640, %v650
    %653 = vmatpush.msra.mxu0 0.0
    %654 = vmatpush.msra.mxu0 0.0
    %655 = vmatpush.msra.mxu0 0.0
    %656 = vmatpush.msra.mxu0 0.0
    %657 = vmatpush.msra.mxu0 0.0
    %658 = vmatpush.msra.mxu0 0.0
    %659 = vmatpush.msra.mxu0 0.0
    %660 = vmatpush.msra.mxu0 0.0
    %661 = vmatpush.msra.mxu0 0.0
    %662 = vmatpush.msra.mxu0 0.0
    %663 = vmatpush.msra.mxu0 0.0
    %664 = vmatpush.msra.mxu0 0.0
    %665 = vmatpush.msra.mxu0 %v136
    %666 = vmatpush.msra.mxu0 %v135
    %667 = vmatpush.msra.mxu0 %v134
    %668 = vmatpush.msra.mxu0 %v133
    %669 = vmatmul.f32.gmra.mxu0 %v450
    %v670 = vpop.f32.mrf.mxu0
    %v671 = vadd.f32 0.0, %v670
    %672 = vdwg.mxu0
    %674 = vrot.lane.b32.xlu0 %v652, 64
    %v675 = vpop.permute.xlu0 %674
    %v676 = vsel %vm142, %v675, 0
    %678 = vmatpush.msra.mxu0 0.0
    %679 = vmatpush.msra.mxu0 0.0
    %680 = vmatpush.msra.mxu0 0.0
    %681 = vmatpush.msra.mxu0 0.0
    %682 = vmatpush.msra.mxu0 0.0
    %683 = vmatpush.msra.mxu0 0.0
    %684 = vmatpush.msra.mxu0 0.0
    %685 = vmatpush.msra.mxu0 0.0
    %686 = vmatpush.msra.mxu0 0.0
    %687 = vmatpush.msra.mxu0 0.0
    %688 = vmatpush.msra.mxu0 0.0
    %689 = vmatpush.msra.mxu0 0.0
    %690 = vmatpush.msra.mxu0 %v132
    %691 = vmatpush.msra.mxu0 %v131
    %692 = vmatpush.msra.mxu0 %v130
    %693 = vmatpush.msra.mxu0 %v129
    %694 = vmatmul.f32.gmra.mxu0 %v676
    %v695 = vpop.f32.mrf.mxu0
    %v696 = vadd.f32 %v671, %v695
    %697 = vdwg.mxu0
    %v699 = vrot.slane %v696, 1
    %v700 = vsel %vm142, %v696, 0
    %702 = vmatpush.xpose.msra.mxu0 0.0
    %703 = vmatpush.xpose.msra.mxu0 0.0
    %704 = vmatpush.xpose.msra.mxu0 0.0
    %705 = vmatpush.xpose.msra.mxu0 0.0
    %706 = vmatpush.xpose.msra.mxu0 0.0
    %707 = vmatpush.xpose.msra.mxu0 0.0
    %708 = vmatpush.xpose.msra.mxu0 0.0
    %709 = vmatpush.xpose.msra.mxu0 0.0
    %710 = vmatpush.xpose.msra.mxu0 0.0
    %711 = vmatpush.xpose.msra.mxu0 0.0
    %712 = vmatpush.xpose.msra.mxu0 0.0
    %713 = vmatpush.xpose.msra.mxu0 0.0
    %714 = vmatpush.xpose.msra.mxu0 0.0
    %715 = vmatpush.xpose.msra.mxu0 0.0
    %716 = vmatpush.xpose.msra.mxu0 0.0
    %717 = vmatpush.xpose.msra.mxu0 %v306
    %718 = vmatmul.f32.gmra.mxu0 %v700
    %v719 = vpop.f32.mrf.mxu0
    %v720 = vadd.f32 0.0, %v719
    %721 = vdwg.mxu0
    %v722 = vsel %vm142, %v699, 0
    %724 = vmatpush.xpose.msra.mxu0 0.0
    %725 = vmatpush.xpose.msra.mxu0 0.0
    %726 = vmatpush.xpose.msra.mxu0 0.0
    %727 = vmatpush.xpose.msra.mxu0 0.0
    %728 = vmatpush.xpose.msra.mxu0 0.0
    %729 = vmatpush.xpose.msra.mxu0 0.0
    %730 = vmatpush.xpose.msra.mxu0 0.0
    %731 = vmatpush.xpose.msra.mxu0 0.0
    %732 = vmatpush.xpose.msra.mxu0 0.0
    %733 = vmatpush.xpose.msra.mxu0 0.0
    %734 = vmatpush.xpose.msra.mxu0 0.0
    %735 = vmatpush.xpose.msra.mxu0 0.0
    %736 = vmatpush.xpose.msra.mxu0 0.0
    %737 = vmatpush.xpose.msra.mxu0 0.0
    %738 = vmatpush.xpose.msra.mxu0 0.0
    %739 = vmatpush.xpose.msra.mxu0 %v330
    %740 = vmatmul.f32.gmra.mxu0 %v722
    %v741 = vpop.f32.mrf.mxu0
    %v742 = vadd.f32 0.0, %v741
    %743 = vdwg.mxu0
    %744 = vset.pattern.permute.xlu0 32
    %745 = vperm.xlu0 %744, %v696
    %v746 = vpop.permute.xlu0 %745
    %v747 = vrot.slane %v746, 1
    %v750 = vadd.f32 %v720, %v746
    %v751 = vadd.f32 %v742, %v747
    %v754 = vrot.slane %v751, 7
    %v755 = vsel %vm197, %v754, %v750
    %v757 = vsel %vm117, -1e+12, %v755
    %v758 = vsel %vm366, %v757, -inf
    %759 = vmax.xlane.f32.xlu0 %v758
    %v760 = vpop.xlane.xlu0 %759
    %v761 = vsub.f32 %v757, %v760
    %v762 = vmul.f32 %v761, 1.442695
    %v763 = vpow.pop %v762
    %v764 = vsel %vm366, %v763, 0.0
    %765 = vadd.xlane.f32.xlu0 %v764
    %v766 = vpop.xlane.xlu0 %765
    %v767 = vrcp.pop %v766
    %v768 = vmul.f32 %v766, %v767
    %v769 = vsub.f32 1.0, %v768
    %v770 = vmul.f32 %v767, %v769
    %v771 = vadd.f32 %v767, %v770
    %vm772 = vweird.f32 %v766
    %vm773 = vweird.f32 %v767
    %vm774 = vmor %vm772, %vm773
    %v775 = vsel %vm774, %v767, %v771
    %v776 = vand.u32 2147483647, %v766
    %vm777 = vcmp.eq.f32.partialorder %v776, 8.507059e+37
    %v778 = vand.u32 %v766, 2147483648
    %v779 = vor.u32 1.1754944e-38, %v778
    %v780 = vsel %vm777, %v779, %v775
    %v781 = vmul.f32 %v763, %v780
    %v783 = vrot.slane %v781, 1
    %v784 = vsel %vm393, %v781, 0
    %786 = vmatpush.msra.mxu0 0.0
    %787 = vmatpush.msra.mxu0 0.0
    %788 = vmatpush.msra.mxu0 0.0
    %789 = vmatpush.msra.mxu0 0.0
    %790 = vmatpush.msra.mxu0 0.0
    %791 = vmatpush.msra.mxu0 0.0
    %792 = vmatpush.msra.mxu0 0.0
    %793 = vmatpush.msra.mxu0 0.0
    %794 = vmatpush.msra.mxu0 0.0
    %795 = vmatpush.msra.mxu0 0.0
    %796 = vmatpush.msra.mxu0 0.0
    %797 = vmatpush.msra.mxu0 0.0
    %798 = vmatpush.msra.mxu0 0.0
    %799 = vmatpush.msra.mxu0 0.0
    %800 = vmatpush.msra.mxu0 0.0
    %801 = vmatpush.msra.mxu0 %v114
    %802 = vmatmul.f32.gmra.mxu0 %v784
    %v803 = vpop.f32.mrf.mxu0
    %v804 = vadd.f32 0.0, %v803
    %805 = vdwg.mxu0
    %v806 = vsel %vm393, %v783, 0
    %808 = vmatpush.msra.mxu0 0.0
    %809 = vmatpush.msra.mxu0 0.0
    %810 = vmatpush.msra.mxu0 0.0
    %811 = vmatpush.msra.mxu0 0.0
    %812 = vmatpush.msra.mxu0 0.0
    %813 = vmatpush.msra.mxu0 0.0
    %814 = vmatpush.msra.mxu0 0.0
    %815 = vmatpush.msra.mxu0 0.0
    %816 = vmatpush.msra.mxu0 0.0
    %817 = vmatpush.msra.mxu0 0.0
    %818 = vmatpush.msra.mxu0 0.0
    %819 = vmatpush.msra.mxu0 0.0
    %820 = vmatpush.msra.mxu0 0.0
    %821 = vmatpush.msra.mxu0 0.0
    %822 = vmatpush.msra.mxu0 0.0
    %823 = vmatpush.msra.mxu0 %v115
    %824 = vmatmul.f32.gmra.mxu0 %v806
    %v825 = vpop.f32.mrf.mxu0
    %v826 = vadd.f32 0.0, %v825
    %827 = vdwg.mxu0
    %v828 = vadd.f32 %v696, %v502
    %v829 = vsel %vm505, %v828, -inf
    %830 = vmax.xlane.f32.xlu0 %v829
    %v831 = vpop.xlane.xlu0 %830
    %v832 = vsub.f32 %v828, %v831
    %v833 = vmul.f32 %v832, 1.442695
    %v834 = vpow.pop %v833
    %836 = vrot.lane.b32.xlu0 %v834, 95
    %v837 = vpop.permute.xlu0 %836
    %v839 = vsel %vm516, %v837, 0.0
    %840 = vadd.xlane.f32.xlu0 %v839
    %v841 = vpop.xlane.xlu0 %840
    %v842 = vlog2.pop %v841
    %v843 = vmul.f32 %v842, 0.6931472
    %v844 = vsub.f32 %v832, %v843
    %846 = vrot.lane.b32.xlu0 %v844, 95
    %v847 = vpop.permute.xlu0 %846
    %s849 = scalar_lea.vmem [#allocation10], 2
    %850 = vst.msk [vmem:[%s849] sm:$0x3] %vm516, %v847
    %v851 = vsel %vm505, %v844, -inf
    %852 = vmax.xlane.f32.xlu0 %v851
    %v853 = vpop.xlane.xlu0 %852
    %vm854 = vcmp.eq.f32.partialorder %v844, %v853
    %v855 = vsel %vm854, %v533, 12
    %v856 = vsel %vm505, %v855, 2147483647
    %v857 = vand.u32 %v856, 65535
    %v858 = vshra.s32 %v856, 16
    %v859 = vcvt.s32.f32 %v857
    %v860 = vcvt.s32.f32 %v858
    %861 = vmin.xlane.f32.xlu0 %v860
    %v862 = vpop.xlane.xlu0 %861
    %vm863 = vcmp.eq.f32.partialorder %v860, %v862
    %v864 = vsel %vm863, %v859, inf
    %865 = vmin.xlane.f32.xlu0 %v864
    %v866 = vpop.xlane.xlu0 %865
    %v867 = vcvt.f32.s32 %v866
    %v868 = vcvt.f32.s32 %v862
    %v869 = vshll.u32 %v868, 16
    %v870 = vadd.s32 %v869, %v867
    %vm871 = vcmp.eq.s32.totalorder %v139, %v870
    %v872 = vsel %vm871, 1, 0
    %v873 = vcvt.s32.f32 %v872
    %v876 = vrot.slane %v826, 7
    %v877 = vsel %vm197, %v876, %v804
    %v878 = vsel %vm142, %v877, 0
    %880 = vmatpush.msra.mxu0 0.0
    %881 = vmatpush.msra.mxu0 0.0
    %882 = vmatpush.msra.mxu0 0.0
    %883 = vmatpush.msra.mxu0 0.0
    %884 = vmatpush.msra.mxu0 0.0
    %885 = vmatpush.msra.mxu0 0.0
    %886 = vmatpush.msra.mxu0 0.0
    %887 = vmatpush.msra.mxu0 0.0
    %888 = vmatpush.msra.mxu0 0.0
    %889 = vmatpush.msra.mxu0 0.0
    %890 = vmatpush.msra.mxu0 0.0
    %891 = vmatpush.msra.mxu0 0.0
    %892 = vmatpush.msra.mxu0 %v123
    %893 = vmatpush.msra.mxu0 %v122
    %894 = vmatpush.msra.mxu0 %v121
    %895 = vmatpush.msra.mxu0 %v120
    %896 = vmatmul.f32.gmra.mxu0 %v878
    %v897 = vpop.f32.mrf.mxu0
    %v898 = vadd.f32 0.0, %v897
    %899 = vdwg.mxu0
    %v901 = vsel %vm166, %v873, 0
    %903 = vmatpush.msra.mxu0 0.0
    %904 = vmatpush.msra.mxu0 0.0
    %905 = vmatpush.msra.mxu0 0.0
    %906 = vmatpush.msra.mxu0 0.0
    %907 = vmatpush.msra.mxu0 0.0
    %908 = vmatpush.msra.mxu0 0.0
    %909 = vmatpush.msra.mxu0 0.0
    %910 = vmatpush.msra.mxu0 0.0
    %911 = vmatpush.msra.mxu0 0.0
    %912 = vmatpush.msra.mxu0 0.0
    %913 = vmatpush.msra.mxu0 0.0
    %914 = vmatpush.msra.mxu0 0.0
    %915 = vmatpush.msra.mxu0 0.0
    %916 = vmatpush.msra.mxu0 0.0
    %917 = vmatpush.msra.mxu0 %v172
    %918 = vmatpush.msra.mxu0 %v118
    %919 = vmatmul.f32.gmra.mxu0 %v901
    %v920 = vpop.f32.mrf.mxu0
    %v921 = vadd.f32 %v898, %v920
    %922 = vdwg.mxu0
    %v923 = vrot.slane %v114, 2
    %v924 = vrot.slane %v115, 1
    %v925 = vsel %vm197, %v924, %v923
    %v926 = vsel %vm142, %v925, 0
    %928 = vmatpush.msra.mxu0 0.0
    %929 = vmatpush.msra.mxu0 0.0
    %930 = vmatpush.msra.mxu0 0.0
    %931 = vmatpush.msra.mxu0 0.0
    %932 = vmatpush.msra.mxu0 0.0
    %933 = vmatpush.msra.mxu0 0.0
    %934 = vmatpush.msra.mxu0 0.0
    %935 = vmatpush.msra.mxu0 0.0
    %936 = vmatpush.msra.mxu0 0.0
    %937 = vmatpush.msra.mxu0 0.0
    %938 = vmatpush.msra.mxu0 0.0
    %939 = vmatpush.msra.mxu0 0.0
    %940 = vmatpush.msra.mxu0 %v127
    %941 = vmatpush.msra.mxu0 %v126
    %942 = vmatpush.msra.mxu0 %v125
    %943 = vmatpush.msra.mxu0 %v124
    %944 = vmatmul.f32.gmra.mxu0 %v926
    %v945 = vpop.f32.mrf.mxu0
    %v946 = vadd.f32 0.0, %v945
    %947 = vdwg.mxu0
    %v948 = vadd.f32 %v921, %v946
    %v949 = vadd.f32 %v948, %v223
    %v950 = vxor.u32 %v949, 2147483648
    %v951 = vmul.f32 %v950, 1.442695
    %v952 = vpow.pop %v951
    %v953 = vadd.f32 %v952, 1.0
    %v954 = vrcp.pop %v953
    %v955 = vmul.f32 %v953, %v954
    %v956 = vsub.f32 1.0, %v955
    %v957 = vmul.f32 %v954, %v956
    %v958 = vadd.f32 %v954, %v957
    %vm959 = vweird.f32 %v953
    %vm960 = vweird.f32 %v954
    %vm961 = vmor %vm959, %vm960
    %v962 = vsel %vm961, %v954, %v958
    %v963 = vand.u32 2147483647, %v953
    %vm964 = vcmp.eq.f32.partialorder %v963, 8.507059e+37
    %v965 = vand.u32 %v953, 2147483648
    %v966 = vor.u32 1.1754944e-38, %v965
    %v967 = vsel %vm964, %v966, %v962
    %v968 = vmul.f32 1.0, %v967
    %v969 = vtanh.pop %v949
    %971 = vrot.lane.b32.xlu0 %v969, 96
    %v972 = vpop.permute.xlu0 %971
    %v974 = vmul.f32 %v968, %v972
    %v975 = vtanh.pop %v974
    %977 = vrot.lane.b32.xlu0 %v975, 64
    %v978 = vpop.permute.xlu0 %977
    %v980 = vmul.f32 %v968, %v978
    %981 = vmatpush.msra.mxu0 0.0
    %982 = vmatpush.msra.mxu0 0.0
    %983 = vmatpush.msra.mxu0 0.0
    %984 = vmatpush.msra.mxu0 0.0
    %985 = vmatpush.msra.mxu0 0.0
    %986 = vmatpush.msra.mxu0 0.0
    %987 = vmatpush.msra.mxu0 0.0
    %988 = vmatpush.msra.mxu0 0.0
    %989 = vmatpush.msra.mxu0 0.0
    %990 = vmatpush.msra.mxu0 0.0
    %991 = vmatpush.msra.mxu0 0.0
    %992 = vmatpush.msra.mxu0 0.0
    %993 = vmatpush.msra.mxu0 %v136
    %994 = vmatpush.msra.mxu0 %v135
    %995 = vmatpush.msra.mxu0 %v134
    %996 = vmatpush.msra.mxu0 %v133
    %997 = vmatmul.f32.gmra.mxu0 %v878
    %v998 = vpop.f32.mrf.mxu0
    %v999 = vadd.f32 0.0, %v998
    %1000 = vdwg.mxu0
    %1002 = vrot.lane.b32.xlu0 %v980, 64
    %v1003 = vpop.permute.xlu0 %1002
    %v1004 = vsel %vm142, %v1003, 0
    %1006 = vmatpush.msra.mxu0 0.0
    %1007 = vmatpush.msra.mxu0 0.0
    %1008 = vmatpush.msra.mxu0 0.0
    %1009 = vmatpush.msra.mxu0 0.0
    %1010 = vmatpush.msra.mxu0 0.0
    %1011 = vmatpush.msra.mxu0 0.0
    %1012 = vmatpush.msra.mxu0 0.0
    %1013 = vmatpush.msra.mxu0 0.0
    %1014 = vmatpush.msra.mxu0 0.0
    %1015 = vmatpush.msra.mxu0 0.0
    %1016 = vmatpush.msra.mxu0 0.0
    %1017 = vmatpush.msra.mxu0 0.0
    %1018 = vmatpush.msra.mxu0 %v132
    %1019 = vmatpush.msra.mxu0 %v131
    %1020 = vmatpush.msra.mxu0 %v130
    %1021 = vmatpush.msra.mxu0 %v129
    %1022 = vmatmul.f32.gmra.mxu0 %v1004
    %v1023 = vpop.f32.mrf.mxu0
    %v1024 = vadd.f32 %v999, %v1023
    %1025 = vdwg.mxu0
    %v1027 = vrot.slane %v1024, 1
    %v1028 = vsel %vm142, %v1024, 0
    %1030 = vmatpush.xpose.msra.mxu0 0.0
    %1031 = vmatpush.xpose.msra.mxu0 0.0
    %1032 = vmatpush.xpose.msra.mxu0 0.0
    %1033 = vmatpush.xpose.msra.mxu0 0.0
    %1034 = vmatpush.xpose.msra.mxu0 0.0
    %1035 = vmatpush.xpose.msra.mxu0 0.0
    %1036 = vmatpush.xpose.msra.mxu0 0.0
    %1037 = vmatpush.xpose.msra.mxu0 0.0
    %1038 = vmatpush.xpose.msra.mxu0 0.0
    %1039 = vmatpush.xpose.msra.mxu0 0.0
    %1040 = vmatpush.xpose.msra.mxu0 0.0
    %1041 = vmatpush.xpose.msra.mxu0 0.0
    %1042 = vmatpush.xpose.msra.mxu0 0.0
    %1043 = vmatpush.xpose.msra.mxu0 0.0
    %1044 = vmatpush.xpose.msra.mxu0 0.0
    %1045 = vmatpush.xpose.msra.mxu0 %v306
    %1046 = vmatmul.f32.gmra.mxu0 %v1028
    %v1047 = vpop.f32.mrf.mxu0
    %v1048 = vadd.f32 0.0, %v1047
    %1049 = vdwg.mxu0
    %v1050 = vsel %vm142, %v1027, 0
    %1052 = vmatpush.xpose.msra.mxu0 0.0
    %1053 = vmatpush.xpose.msra.mxu0 0.0
    %1054 = vmatpush.xpose.msra.mxu0 0.0
    %1055 = vmatpush.xpose.msra.mxu0 0.0
    %1056 = vmatpush.xpose.msra.mxu0 0.0
    %1057 = vmatpush.xpose.msra.mxu0 0.0
    %1058 = vmatpush.xpose.msra.mxu0 0.0
    %1059 = vmatpush.xpose.msra.mxu0 0.0
    %1060 = vmatpush.xpose.msra.mxu0 0.0
    %1061 = vmatpush.xpose.msra.mxu0 0.0
    %1062 = vmatpush.xpose.msra.mxu0 0.0
    %1063 = vmatpush.xpose.msra.mxu0 0.0
    %1064 = vmatpush.xpose.msra.mxu0 0.0
    %1065 = vmatpush.xpose.msra.mxu0 0.0
    %1066 = vmatpush.xpose.msra.mxu0 0.0
    %1067 = vmatpush.xpose.msra.mxu0 %v330
    %1068 = vmatmul.f32.gmra.mxu0 %v1050
    %v1069 = vpop.f32.mrf.mxu0
    %v1070 = vadd.f32 0.0, %v1069
    %1071 = vdwg.mxu0
    %1072 = vset.pattern.permute.xlu0 32
    %1073 = vperm.xlu0 %1072, %v1024
    %v1074 = vpop.permute.xlu0 %1073
    %v1075 = vrot.slane %v1074, 1
    %v1078 = vadd.f32 %v1048, %v1074
    %v1079 = vadd.f32 %v1070, %v1075
    %v1082 = vrot.slane %v1079, 7
    %v1083 = vsel %vm197, %v1082, %v1078
    %v1085 = vsel %vm117, -1e+12, %v1083
    %v1086 = vsel %vm366, %v1085, -inf
    %1087 = vmax.xlane.f32.xlu0 %v1086
    %v1088 = vpop.xlane.xlu0 %1087
    %v1089 = vsub.f32 %v1085, %v1088
    %v1090 = vmul.f32 %v1089, 1.442695
    %v1091 = vpow.pop %v1090
    %v1092 = vsel %vm366, %v1091, 0.0
    %1093 = vadd.xlane.f32.xlu0 %v1092
    %v1094 = vpop.xlane.xlu0 %1093
    %v1095 = vrcp.pop %v1094
    %v1096 = vmul.f32 %v1094, %v1095
    %v1097 = vsub.f32 1.0, %v1096
    %v1098 = vmul.f32 %v1095, %v1097
    %v1099 = vadd.f32 %v1095, %v1098
    %vm1100 = vweird.f32 %v1094
    %vm1101 = vweird.f32 %v1095
    %vm1102 = vmor %vm1100, %vm1101
    %v1103 = vsel %vm1102, %v1095, %v1099
    %v1104 = vand.u32 2147483647, %v1094
    %vm1105 = vcmp.eq.f32.partialorder %v1104, 8.507059e+37
    %v1106 = vand.u32 %v1094, 2147483648
    %v1107 = vor.u32 1.1754944e-38, %v1106
    %v1108 = vsel %vm1105, %v1107, %v1103
    %v1109 = vmul.f32 %v1091, %v1108
    %v1111 = vrot.slane %v1109, 1
    %v1112 = vsel %vm393, %v1109, 0
    %1114 = vmatpush.msra.mxu0 0.0
    %1115 = vmatpush.msra.mxu0 0.0
    %1116 = vmatpush.msra.mxu0 0.0
    %1117 = vmatpush.msra.mxu0 0.0
    %1118 = vmatpush.msra.mxu0 0.0
    %1119 = vmatpush.msra.mxu0 0.0
    %1120 = vmatpush.msra.mxu0 0.0
    %1121 = vmatpush.msra.mxu0 0.0
    %1122 = vmatpush.msra.mxu0 0.0
    %1123 = vmatpush.msra.mxu0 0.0
    %1124 = vmatpush.msra.mxu0 0.0
    %1125 = vmatpush.msra.mxu0 0.0
    %1126 = vmatpush.msra.mxu0 0.0
    %1127 = vmatpush.msra.mxu0 0.0
    %1128 = vmatpush.msra.mxu0 0.0
    %1129 = vmatpush.msra.mxu0 %v114
    %1130 = vmatmul.f32.gmra.mxu0 %v1112
    %v1131 = vpop.f32.mrf.mxu0
    %v1132 = vadd.f32 0.0, %v1131
    %1133 = vdwg.mxu0
    %v1134 = vsel %vm393, %v1111, 0
    %1136 = vmatpush.msra.mxu0 0.0
    %1137 = vmatpush.msra.mxu0 0.0
    %1138 = vmatpush.msra.mxu0 0.0
    %1139 = vmatpush.msra.mxu0 0.0
    %1140 = vmatpush.msra.mxu0 0.0
    %1141 = vmatpush.msra.mxu0 0.0
    %1142 = vmatpush.msra.mxu0 0.0
    %1143 = vmatpush.msra.mxu0 0.0
    %1144 = vmatpush.msra.mxu0 0.0
    %1145 = vmatpush.msra.mxu0 0.0
    %1146 = vmatpush.msra.mxu0 0.0
    %1147 = vmatpush.msra.mxu0 0.0
    %1148 = vmatpush.msra.mxu0 0.0
    %1149 = vmatpush.msra.mxu0 0.0
    %1150 = vmatpush.msra.mxu0 0.0
    %1151 = vmatpush.msra.mxu0 %v115
    %1152 = vmatmul.f32.gmra.mxu0 %v1134
    %v1153 = vpop.f32.mrf.mxu0
    %v1154 = vadd.f32 0.0, %v1153
    %1155 = vdwg.mxu0
    %v1156 = vadd.f32 %v1024, %v502
    %v1157 = vsel %vm505, %v1156, -inf
    %1158 = vmax.xlane.f32.xlu0 %v1157
    %v1159 = vpop.xlane.xlu0 %1158
    %v1160 = vsub.f32 %v1156, %v1159
    %v1161 = vmul.f32 %v1160, 1.442695
    %v1162 = vpow.pop %v1161
    %1164 = vrot.lane.b32.xlu0 %v1162, 95
    %v1165 = vpop.permute.xlu0 %1164
    %v1167 = vsel %vm516, %v1165, 0.0
    %1168 = vadd.xlane.f32.xlu0 %v1167
    %v1169 = vpop.xlane.xlu0 %1168
    %v1170 = vlog2.pop %v1169
    %v1171 = vmul.f32 %v1170, 0.6931472
    %v1172 = vsub.f32 %v1160, %v1171
    %1174 = vrot.lane.b32.xlu0 %v1172, 95
    %v1175 = vpop.permute.xlu0 %1174
    %s1177 = scalar_lea.vmem [#allocation10], 4
    %1178 = vst.msk [vmem:[%s1177] sm:$0x3] %vm516, %v1175
    %v1179 = vsel %vm505, %v1172, -inf
    %1180 = vmax.xlane.f32.xlu0 %v1179
    %v1181 = vpop.xlane.xlu0 %1180
    %vm1182 = vcmp.eq.f32.partialorder %v1172, %v1181
    %v1183 = vsel %vm1182, %v533, 12
    %v1184 = vsel %vm505, %v1183, 2147483647
    %v1185 = vand.u32 %v1184, 65535
    %v1186 = vshra.s32 %v1184, 16
    %v1187 = vcvt.s32.f32 %v1185
    %v1188 = vcvt.s32.f32 %v1186
    %1189 = vmin.xlane.f32.xlu0 %v1188
    %v1190 = vpop.xlane.xlu0 %1189
    %vm1191 = vcmp.eq.f32.partialorder %v1188, %v1190
    %v1192 = vsel %vm1191, %v1187, inf
    %1193 = vmin.xlane.f32.xlu0 %v1192
    %v1194 = vpop.xlane.xlu0 %1193
    %v1195 = vcvt.f32.s32 %v1194
    %v1196 = vcvt.f32.s32 %v1190
    %v1197 = vshll.u32 %v1196, 16
    %v1198 = vadd.s32 %v1197, %v1195
    %vm1199 = vcmp.eq.s32.totalorder %v139, %v1198
    %v1200 = vsel %vm1199, 1, 0
    %v1201 = vcvt.s32.f32 %v1200
    %v1204 = vrot.slane %v1154, 7
    %v1205 = vsel %vm197, %v1204, %v1132
    %v1206 = vsel %vm142, %v1205, 0
    %1208 = vmatpush.msra.mxu0 0.0
    %1209 = vmatpush.msra.mxu0 0.0
    %1210 = vmatpush.msra.mxu0 0.0
    %1211 = vmatpush.msra.mxu0 0.0
    %1212 = vmatpush.msra.mxu0 0.0
    %1213 = vmatpush.msra.mxu0 0.0
    %1214 = vmatpush.msra.mxu0 0.0
    %1215 = vmatpush.msra.mxu0 0.0
    %1216 = vmatpush.msra.mxu0 0.0
    %1217 = vmatpush.msra.mxu0 0.0
    %1218 = vmatpush.msra.mxu0 0.0
    %1219 = vmatpush.msra.mxu0 0.0
    %1220 = vmatpush.msra.mxu0 %v123
    %1221 = vmatpush.msra.mxu0 %v122
    %1222 = vmatpush.msra.mxu0 %v121
    %1223 = vmatpush.msra.mxu0 %v120
    %1224 = vmatmul.f32.gmra.mxu0 %v1206
    %v1225 = vpop.f32.mrf.mxu0
    %v1226 = vadd.f32 0.0, %v1225
    %1227 = vdwg.mxu0
    %v1229 = vsel %vm166, %v1201, 0
    %1231 = vmatpush.msra.mxu0 0.0
    %1232 = vmatpush.msra.mxu0 0.0
    %1233 = vmatpush.msra.mxu0 0.0
    %1234 = vmatpush.msra.mxu0 0.0
    %1235 = vmatpush.msra.mxu0 0.0
    %1236 = vmatpush.msra.mxu0 0.0
    %1237 = vmatpush.msra.mxu0 0.0
    %1238 = vmatpush.msra.mxu0 0.0
    %1239 = vmatpush.msra.mxu0 0.0
    %1240 = vmatpush.msra.mxu0 0.0
    %1241 = vmatpush.msra.mxu0 0.0
    %1242 = vmatpush.msra.mxu0 0.0
    %1243 = vmatpush.msra.mxu0 0.0
    %1244 = vmatpush.msra.mxu0 0.0
    %1245 = vmatpush.msra.mxu0 %v172
    %1246 = vmatpush.msra.mxu0 %v118
    %1247 = vmatmul.f32.gmra.mxu0 %v1229
    %v1248 = vpop.f32.mrf.mxu0
    %v1249 = vadd.f32 %v1226, %v1248
    %1250 = vdwg.mxu0
    %v1251 = vrot.slane %v114, 3
    %v1252 = vrot.slane %v115, 2
    %v1253 = vsel %vm197, %v1252, %v1251
    %v1254 = vsel %vm142, %v1253, 0
    %1256 = vmatpush.msra.mxu0 0.0
    %1257 = vmatpush.msra.mxu0 0.0
    %1258 = vmatpush.msra.mxu0 0.0
    %1259 = vmatpush.msra.mxu0 0.0
    %1260 = vmatpush.msra.mxu0 0.0
    %1261 = vmatpush.msra.mxu0 0.0
    %1262 = vmatpush.msra.mxu0 0.0
    %1263 = vmatpush.msra.mxu0 0.0
    %1264 = vmatpush.msra.mxu0 0.0
    %1265 = vmatpush.msra.mxu0 0.0
    %1266 = vmatpush.msra.mxu0 0.0
    %1267 = vmatpush.msra.mxu0 0.0
    %1268 = vmatpush.msra.mxu0 %v127
    %1269 = vmatpush.msra.mxu0 %v126
    %1270 = vmatpush.msra.mxu0 %v125
    %1271 = vmatpush.msra.mxu0 %v124
    %1272 = vmatmul.f32.gmra.mxu0 %v1254
    %v1273 = vpop.f32.mrf.mxu0
    %v1274 = vadd.f32 0.0, %v1273
    %1275 = vdwg.mxu0
    %v1276 = vadd.f32 %v1249, %v1274
    %v1277 = vadd.f32 %v1276, %v223
    %v1278 = vxor.u32 %v1277, 2147483648
    %v1279 = vmul.f32 %v1278, 1.442695
    %v1280 = vpow.pop %v1279
    %v1281 = vadd.f32 %v1280, 1.0
    %v1282 = vrcp.pop %v1281
    %v1283 = vmul.f32 %v1281, %v1282
    %v1284 = vsub.f32 1.0, %v1283
    %v1285 = vmul.f32 %v1282, %v1284
    %v1286 = vadd.f32 %v1282, %v1285
    %vm1287 = vweird.f32 %v1281
    %vm1288 = vweird.f32 %v1282
    %vm1289 = vmor %vm1287, %vm1288
    %v1290 = vsel %vm1289, %v1282, %v1286
    %v1291 = vand.u32 2147483647, %v1281
    %vm1292 = vcmp.eq.f32.partialorder %v1291, 8.507059e+37
    %v1293 = vand.u32 %v1281, 2147483648
    %v1294 = vor.u32 1.1754944e-38, %v1293
    %v1295 = vsel %vm1292, %v1294, %v1290
    %v1296 = vmul.f32 1.0, %v1295
    %v1297 = vtanh.pop %v1277
    %1299 = vrot.lane.b32.xlu0 %v1297, 96
    %v1300 = vpop.permute.xlu0 %1299
    %v1302 = vmul.f32 %v1296, %v1300
    %v1303 = vtanh.pop %v1302
    %1305 = vrot.lane.b32.xlu0 %v1303, 64
    %v1306 = vpop.permute.xlu0 %1305
    %v1308 = vmul.f32 %v1296, %v1306
    %1309 = vmatpush.msra.mxu0 0.0
    %1310 = vmatpush.msra.mxu0 0.0
    %1311 = vmatpush.msra.mxu0 0.0
    %1312 = vmatpush.msra.mxu0 0.0
    %1313 = vmatpush.msra.mxu0 0.0
    %1314 = vmatpush.msra.mxu0 0.0
    %1315 = vmatpush.msra.mxu0 0.0
    %1316 = vmatpush.msra.mxu0 0.0
    %1317 = vmatpush.msra.mxu0 0.0
    %1318 = vmatpush.msra.mxu0 0.0
    %1319 = vmatpush.msra.mxu0 0.0
    %1320 = vmatpush.msra.mxu0 0.0
    %1321 = vmatpush.msra.mxu0 %v136
    %1322 = vmatpush.msra.mxu0 %v135
    %1323 = vmatpush.msra.mxu0 %v134
    %1324 = vmatpush.msra.mxu0 %v133
    %1325 = vmatmul.f32.gmra.mxu0 %v1206
    %v1326 = vpop.f32.mrf.mxu0
    %v1327 = vadd.f32 0.0, %v1326
    %1328 = vdwg.mxu0
    %1330 = vrot.lane.b32.xlu0 %v1308, 64
    %v1331 = vpop.permute.xlu0 %1330
    %v1332 = vsel %vm142, %v1331, 0
    %1334 = vmatpush.msra.mxu0 0.0
    %1335 = vmatpush.msra.mxu0 0.0
    %1336 = vmatpush.msra.mxu0 0.0
    %1337 = vmatpush.msra.mxu0 0.0
    %1338 = vmatpush.msra.mxu0 0.0
    %1339 = vmatpush.msra.mxu0 0.0
    %1340 = vmatpush.msra.mxu0 0.0
    %1341 = vmatpush.msra.mxu0 0.0
    %1342 = vmatpush.msra.mxu0 0.0
    %1343 = vmatpush.msra.mxu0 0.0
    %1344 = vmatpush.msra.mxu0 0.0
    %1345 = vmatpush.msra.mxu0 0.0
    %1346 = vmatpush.msra.mxu0 %v132
    %1347 = vmatpush.msra.mxu0 %v131
    %1348 = vmatpush.msra.mxu0 %v130
    %1349 = vmatpush.msra.mxu0 %v129
    %1350 = vmatmul.f32.gmra.mxu0 %v1332
    %v1351 = vpop.f32.mrf.mxu0
    %v1352 = vadd.f32 %v1327, %v1351
    %1353 = vdwg.mxu0
    %v1355 = vrot.slane %v1352, 1
    %v1356 = vsel %vm142, %v1352, 0
    %1358 = vmatpush.xpose.msra.mxu0 0.0
    %1359 = vmatpush.xpose.msra.mxu0 0.0
    %1360 = vmatpush.xpose.msra.mxu0 0.0
    %1361 = vmatpush.xpose.msra.mxu0 0.0
    %1362 = vmatpush.xpose.msra.mxu0 0.0
    %1363 = vmatpush.xpose.msra.mxu0 0.0
    %1364 = vmatpush.xpose.msra.mxu0 0.0
    %1365 = vmatpush.xpose.msra.mxu0 0.0
    %1366 = vmatpush.xpose.msra.mxu0 0.0
    %1367 = vmatpush.xpose.msra.mxu0 0.0
    %1368 = vmatpush.xpose.msra.mxu0 0.0
    %1369 = vmatpush.xpose.msra.mxu0 0.0
    %1370 = vmatpush.xpose.msra.mxu0 0.0
    %1371 = vmatpush.xpose.msra.mxu0 0.0
    %1372 = vmatpush.xpose.msra.mxu0 0.0
    %1373 = vmatpush.xpose.msra.mxu0 %v306
    %1374 = vmatmul.f32.gmra.mxu0 %v1356
    %v1375 = vpop.f32.mrf.mxu0
    %v1376 = vadd.f32 0.0, %v1375
    %1377 = vdwg.mxu0
    %v1378 = vsel %vm142, %v1355, 0
    %1380 = vmatpush.xpose.msra.mxu0 0.0
    %1381 = vmatpush.xpose.msra.mxu0 0.0
    %1382 = vmatpush.xpose.msra.mxu0 0.0
    %1383 = vmatpush.xpose.msra.mxu0 0.0
    %1384 = vmatpush.xpose.msra.mxu0 0.0
    %1385 = vmatpush.xpose.msra.mxu0 0.0
    %1386 = vmatpush.xpose.msra.mxu0 0.0
    %1387 = vmatpush.xpose.msra.mxu0 0.0
    %1388 = vmatpush.xpose.msra.mxu0 0.0
    %1389 = vmatpush.xpose.msra.mxu0 0.0
    %1390 = vmatpush.xpose.msra.mxu0 0.0
    %1391 = vmatpush.xpose.msra.mxu0 0.0
    %1392 = vmatpush.xpose.msra.mxu0 0.0
    %1393 = vmatpush.xpose.msra.mxu0 0.0
    %1394 = vmatpush.xpose.msra.mxu0 0.0
    %1395 = vmatpush.xpose.msra.mxu0 %v330
    %1396 = vmatmul.f32.gmra.mxu0 %v1378
    %v1397 = vpop.f32.mrf.mxu0
    %v1398 = vadd.f32 0.0, %v1397
    %1399 = vdwg.mxu0
    %1400 = vset.pattern.permute.xlu0 32
    %1401 = vperm.xlu0 %1400, %v1352
    %v1402 = vpop.permute.xlu0 %1401
    %v1403 = vrot.slane %v1402, 1
    %v1406 = vadd.f32 %v1376, %v1402
    %v1407 = vadd.f32 %v1398, %v1403
    %v1410 = vrot.slane %v1407, 7
    %v1411 = vsel %vm197, %v1410, %v1406
    %v1413 = vsel %vm117, -1e+12, %v1411
    %v1414 = vsel %vm366, %v1413, -inf
    %1415 = vmax.xlane.f32.xlu0 %v1414
    %v1416 = vpop.xlane.xlu0 %1415
    %v1417 = vsub.f32 %v1413, %v1416
    %v1418 = vmul.f32 %v1417, 1.442695
    %v1419 = vpow.pop %v1418
    %v1420 = vsel %vm366, %v1419, 0.0
    %1421 = vadd.xlane.f32.xlu0 %v1420
    %v1422 = vpop.xlane.xlu0 %1421
    %v1423 = vrcp.pop %v1422
    %v1424 = vmul.f32 %v1422, %v1423
    %v1425 = vsub.f32 1.0, %v1424
    %v1426 = vmul.f32 %v1423, %v1425
    %v1427 = vadd.f32 %v1423, %v1426
    %vm1428 = vweird.f32 %v1422
    %vm1429 = vweird.f32 %v1423
    %vm1430 = vmor %vm1428, %vm1429
    %v1431 = vsel %vm1430, %v1423, %v1427
    %v1432 = vand.u32 2147483647, %v1422
    %vm1433 = vcmp.eq.f32.partialorder %v1432, 8.507059e+37
    %v1434 = vand.u32 %v1422, 2147483648
    %v1435 = vor.u32 1.1754944e-38, %v1434
    %v1436 = vsel %vm1433, %v1435, %v1431
    %v1437 = vmul.f32 %v1419, %v1436
    %v1439 = vrot.slane %v1437, 1
    %v1440 = vsel %vm393, %v1437, 0
    %1442 = vmatpush.msra.mxu0 0.0
    %1443 = vmatpush.msra.mxu0 0.0
    %1444 = vmatpush.msra.mxu0 0.0
    %1445 = vmatpush.msra.mxu0 0.0
    %1446 = vmatpush.msra.mxu0 0.0
    %1447 = vmatpush.msra.mxu0 0.0
    %1448 = vmatpush.msra.mxu0 0.0
    %1449 = vmatpush.msra.mxu0 0.0
    %1450 = vmatpush.msra.mxu0 0.0
    %1451 = vmatpush.msra.mxu0 0.0
    %1452 = vmatpush.msra.mxu0 0.0
    %1453 = vmatpush.msra.mxu0 0.0
    %1454 = vmatpush.msra.mxu0 0.0
    %1455 = vmatpush.msra.mxu0 0.0
    %1456 = vmatpush.msra.mxu0 0.0
    %1457 = vmatpush.msra.mxu0 %v114
    %1458 = vmatmul.f32.gmra.mxu0 %v1440
    %v1459 = vpop.f32.mrf.mxu0
    %v1460 = vadd.f32 0.0, %v1459
    %1461 = vdwg.mxu0
    %v1462 = vsel %vm393, %v1439, 0
    %1464 = vmatpush.msra.mxu0 0.0
    %1465 = vmatpush.msra.mxu0 0.0
    %1466 = vmatpush.msra.mxu0 0.0
    %1467 = vmatpush.msra.mxu0 0.0
    %1468 = vmatpush.msra.mxu0 0.0
    %1469 = vmatpush.msra.mxu0 0.0
    %1470 = vmatpush.msra.mxu0 0.0
    %1471 = vmatpush.msra.mxu0 0.0
    %1472 = vmatpush.msra.mxu0 0.0
    %1473 = vmatpush.msra.mxu0 0.0
    %1474 = vmatpush.msra.mxu0 0.0
    %1475 = vmatpush.msra.mxu0 0.0
    %1476 = vmatpush.msra.mxu0 0.0
    %1477 = vmatpush.msra.mxu0 0.0
    %1478 = vmatpush.msra.mxu0 0.0
    %1479 = vmatpush.msra.mxu0 %v115
    %1480 = vmatmul.f32.gmra.mxu0 %v1462
    %v1481 = vpop.f32.mrf.mxu0
    %v1482 = vadd.f32 0.0, %v1481
    %1483 = vdwg.mxu0
    %v1484 = vadd.f32 %v1352, %v502
    %v1485 = vsel %vm505, %v1484, -inf
    %1486 = vmax.xlane.f32.xlu0 %v1485
    %v1487 = vpop.xlane.xlu0 %1486
    %v1488 = vsub.f32 %v1484, %v1487
    %v1489 = vmul.f32 %v1488, 1.442695
    %v1490 = vpow.pop %v1489
    %1492 = vrot.lane.b32.xlu0 %v1490, 95
    %v1493 = vpop.permute.xlu0 %1492
    %v1495 = vsel %vm516, %v1493, 0.0
    %1496 = vadd.xlane.f32.xlu0 %v1495
    %v1497 = vpop.xlane.xlu0 %1496
    %v1498 = vlog2.pop %v1497
    %v1499 = vmul.f32 %v1498, 0.6931472
    %v1500 = vsub.f32 %v1488, %v1499
    %1502 = vrot.lane.b32.xlu0 %v1500, 95
    %v1503 = vpop.permute.xlu0 %1502
    %s1505 = scalar_lea.vmem [#allocation10], 6
    %1506 = vst.msk [vmem:[%s1505] sm:$0x3] %vm516, %v1503
    %v1507 = vsel %vm505, %v1500, -inf
    %1508 = vmax.xlane.f32.xlu0 %v1507
    %v1509 = vpop.xlane.xlu0 %1508
    %vm1510 = vcmp.eq.f32.partialorder %v1500, %v1509
    %v1511 = vsel %vm1510, %v533, 12
    %v1512 = vsel %vm505, %v1511, 2147483647
    %v1513 = vand.u32 %v1512, 65535
    %v1514 = vshra.s32 %v1512, 16
    %v1515 = vcvt.s32.f32 %v1513
    %v1516 = vcvt.s32.f32 %v1514
    %1517 = vmin.xlane.f32.xlu0 %v1516
    %v1518 = vpop.xlane.xlu0 %1517
    %vm1519 = vcmp.eq.f32.partialorder %v1516, %v1518
    %v1520 = vsel %vm1519, %v1515, inf
    %1521 = vmin.xlane.f32.xlu0 %v1520
    %v1522 = vpop.xlane.xlu0 %1521
    %v1523 = vcvt.f32.s32 %v1522
    %v1524 = vcvt.f32.s32 %v1518
    %v1525 = vshll.u32 %v1524, 16
    %v1526 = vadd.s32 %v1525, %v1523
    %vm1527 = vcmp.eq.s32.totalorder %v139, %v1526
    %v1528 = vsel %vm1527, 1, 0
    %v1529 = vcvt.s32.f32 %v1528
    %v1532 = vrot.slane %v1482, 7
    %v1533 = vsel %vm197, %v1532, %v1460
    %v1534 = vsel %vm142, %v1533, 0
    %1536 = vmatpush.msra.mxu0 0.0
    %1537 = vmatpush.msra.mxu0 0.0
    %1538 = vmatpush.msra.mxu0 0.0
    %1539 = vmatpush.msra.mxu0 0.0
    %1540 = vmatpush.msra.mxu0 0.0
    %1541 = vmatpush.msra.mxu0 0.0
    %1542 = vmatpush.msra.mxu0 0.0
    %1543 = vmatpush.msra.mxu0 0.0
    %1544 = vmatpush.msra.mxu0 0.0
    %1545 = vmatpush.msra.mxu0 0.0
    %1546 = vmatpush.msra.mxu0 0.0
    %1547 = vmatpush.msra.mxu0 0.0
    %1548 = vmatpush.msra.mxu0 %v123
    %1549 = vmatpush.msra.mxu0 %v122
    %1550 = vmatpush.msra.mxu0 %v121
    %1551 = vmatpush.msra.mxu0 %v120
    %1552 = vmatmul.f32.gmra.mxu0 %v1534
    %v1553 = vpop.f32.mrf.mxu0
    %v1554 = vadd.f32 0.0, %v1553
    %1555 = vdwg.mxu0
    %v1557 = vsel %vm166, %v1529, 0
    %1559 = vmatpush.msra.mxu0 0.0
    %1560 = vmatpush.msra.mxu0 0.0
    %1561 = vmatpush.msra.mxu0 0.0
    %1562 = vmatpush.msra.mxu0 0.0
    %1563 = vmatpush.msra.mxu0 0.0
    %1564 = vmatpush.msra.mxu0 0.0
    %1565 = vmatpush.msra.mxu0 0.0
    %1566 = vmatpush.msra.mxu0 0.0
    %1567 = vmatpush.msra.mxu0 0.0
    %1568 = vmatpush.msra.mxu0 0.0
    %1569 = vmatpush.msra.mxu0 0.0
    %1570 = vmatpush.msra.mxu0 0.0
    %1571 = vmatpush.msra.mxu0 0.0
    %1572 = vmatpush.msra.mxu0 0.0
    %1573 = vmatpush.msra.mxu0 %v172
    %1574 = vmatpush.msra.mxu0 %v118
    %1575 = vmatmul.f32.gmra.mxu0 %v1557
    %v1576 = vpop.f32.mrf.mxu0
    %v1577 = vadd.f32 %v1554, %v1576
    %1578 = vdwg.mxu0
    %v1579 = vrot.slane %v114, 4
    %v1580 = vrot.slane %v115, 3
    %v1581 = vsel %vm197, %v1580, %v1579
    %v1582 = vsel %vm142, %v1581, 0
    %1584 = vmatpush.msra.mxu0 0.0
    %1585 = vmatpush.msra.mxu0 0.0
    %1586 = vmatpush.msra.mxu0 0.0
    %1587 = vmatpush.msra.mxu0 0.0
    %1588 = vmatpush.msra.mxu0 0.0
    %1589 = vmatpush.msra.mxu0 0.0
    %1590 = vmatpush.msra.mxu0 0.0
    %1591 = vmatpush.msra.mxu0 0.0
    %1592 = vmatpush.msra.mxu0 0.0
    %1593 = vmatpush.msra.mxu0 0.0
    %1594 = vmatpush.msra.mxu0 0.0
    %1595 = vmatpush.msra.mxu0 0.0
    %1596 = vmatpush.msra.mxu0 %v127
    %1597 = vmatpush.msra.mxu0 %v126
    %1598 = vmatpush.msra.mxu0 %v125
    %1599 = vmatpush.msra.mxu0 %v124
    %1600 = vmatmul.f32.gmra.mxu0 %v1582
    %v1601 = vpop.f32.mrf.mxu0
    %v1602 = vadd.f32 0.0, %v1601
    %1603 = vdwg.mxu0
    %v1604 = vadd.f32 %v1577, %v1602
    %v1605 = vadd.f32 %v1604, %v223
    %v1606 = vxor.u32 %v1605, 2147483648
    %v1607 = vmul.f32 %v1606, 1.442695
    %v1608 = vpow.pop %v1607
    %v1609 = vadd.f32 %v1608, 1.0
    %v1610 = vrcp.pop %v1609
    %v1611 = vmul.f32 %v1609, %v1610
    %v1612 = vsub.f32 1.0, %v1611
    %v1613 = vmul.f32 %v1610, %v1612
    %v1614 = vadd.f32 %v1610, %v1613
    %vm1615 = vweird.f32 %v1609
    %vm1616 = vweird.f32 %v1610
    %vm1617 = vmor %vm1615, %vm1616
    %v1618 = vsel %vm1617, %v1610, %v1614
    %v1619 = vand.u32 2147483647, %v1609
    %vm1620 = vcmp.eq.f32.partialorder %v1619, 8.507059e+37
    %v1621 = vand.u32 %v1609, 2147483648
    %v1622 = vor.u32 1.1754944e-38, %v1621
    %v1623 = vsel %vm1620, %v1622, %v1618
    %v1624 = vmul.f32 1.0, %v1623
    %v1625 = vtanh.pop %v1605
    %1627 = vrot.lane.b32.xlu0 %v1625, 96
    %v1628 = vpop.permute.xlu0 %1627
    %v1630 = vmul.f32 %v1624, %v1628
    %v1631 = vtanh.pop %v1630
    %1633 = vrot.lane.b32.xlu0 %v1631, 64
    %v1634 = vpop.permute.xlu0 %1633
    %v1636 = vmul.f32 %v1624, %v1634
    %1637 = vmatpush.msra.mxu0 0.0
    %1638 = vmatpush.msra.mxu0 0.0
    %1639 = vmatpush.msra.mxu0 0.0
    %1640 = vmatpush.msra.mxu0 0.0
    %1641 = vmatpush.msra.mxu0 0.0
    %1642 = vmatpush.msra.mxu0 0.0
    %1643 = vmatpush.msra.mxu0 0.0
    %1644 = vmatpush.msra.mxu0 0.0
    %1645 = vmatpush.msra.mxu0 0.0
    %1646 = vmatpush.msra.mxu0 0.0
    %1647 = vmatpush.msra.mxu0 0.0
    %1648 = vmatpush.msra.mxu0 0.0
    %1649 = vmatpush.msra.mxu0 %v136
    %1650 = vmatpush.msra.mxu0 %v135
    %1651 = vmatpush.msra.mxu0 %v134
    %1652 = vmatpush.msra.mxu0 %v133
    %1653 = vmatmul.f32.gmra.mxu0 %v1534
    %v1654 = vpop.f32.mrf.mxu0
    %v1655 = vadd.f32 0.0, %v1654
    %1656 = vdwg.mxu0
    %1658 = vrot.lane.b32.xlu0 %v1636, 64
    %v1659 = vpop.permute.xlu0 %1658
    %v1660 = vsel %vm142, %v1659, 0
    %1662 = vmatpush.msra.mxu0 0.0
    %1663 = vmatpush.msra.mxu0 0.0
    %1664 = vmatpush.msra.mxu0 0.0
    %1665 = vmatpush.msra.mxu0 0.0
    %1666 = vmatpush.msra.mxu0 0.0
    %1667 = vmatpush.msra.mxu0 0.0
    %1668 = vmatpush.msra.mxu0 0.0
    %1669 = vmatpush.msra.mxu0 0.0
    %1670 = vmatpush.msra.mxu0 0.0
    %1671 = vmatpush.msra.mxu0 0.0
    %1672 = vmatpush.msra.mxu0 0.0
    %1673 = vmatpush.msra.mxu0 0.0
    %1674 = vmatpush.msra.mxu0 %v132
    %1675 = vmatpush.msra.mxu0 %v131
    %1676 = vmatpush.msra.mxu0 %v130
    %1677 = vmatpush.msra.mxu0 %v129
    %1678 = vmatmul.f32.gmra.mxu0 %v1660
    %v1679 = vpop.f32.mrf.mxu0
    %v1680 = vadd.f32 %v1655, %v1679
    %1681 = vdwg.mxu0
    %v1683 = vrot.slane %v1680, 1
    %v1684 = vsel %vm142, %v1680, 0
    %1686 = vmatpush.xpose.msra.mxu0 0.0
    %1687 = vmatpush.xpose.msra.mxu0 0.0
    %1688 = vmatpush.xpose.msra.mxu0 0.0
    %1689 = vmatpush.xpose.msra.mxu0 0.0
    %1690 = vmatpush.xpose.msra.mxu0 0.0
    %1691 = vmatpush.xpose.msra.mxu0 0.0
    %1692 = vmatpush.xpose.msra.mxu0 0.0
    %1693 = vmatpush.xpose.msra.mxu0 0.0
    %1694 = vmatpush.xpose.msra.mxu0 0.0
    %1695 = vmatpush.xpose.msra.mxu0 0.0
    %1696 = vmatpush.xpose.msra.mxu0 0.0
    %1697 = vmatpush.xpose.msra.mxu0 0.0
    %1698 = vmatpush.xpose.msra.mxu0 0.0
    %1699 = vmatpush.xpose.msra.mxu0 0.0
    %1700 = vmatpush.xpose.msra.mxu0 0.0
    %1701 = vmatpush.xpose.msra.mxu0 %v306
    %1702 = vmatmul.f32.gmra.mxu0 %v1684
    %v1703 = vpop.f32.mrf.mxu0
    %v1704 = vadd.f32 0.0, %v1703
    %1705 = vdwg.mxu0
    %v1706 = vsel %vm142, %v1683, 0
    %1708 = vmatpush.xpose.msra.mxu0 0.0
    %1709 = vmatpush.xpose.msra.mxu0 0.0
    %1710 = vmatpush.xpose.msra.mxu0 0.0
    %1711 = vmatpush.xpose.msra.mxu0 0.0
    %1712 = vmatpush.xpose.msra.mxu0 0.0
    %1713 = vmatpush.xpose.msra.mxu0 0.0
    %1714 = vmatpush.xpose.msra.mxu0 0.0
    %1715 = vmatpush.xpose.msra.mxu0 0.0
    %1716 = vmatpush.xpose.msra.mxu0 0.0
    %1717 = vmatpush.xpose.msra.mxu0 0.0
    %1718 = vmatpush.xpose.msra.mxu0 0.0
    %1719 = vmatpush.xpose.msra.mxu0 0.0
    %1720 = vmatpush.xpose.msra.mxu0 0.0
    %1721 = vmatpush.xpose.msra.mxu0 0.0
    %1722 = vmatpush.xpose.msra.mxu0 0.0
    %1723 = vmatpush.xpose.msra.mxu0 %v330
    %1724 = vmatmul.f32.gmra.mxu0 %v1706
    %v1725 = vpop.f32.mrf.mxu0
    %v1726 = vadd.f32 0.0, %v1725
    %1727 = vdwg.mxu0
    %1728 = vset.pattern.permute.xlu0 32
    %1729 = vperm.xlu0 %1728, %v1680
    %v1730 = vpop.permute.xlu0 %1729
    %v1731 = vrot.slane %v1730, 1
    %v1734 = vadd.f32 %v1704, %v1730
    %v1735 = vadd.f32 %v1726, %v1731
    %v1738 = vrot.slane %v1735, 7
    %v1739 = vsel %vm197, %v1738, %v1734
    %v1741 = vsel %vm117, -1e+12, %v1739
    %v1742 = vsel %vm366, %v1741, -inf
    %1743 = vmax.xlane.f32.xlu0 %v1742
    %v1744 = vpop.xlane.xlu0 %1743
    %v1745 = vsub.f32 %v1741, %v1744
    %v1746 = vmul.f32 %v1745, 1.442695
    %v1747 = vpow.pop %v1746
    %v1748 = vsel %vm366, %v1747, 0.0
    %1749 = vadd.xlane.f32.xlu0 %v1748
    %v1750 = vpop.xlane.xlu0 %1749
    %v1751 = vrcp.pop %v1750
    %v1752 = vmul.f32 %v1750, %v1751
    %v1753 = vsub.f32 1.0, %v1752
    %v1754 = vmul.f32 %v1751, %v1753
    %v1755 = vadd.f32 %v1751, %v1754
    %vm1756 = vweird.f32 %v1750
    %vm1757 = vweird.f32 %v1751
    %vm1758 = vmor %vm1756, %vm1757
    %v1759 = vsel %vm1758, %v1751, %v1755
    %v1760 = vand.u32 2147483647, %v1750
    %vm1761 = vcmp.eq.f32.partialorder %v1760, 8.507059e+37
    %v1762 = vand.u32 %v1750, 2147483648
    %v1763 = vor.u32 1.1754944e-38, %v1762
    %v1764 = vsel %vm1761, %v1763, %v1759
    %v1765 = vmul.f32 %v1747, %v1764
    %v1767 = vrot.slane %v1765, 1
    %v1768 = vsel %vm393, %v1765, 0
    %1770 = vmatpush.msra.mxu0 0.0
    %1771 = vmatpush.msra.mxu0 0.0
    %1772 = vmatpush.msra.mxu0 0.0
    %1773 = vmatpush.msra.mxu0 0.0
    %1774 = vmatpush.msra.mxu0 0.0
    %1775 = vmatpush.msra.mxu0 0.0
    %1776 = vmatpush.msra.mxu0 0.0
    %1777 = vmatpush.msra.mxu0 0.0
    %1778 = vmatpush.msra.mxu0 0.0
    %1779 = vmatpush.msra.mxu0 0.0
    %1780 = vmatpush.msra.mxu0 0.0
    %1781 = vmatpush.msra.mxu0 0.0
    %1782 = vmatpush.msra.mxu0 0.0
    %1783 = vmatpush.msra.mxu0 0.0
    %1784 = vmatpush.msra.mxu0 0.0
    %1785 = vmatpush.msra.mxu0 %v114
    %1786 = vmatmul.f32.gmra.mxu0 %v1768
    %v1787 = vpop.f32.mrf.mxu0
    %v1788 = vadd.f32 0.0, %v1787
    %1789 = vdwg.mxu0
    %v1790 = vsel %vm393, %v1767, 0
    %1792 = vmatpush.msra.mxu0 0.0
    %1793 = vmatpush.msra.mxu0 0.0
    %1794 = vmatpush.msra.mxu0 0.0
    %1795 = vmatpush.msra.mxu0 0.0
    %1796 = vmatpush.msra.mxu0 0.0
    %1797 = vmatpush.msra.mxu0 0.0
    %1798 = vmatpush.msra.mxu0 0.0
    %1799 = vmatpush.msra.mxu0 0.0
    %1800 = vmatpush.msra.mxu0 0.0
    %1801 = vmatpush.msra.mxu0 0.0
    %1802 = vmatpush.msra.mxu0 0.0
    %1803 = vmatpush.msra.mxu0 0.0
    %1804 = vmatpush.msra.mxu0 0.0
    %1805 = vmatpush.msra.mxu0 0.0
    %1806 = vmatpush.msra.mxu0 0.0
    %1807 = vmatpush.msra.mxu0 %v115
    %1808 = vmatmul.f32.gmra.mxu0 %v1790
    %v1809 = vpop.f32.mrf.mxu0
    %v1810 = vadd.f32 0.0, %v1809
    %1811 = vdwg.mxu0
    %v1812 = vadd.f32 %v1680, %v502
    %v1813 = vsel %vm505, %v1812, -inf
    %1814 = vmax.xlane.f32.xlu0 %v1813
    %v1815 = vpop.xlane.xlu0 %1814
    %v1816 = vsub.f32 %v1812, %v1815
    %v1817 = vmul.f32 %v1816, 1.442695
    %v1818 = vpow.pop %v1817
    %1820 = vrot.lane.b32.xlu0 %v1818, 95
    %v1821 = vpop.permute.xlu0 %1820
    %v1823 = vsel %vm516, %v1821, 0.0
    %1824 = vadd.xlane.f32.xlu0 %v1823
    %v1825 = vpop.xlane.xlu0 %1824
    %v1826 = vlog2.pop %v1825
    %v1827 = vmul.f32 %v1826, 0.6931472
    %v1828 = vsub.f32 %v1816, %v1827
    %1830 = vrot.lane.b32.xlu0 %v1828, 95
    %v1831 = vpop.permute.xlu0 %1830
    %s1833 = scalar_lea.vmem [#allocation10], 8
    %1834 = vst.msk [vmem:[%s1833] sm:$0x3] %vm516, %v1831
    %v1835 = vsel %vm505, %v1828, -inf
    %1836 = vmax.xlane.f32.xlu0 %v1835
    %v1837 = vpop.xlane.xlu0 %1836
    %vm1838 = vcmp.eq.f32.partialorder %v1828, %v1837
    %v1839 = vsel %vm1838, %v533, 12
    %v1840 = vsel %vm505, %v1839, 2147483647
    %v1841 = vand.u32 %v1840, 65535
    %v1842 = vshra.s32 %v1840, 16
    %v1843 = vcvt.s32.f32 %v1841
    %v1844 = vcvt.s32.f32 %v1842
    %1845 = vmin.xlane.f32.xlu0 %v1844
    %v1846 = vpop.xlane.xlu0 %1845
    %vm1847 = vcmp.eq.f32.partialorder %v1844, %v1846
    %v1848 = vsel %vm1847, %v1843, inf
    %1849 = vmin.xlane.f32.xlu0 %v1848
    %v1850 = vpop.xlane.xlu0 %1849
    %v1851 = vcvt.f32.s32 %v1850
    %v1852 = vcvt.f32.s32 %v1846
    %v1853 = vshll.u32 %v1852, 16
    %v1854 = vadd.s32 %v1853, %v1851
    %vm1855 = vcmp.eq.s32.totalorder %v139, %v1854
    %v1856 = vsel %vm1855, 1, 0
    %v1857 = vcvt.s32.f32 %v1856
    %v1860 = vrot.slane %v1810, 7
    %v1861 = vsel %vm197, %v1860, %v1788
    %v1862 = vsel %vm142, %v1861, 0
    %1864 = vmatpush.msra.mxu0 0.0
    %1865 = vmatpush.msra.mxu0 0.0
    %1866 = vmatpush.msra.mxu0 0.0
    %1867 = vmatpush.msra.mxu0 0.0
    %1868 = vmatpush.msra.mxu0 0.0
    %1869 = vmatpush.msra.mxu0 0.0
    %1870 = vmatpush.msra.mxu0 0.0
    %1871 = vmatpush.msra.mxu0 0.0
    %1872 = vmatpush.msra.mxu0 0.0
    %1873 = vmatpush.msra.mxu0 0.0
    %1874 = vmatpush.msra.mxu0 0.0
    %1875 = vmatpush.msra.mxu0 0.0
    %1876 = vmatpush.msra.mxu0 %v123
    %1877 = vmatpush.msra.mxu0 %v122
    %1878 = vmatpush.msra.mxu0 %v121
    %1879 = vmatpush.msra.mxu0 %v120
    %1880 = vmatmul.f32.gmra.mxu0 %v1862
    %v1881 = vpop.f32.mrf.mxu0
    %v1882 = vadd.f32 0.0, %v1881
    %1883 = vdwg.mxu0
    %v1885 = vsel %vm166, %v1857, 0
    %1887 = vmatpush.msra.mxu0 0.0
    %1888 = vmatpush.msra.mxu0 0.0
    %1889 = vmatpush.msra.mxu0 0.0
    %1890 = vmatpush.msra.mxu0 0.0
    %1891 = vmatpush.msra.mxu0 0.0
    %1892 = vmatpush.msra.mxu0 0.0
    %1893 = vmatpush.msra.mxu0 0.0
    %1894 = vmatpush.msra.mxu0 0.0
    %1895 = vmatpush.msra.mxu0 0.0
    %1896 = vmatpush.msra.mxu0 0.0
    %1897 = vmatpush.msra.mxu0 0.0
    %1898 = vmatpush.msra.mxu0 0.0
    %1899 = vmatpush.msra.mxu0 0.0
    %1900 = vmatpush.msra.mxu0 0.0
    %1901 = vmatpush.msra.mxu0 %v172
    %1902 = vmatpush.msra.mxu0 %v118
    %1903 = vmatmul.f32.gmra.mxu0 %v1885
    %v1904 = vpop.f32.mrf.mxu0
    %v1905 = vadd.f32 %v1882, %v1904
    %1906 = vdwg.mxu0
    %v1907 = vrot.slane %v114, 5
    %v1908 = vrot.slane %v115, 4
    %v1909 = vsel %vm197, %v1908, %v1907
    %v1910 = vsel %vm142, %v1909, 0
    %1912 = vmatpush.msra.mxu0 0.0
    %1913 = vmatpush.msra.mxu0 0.0
    %1914 = vmatpush.msra.mxu0 0.0
    %1915 = vmatpush.msra.mxu0 0.0
    %1916 = vmatpush.msra.mxu0 0.0
    %1917 = vmatpush.msra.mxu0 0.0
    %1918 = vmatpush.msra.mxu0 0.0
    %1919 = vmatpush.msra.mxu0 0.0
    %1920 = vmatpush.msra.mxu0 0.0
    %1921 = vmatpush.msra.mxu0 0.0
    %1922 = vmatpush.msra.mxu0 0.0
    %1923 = vmatpush.msra.mxu0 0.0
    %1924 = vmatpush.msra.mxu0 %v127
    %1925 = vmatpush.msra.mxu0 %v126
    %1926 = vmatpush.msra.mxu0 %v125
    %1927 = vmatpush.msra.mxu0 %v124
    %1928 = vmatmul.f32.gmra.mxu0 %v1910
    %v1929 = vpop.f32.mrf.mxu0
    %v1930 = vadd.f32 0.0, %v1929
    %1931 = vdwg.mxu0
    %v1932 = vadd.f32 %v1905, %v1930
    %v1933 = vadd.f32 %v1932, %v223
    %v1934 = vxor.u32 %v1933, 2147483648
    %v1935 = vmul.f32 %v1934, 1.442695
    %v1936 = vpow.pop %v1935
    %v1937 = vadd.f32 %v1936, 1.0
    %v1938 = vrcp.pop %v1937
    %v1939 = vmul.f32 %v1937, %v1938
    %v1940 = vsub.f32 1.0, %v1939
    %v1941 = vmul.f32 %v1938, %v1940
    %v1942 = vadd.f32 %v1938, %v1941
    %vm1943 = vweird.f32 %v1937
    %vm1944 = vweird.f32 %v1938
    %vm1945 = vmor %vm1943, %vm1944
    %v1946 = vsel %vm1945, %v1938, %v1942
    %v1947 = vand.u32 2147483647, %v1937
    %vm1948 = vcmp.eq.f32.partialorder %v1947, 8.507059e+37
    %v1949 = vand.u32 %v1937, 2147483648
    %v1950 = vor.u32 1.1754944e-38, %v1949
    %v1951 = vsel %vm1948, %v1950, %v1946
    %v1952 = vmul.f32 1.0, %v1951
    %v1953 = vtanh.pop %v1933
    %1955 = vrot.lane.b32.xlu0 %v1953, 96
    %v1956 = vpop.permute.xlu0 %1955
    %v1958 = vmul.f32 %v1952, %v1956
    %v1959 = vtanh.pop %v1958
    %1961 = vrot.lane.b32.xlu0 %v1959, 64
    %v1962 = vpop.permute.xlu0 %1961
    %v1964 = vmul.f32 %v1952, %v1962
    %1965 = vmatpush.msra.mxu0 0.0
    %1966 = vmatpush.msra.mxu0 0.0
    %1967 = vmatpush.msra.mxu0 0.0
    %1968 = vmatpush.msra.mxu0 0.0
    %1969 = vmatpush.msra.mxu0 0.0
    %1970 = vmatpush.msra.mxu0 0.0
    %1971 = vmatpush.msra.mxu0 0.0
    %1972 = vmatpush.msra.mxu0 0.0
    %1973 = vmatpush.msra.mxu0 0.0
    %1974 = vmatpush.msra.mxu0 0.0
    %1975 = vmatpush.msra.mxu0 0.0
    %1976 = vmatpush.msra.mxu0 0.0
    %1977 = vmatpush.msra.mxu0 %v136
    %1978 = vmatpush.msra.mxu0 %v135
    %1979 = vmatpush.msra.mxu0 %v134
    %1980 = vmatpush.msra.mxu0 %v133
    %1981 = vmatmul.f32.gmra.mxu0 %v1862
    %v1982 = vpop.f32.mrf.mxu0
    %v1983 = vadd.f32 0.0, %v1982
    %1984 = vdwg.mxu0
    %1986 = vrot.lane.b32.xlu0 %v1964, 64
    %v1987 = vpop.permute.xlu0 %1986
    %v1988 = vsel %vm142, %v1987, 0
    %1990 = vmatpush.msra.mxu0 0.0
    %1991 = vmatpush.msra.mxu0 0.0
    %1992 = vmatpush.msra.mxu0 0.0
    %1993 = vmatpush.msra.mxu0 0.0
    %1994 = vmatpush.msra.mxu0 0.0
    %1995 = vmatpush.msra.mxu0 0.0
    %1996 = vmatpush.msra.mxu0 0.0
    %1997 = vmatpush.msra.mxu0 0.0
    %1998 = vmatpush.msra.mxu0 0.0
    %1999 = vmatpush.msra.mxu0 0.0
    %2000 = vmatpush.msra.mxu0 0.0
    %2001 = vmatpush.msra.mxu0 0.0
    %2002 = vmatpush.msra.mxu0 %v132
    %2003 = vmatpush.msra.mxu0 %v131
    %2004 = vmatpush.msra.mxu0 %v130
    %2005 = vmatpush.msra.mxu0 %v129
    %2006 = vmatmul.f32.gmra.mxu0 %v1988
    %v2007 = vpop.f32.mrf.mxu0
    %v2008 = vadd.f32 %v1983, %v2007
    %2009 = vdwg.mxu0
    %v2011 = vrot.slane %v2008, 1
    %v2012 = vsel %vm142, %v2008, 0
    %2014 = vmatpush.xpose.msra.mxu0 0.0
    %2015 = vmatpush.xpose.msra.mxu0 0.0
    %2016 = vmatpush.xpose.msra.mxu0 0.0
    %2017 = vmatpush.xpose.msra.mxu0 0.0
    %2018 = vmatpush.xpose.msra.mxu0 0.0
    %2019 = vmatpush.xpose.msra.mxu0 0.0
    %2020 = vmatpush.xpose.msra.mxu0 0.0
    %2021 = vmatpush.xpose.msra.mxu0 0.0
    %2022 = vmatpush.xpose.msra.mxu0 0.0
    %2023 = vmatpush.xpose.msra.mxu0 0.0
    %2024 = vmatpush.xpose.msra.mxu0 0.0
    %2025 = vmatpush.xpose.msra.mxu0 0.0
    %2026 = vmatpush.xpose.msra.mxu0 0.0
    %2027 = vmatpush.xpose.msra.mxu0 0.0
    %2028 = vmatpush.xpose.msra.mxu0 0.0
    %2029 = vmatpush.xpose.msra.mxu0 %v306
    %2030 = vmatmul.f32.gmra.mxu0 %v2012
    %v2031 = vpop.f32.mrf.mxu0
    %v2032 = vadd.f32 0.0, %v2031
    %2033 = vdwg.mxu0
    %v2034 = vsel %vm142, %v2011, 0
    %2036 = vmatpush.xpose.msra.mxu0 0.0
    %2037 = vmatpush.xpose.msra.mxu0 0.0
    %2038 = vmatpush.xpose.msra.mxu0 0.0
    %2039 = vmatpush.xpose.msra.mxu0 0.0
    %2040 = vmatpush.xpose.msra.mxu0 0.0
    %2041 = vmatpush.xpose.msra.mxu0 0.0
    %2042 = vmatpush.xpose.msra.mxu0 0.0
    %2043 = vmatpush.xpose.msra.mxu0 0.0
    %2044 = vmatpush.xpose.msra.mxu0 0.0
    %2045 = vmatpush.xpose.msra.mxu0 0.0
    %2046 = vmatpush.xpose.msra.mxu0 0.0
    %2047 = vmatpush.xpose.msra.mxu0 0.0
    %2048 = vmatpush.xpose.msra.mxu0 0.0
    %2049 = vmatpush.xpose.msra.mxu0 0.0
    %2050 = vmatpush.xpose.msra.mxu0 0.0
    %2051 = vmatpush.xpose.msra.mxu0 %v330
    %2052 = vmatmul.f32.gmra.mxu0 %v2034
    %v2053 = vpop.f32.mrf.mxu0
    %v2054 = vadd.f32 0.0, %v2053
    %2055 = vdwg.mxu0
    %2056 = vset.pattern.permute.xlu0 32
    %2057 = vperm.xlu0 %2056, %v2008
    %v2058 = vpop.permute.xlu0 %2057
    %v2059 = vrot.slane %v2058, 1
    %v2062 = vadd.f32 %v2032, %v2058
    %v2063 = vadd.f32 %v2054, %v2059
    %v2066 = vrot.slane %v2063, 7
    %v2067 = vsel %vm197, %v2066, %v2062
    %v2069 = vsel %vm117, -1e+12, %v2067
    %v2070 = vsel %vm366, %v2069, -inf
    %2071 = vmax.xlane.f32.xlu0 %v2070
    %v2072 = vpop.xlane.xlu0 %2071
    %v2073 = vsub.f32 %v2069, %v2072
    %v2074 = vmul.f32 %v2073, 1.442695
    %v2075 = vpow.pop %v2074
    %v2076 = vsel %vm366, %v2075, 0.0
    %2077 = vadd.xlane.f32.xlu0 %v2076
    %v2078 = vpop.xlane.xlu0 %2077
    %v2079 = vrcp.pop %v2078
    %v2080 = vmul.f32 %v2078, %v2079
    %v2081 = vsub.f32 1.0, %v2080
    %v2082 = vmul.f32 %v2079, %v2081
    %v2083 = vadd.f32 %v2079, %v2082
    %vm2084 = vweird.f32 %v2078
    %vm2085 = vweird.f32 %v2079
    %vm2086 = vmor %vm2084, %vm2085
    %v2087 = vsel %vm2086, %v2079, %v2083
    %v2088 = vand.u32 2147483647, %v2078
    %vm2089 = vcmp.eq.f32.partialorder %v2088, 8.507059e+37
    %v2090 = vand.u32 %v2078, 2147483648
    %v2091 = vor.u32 1.1754944e-38, %v2090
    %v2092 = vsel %vm2089, %v2091, %v2087
    %v2093 = vmul.f32 %v2075, %v2092
    %v2095 = vrot.slane %v2093, 1
    %v2096 = vsel %vm393, %v2093, 0
    %2098 = vmatpush.msra.mxu0 0.0
    %2099 = vmatpush.msra.mxu0 0.0
    %2100 = vmatpush.msra.mxu0 0.0
    %2101 = vmatpush.msra.mxu0 0.0
    %2102 = vmatpush.msra.mxu0 0.0
    %2103 = vmatpush.msra.mxu0 0.0
    %2104 = vmatpush.msra.mxu0 0.0
    %2105 = vmatpush.msra.mxu0 0.0
    %2106 = vmatpush.msra.mxu0 0.0
    %2107 = vmatpush.msra.mxu0 0.0
    %2108 = vmatpush.msra.mxu0 0.0
    %2109 = vmatpush.msra.mxu0 0.0
    %2110 = vmatpush.msra.mxu0 0.0
    %2111 = vmatpush.msra.mxu0 0.0
    %2112 = vmatpush.msra.mxu0 0.0
    %2113 = vmatpush.msra.mxu0 %v114
    %2114 = vmatmul.f32.gmra.mxu0 %v2096
    %v2115 = vpop.f32.mrf.mxu0
    %v2116 = vadd.f32 0.0, %v2115
    %2117 = vdwg.mxu0
    %v2118 = vsel %vm393, %v2095, 0
    %2120 = vmatpush.msra.mxu0 0.0
    %2121 = vmatpush.msra.mxu0 0.0
    %2122 = vmatpush.msra.mxu0 0.0
    %2123 = vmatpush.msra.mxu0 0.0
    %2124 = vmatpush.msra.mxu0 0.0
    %2125 = vmatpush.msra.mxu0 0.0
    %2126 = vmatpush.msra.mxu0 0.0
    %2127 = vmatpush.msra.mxu0 0.0
    %2128 = vmatpush.msra.mxu0 0.0
    %2129 = vmatpush.msra.mxu0 0.0
    %2130 = vmatpush.msra.mxu0 0.0
    %2131 = vmatpush.msra.mxu0 0.0
    %2132 = vmatpush.msra.mxu0 0.0
    %2133 = vmatpush.msra.mxu0 0.0
    %2134 = vmatpush.msra.mxu0 0.0
    %2135 = vmatpush.msra.mxu0 %v115
    %2136 = vmatmul.f32.gmra.mxu0 %v2118
    %v2137 = vpop.f32.mrf.mxu0
    %v2138 = vadd.f32 0.0, %v2137
    %2139 = vdwg.mxu0
    %v2140 = vadd.f32 %v2008, %v502
    %v2141 = vsel %vm505, %v2140, -inf
    %2142 = vmax.xlane.f32.xlu0 %v2141
    %v2143 = vpop.xlane.xlu0 %2142
    %v2144 = vsub.f32 %v2140, %v2143
    %v2145 = vmul.f32 %v2144, 1.442695
    %v2146 = vpow.pop %v2145
    %2148 = vrot.lane.b32.xlu0 %v2146, 95
    %v2149 = vpop.permute.xlu0 %2148
    %v2151 = vsel %vm516, %v2149, 0.0
    %2152 = vadd.xlane.f32.xlu0 %v2151
    %v2153 = vpop.xlane.xlu0 %2152
    %v2154 = vlog2.pop %v2153
    %v2155 = vmul.f32 %v2154, 0.6931472
    %v2156 = vsub.f32 %v2144, %v2155
    %2158 = vrot.lane.b32.xlu0 %v2156, 95
    %v2159 = vpop.permute.xlu0 %2158
    %s2161 = scalar_lea.vmem [#allocation10], 10
    %2162 = vst.msk [vmem:[%s2161] sm:$0x3] %vm516, %v2159
    %v2163 = vsel %vm505, %v2156, -inf
    %2164 = vmax.xlane.f32.xlu0 %v2163
    %v2165 = vpop.xlane.xlu0 %2164
    %vm2166 = vcmp.eq.f32.partialorder %v2156, %v2165
    %v2167 = vsel %vm2166, %v533, 12
    %v2168 = vsel %vm505, %v2167, 2147483647
    %v2169 = vand.u32 %v2168, 65535
    %v2170 = vshra.s32 %v2168, 16
    %v2171 = vcvt.s32.f32 %v2169
    %v2172 = vcvt.s32.f32 %v2170
    %2173 = vmin.xlane.f32.xlu0 %v2172
    %v2174 = vpop.xlane.xlu0 %2173
    %vm2175 = vcmp.eq.f32.partialorder %v2172, %v2174
    %v2176 = vsel %vm2175, %v2171, inf
    %2177 = vmin.xlane.f32.xlu0 %v2176
    %v2178 = vpop.xlane.xlu0 %2177
    %v2179 = vcvt.f32.s32 %v2178
    %v2180 = vcvt.f32.s32 %v2174
    %v2181 = vshll.u32 %v2180, 16
    %v2182 = vadd.s32 %v2181, %v2179
    %vm2183 = vcmp.eq.s32.totalorder %v139, %v2182
    %v2184 = vsel %vm2183, 1, 0
    %v2185 = vcvt.s32.f32 %v2184
    %v2188 = vrot.slane %v2138, 7
    %v2189 = vsel %vm197, %v2188, %v2116
    %v2190 = vsel %vm142, %v2189, 0
    %2192 = vmatpush.msra.mxu0 0.0
    %2193 = vmatpush.msra.mxu0 0.0
    %2194 = vmatpush.msra.mxu0 0.0
    %2195 = vmatpush.msra.mxu0 0.0
    %2196 = vmatpush.msra.mxu0 0.0
    %2197 = vmatpush.msra.mxu0 0.0
    %2198 = vmatpush.msra.mxu0 0.0
    %2199 = vmatpush.msra.mxu0 0.0
    %2200 = vmatpush.msra.mxu0 0.0
    %2201 = vmatpush.msra.mxu0 0.0
    %2202 = vmatpush.msra.mxu0 0.0
    %2203 = vmatpush.msra.mxu0 0.0
    %2204 = vmatpush.msra.mxu0 %v123
    %2205 = vmatpush.msra.mxu0 %v122
    %2206 = vmatpush.msra.mxu0 %v121
    %2207 = vmatpush.msra.mxu0 %v120
    %2208 = vmatmul.f32.gmra.mxu0 %v2190
    %v2209 = vpop.f32.mrf.mxu0
    %v2210 = vadd.f32 0.0, %v2209
    %2211 = vdwg.mxu0
    %v2213 = vsel %vm166, %v2185, 0
    %2215 = vmatpush.msra.mxu0 0.0
    %2216 = vmatpush.msra.mxu0 0.0
    %2217 = vmatpush.msra.mxu0 0.0
    %2218 = vmatpush.msra.mxu0 0.0
    %2219 = vmatpush.msra.mxu0 0.0
    %2220 = vmatpush.msra.mxu0 0.0
    %2221 = vmatpush.msra.mxu0 0.0
    %2222 = vmatpush.msra.mxu0 0.0
    %2223 = vmatpush.msra.mxu0 0.0
    %2224 = vmatpush.msra.mxu0 0.0
    %2225 = vmatpush.msra.mxu0 0.0
    %2226 = vmatpush.msra.mxu0 0.0
    %2227 = vmatpush.msra.mxu0 0.0
    %2228 = vmatpush.msra.mxu0 0.0
    %2229 = vmatpush.msra.mxu0 %v172
    %2230 = vmatpush.msra.mxu0 %v118
    %2231 = vmatmul.f32.gmra.mxu0 %v2213
    %v2232 = vpop.f32.mrf.mxu0
    %v2233 = vadd.f32 %v2210, %v2232
    %2234 = vdwg.mxu0
    %v2235 = vrot.slane %v114, 6
    %v2236 = vrot.slane %v115, 5
    %v2237 = vsel %vm197, %v2236, %v2235
    %v2238 = vsel %vm142, %v2237, 0
    %2240 = vmatpush.msra.mxu0 0.0
    %2241 = vmatpush.msra.mxu0 0.0
    %2242 = vmatpush.msra.mxu0 0.0
    %2243 = vmatpush.msra.mxu0 0.0
    %2244 = vmatpush.msra.mxu0 0.0
    %2245 = vmatpush.msra.mxu0 0.0
    %2246 = vmatpush.msra.mxu0 0.0
    %2247 = vmatpush.msra.mxu0 0.0
    %2248 = vmatpush.msra.mxu0 0.0
    %2249 = vmatpush.msra.mxu0 0.0
    %2250 = vmatpush.msra.mxu0 0.0
    %2251 = vmatpush.msra.mxu0 0.0
    %2252 = vmatpush.msra.mxu0 %v127
    %2253 = vmatpush.msra.mxu0 %v126
    %2254 = vmatpush.msra.mxu0 %v125
    %2255 = vmatpush.msra.mxu0 %v124
    %2256 = vmatmul.f32.gmra.mxu0 %v2238
    %v2257 = vpop.f32.mrf.mxu0
    %v2258 = vadd.f32 0.0, %v2257
    %2259 = vdwg.mxu0
    %v2260 = vadd.f32 %v2233, %v2258
    %v2261 = vadd.f32 %v2260, %v223
    %v2262 = vxor.u32 %v2261, 2147483648
    %v2263 = vmul.f32 %v2262, 1.442695
    %v2264 = vpow.pop %v2263
    %v2265 = vadd.f32 %v2264, 1.0
    %v2266 = vrcp.pop %v2265
    %v2267 = vmul.f32 %v2265, %v2266
    %v2268 = vsub.f32 1.0, %v2267
    %v2269 = vmul.f32 %v2266, %v2268
    %v2270 = vadd.f32 %v2266, %v2269
    %vm2271 = vweird.f32 %v2265
    %vm2272 = vweird.f32 %v2266
    %vm2273 = vmor %vm2271, %vm2272
    %v2274 = vsel %vm2273, %v2266, %v2270
    %v2275 = vand.u32 2147483647, %v2265
    %vm2276 = vcmp.eq.f32.partialorder %v2275, 8.507059e+37
    %v2277 = vand.u32 %v2265, 2147483648
    %v2278 = vor.u32 1.1754944e-38, %v2277
    %v2279 = vsel %vm2276, %v2278, %v2274
    %v2280 = vmul.f32 1.0, %v2279
    %v2281 = vtanh.pop %v2261
    %2283 = vrot.lane.b32.xlu0 %v2281, 96
    %v2284 = vpop.permute.xlu0 %2283
    %v2286 = vmul.f32 %v2280, %v2284
    %v2287 = vtanh.pop %v2286
    %2289 = vrot.lane.b32.xlu0 %v2287, 64
    %v2290 = vpop.permute.xlu0 %2289
    %v2292 = vmul.f32 %v2280, %v2290
    %2293 = vmatpush.msra.mxu0 0.0
    %2294 = vmatpush.msra.mxu0 0.0
    %2295 = vmatpush.msra.mxu0 0.0
    %2296 = vmatpush.msra.mxu0 0.0
    %2297 = vmatpush.msra.mxu0 0.0
    %2298 = vmatpush.msra.mxu0 0.0
    %2299 = vmatpush.msra.mxu0 0.0
    %2300 = vmatpush.msra.mxu0 0.0
    %2301 = vmatpush.msra.mxu0 0.0
    %2302 = vmatpush.msra.mxu0 0.0
    %2303 = vmatpush.msra.mxu0 0.0
    %2304 = vmatpush.msra.mxu0 0.0
    %2305 = vmatpush.msra.mxu0 %v136
    %2306 = vmatpush.msra.mxu0 %v135
    %2307 = vmatpush.msra.mxu0 %v134
    %2308 = vmatpush.msra.mxu0 %v133
    %2309 = vmatmul.f32.gmra.mxu0 %v2190
    %v2310 = vpop.f32.mrf.mxu0
    %v2311 = vadd.f32 0.0, %v2310
    %2312 = vdwg.mxu0
    %2314 = vrot.lane.b32.xlu0 %v2292, 64
    %v2315 = vpop.permute.xlu0 %2314
    %v2316 = vsel %vm142, %v2315, 0
    %2318 = vmatpush.msra.mxu0 0.0
    %2319 = vmatpush.msra.mxu0 0.0
    %2320 = vmatpush.msra.mxu0 0.0
    %2321 = vmatpush.msra.mxu0 0.0
    %2322 = vmatpush.msra.mxu0 0.0
    %2323 = vmatpush.msra.mxu0 0.0
    %2324 = vmatpush.msra.mxu0 0.0
    %2325 = vmatpush.msra.mxu0 0.0
    %2326 = vmatpush.msra.mxu0 0.0
    %2327 = vmatpush.msra.mxu0 0.0
    %2328 = vmatpush.msra.mxu0 0.0
    %2329 = vmatpush.msra.mxu0 0.0
    %2330 = vmatpush.msra.mxu0 %v132
    %2331 = vmatpush.msra.mxu0 %v131
    %2332 = vmatpush.msra.mxu0 %v130
    %2333 = vmatpush.msra.mxu0 %v129
    %2334 = vmatmul.f32.gmra.mxu0 %v2316
    %v2335 = vpop.f32.mrf.mxu0
    %v2336 = vadd.f32 %v2311, %v2335
    %2337 = vdwg.mxu0
    %v2339 = vrot.slane %v2336, 1
    %v2340 = vsel %vm142, %v2336, 0
    %2342 = vmatpush.xpose.msra.mxu0 0.0
    %2343 = vmatpush.xpose.msra.mxu0 0.0
    %2344 = vmatpush.xpose.msra.mxu0 0.0
    %2345 = vmatpush.xpose.msra.mxu0 0.0
    %2346 = vmatpush.xpose.msra.mxu0 0.0
    %2347 = vmatpush.xpose.msra.mxu0 0.0
    %2348 = vmatpush.xpose.msra.mxu0 0.0
    %2349 = vmatpush.xpose.msra.mxu0 0.0
    %2350 = vmatpush.xpose.msra.mxu0 0.0
    %2351 = vmatpush.xpose.msra.mxu0 0.0
    %2352 = vmatpush.xpose.msra.mxu0 0.0
    %2353 = vmatpush.xpose.msra.mxu0 0.0
    %2354 = vmatpush.xpose.msra.mxu0 0.0
    %2355 = vmatpush.xpose.msra.mxu0 0.0
    %2356 = vmatpush.xpose.msra.mxu0 0.0
    %2357 = vmatpush.xpose.msra.mxu0 %v306
    %2358 = vmatmul.f32.gmra.mxu0 %v2340
    %v2359 = vpop.f32.mrf.mxu0
    %v2360 = vadd.f32 0.0, %v2359
    %2361 = vdwg.mxu0
    %v2362 = vsel %vm142, %v2339, 0
    %2364 = vmatpush.xpose.msra.mxu0 0.0
    %2365 = vmatpush.xpose.msra.mxu0 0.0
    %2366 = vmatpush.xpose.msra.mxu0 0.0
    %2367 = vmatpush.xpose.msra.mxu0 0.0
    %2368 = vmatpush.xpose.msra.mxu0 0.0
    %2369 = vmatpush.xpose.msra.mxu0 0.0
    %2370 = vmatpush.xpose.msra.mxu0 0.0
    %2371 = vmatpush.xpose.msra.mxu0 0.0
    %2372 = vmatpush.xpose.msra.mxu0 0.0
    %2373 = vmatpush.xpose.msra.mxu0 0.0
    %2374 = vmatpush.xpose.msra.mxu0 0.0
    %2375 = vmatpush.xpose.msra.mxu0 0.0
    %2376 = vmatpush.xpose.msra.mxu0 0.0
    %2377 = vmatpush.xpose.msra.mxu0 0.0
    %2378 = vmatpush.xpose.msra.mxu0 0.0
    %2379 = vmatpush.xpose.msra.mxu0 %v330
    %2380 = vmatmul.f32.gmra.mxu0 %v2362
    %v2381 = vpop.f32.mrf.mxu0
    %v2382 = vadd.f32 0.0, %v2381
    %2383 = vdwg.mxu0
    %2384 = vset.pattern.permute.xlu0 32
    %2385 = vperm.xlu0 %2384, %v2336
    %v2386 = vpop.permute.xlu0 %2385
    %v2387 = vrot.slane %v2386, 1
    %v2390 = vadd.f32 %v2360, %v2386
    %v2391 = vadd.f32 %v2382, %v2387
    %v2394 = vrot.slane %v2391, 7
    %v2395 = vsel %vm197, %v2394, %v2390
    %v2397 = vsel %vm117, -1e+12, %v2395
    %v2398 = vsel %vm366, %v2397, -inf
    %2399 = vmax.xlane.f32.xlu0 %v2398
    %v2400 = vpop.xlane.xlu0 %2399
    %v2401 = vsub.f32 %v2397, %v2400
    %v2402 = vmul.f32 %v2401, 1.442695
    %v2403 = vpow.pop %v2402
    %v2404 = vsel %vm366, %v2403, 0.0
    %2405 = vadd.xlane.f32.xlu0 %v2404
    %v2406 = vpop.xlane.xlu0 %2405
    %v2407 = vrcp.pop %v2406
    %v2408 = vmul.f32 %v2406, %v2407
    %v2409 = vsub.f32 1.0, %v2408
    %v2410 = vmul.f32 %v2407, %v2409
    %v2411 = vadd.f32 %v2407, %v2410
    %vm2412 = vweird.f32 %v2406
    %vm2413 = vweird.f32 %v2407
    %vm2414 = vmor %vm2412, %vm2413
    %v2415 = vsel %vm2414, %v2407, %v2411
    %v2416 = vand.u32 2147483647, %v2406
    %vm2417 = vcmp.eq.f32.partialorder %v2416, 8.507059e+37
    %v2418 = vand.u32 %v2406, 2147483648
    %v2419 = vor.u32 1.1754944e-38, %v2418
    %v2420 = vsel %vm2417, %v2419, %v2415
    %v2421 = vmul.f32 %v2403, %v2420
    %v2423 = vrot.slane %v2421, 1
    %v2424 = vsel %vm393, %v2421, 0
    %2426 = vmatpush.msra.mxu0 0.0
    %2427 = vmatpush.msra.mxu0 0.0
    %2428 = vmatpush.msra.mxu0 0.0
    %2429 = vmatpush.msra.mxu0 0.0
    %2430 = vmatpush.msra.mxu0 0.0
    %2431 = vmatpush.msra.mxu0 0.0
    %2432 = vmatpush.msra.mxu0 0.0
    %2433 = vmatpush.msra.mxu0 0.0
    %2434 = vmatpush.msra.mxu0 0.0
    %2435 = vmatpush.msra.mxu0 0.0
    %2436 = vmatpush.msra.mxu0 0.0
    %2437 = vmatpush.msra.mxu0 0.0
    %2438 = vmatpush.msra.mxu0 0.0
    %2439 = vmatpush.msra.mxu0 0.0
    %2440 = vmatpush.msra.mxu0 0.0
    %2441 = vmatpush.msra.mxu0 %v114
    %2442 = vmatmul.f32.gmra.mxu0 %v2424
    %v2443 = vpop.f32.mrf.mxu0
    %v2444 = vadd.f32 0.0, %v2443
    %2445 = vdwg.mxu0
    %v2446 = vsel %vm393, %v2423, 0
    %2448 = vmatpush.msra.mxu0 0.0
    %2449 = vmatpush.msra.mxu0 0.0
    %2450 = vmatpush.msra.mxu0 0.0
    %2451 = vmatpush.msra.mxu0 0.0
    %2452 = vmatpush.msra.mxu0 0.0
    %2453 = vmatpush.msra.mxu0 0.0
    %2454 = vmatpush.msra.mxu0 0.0
    %2455 = vmatpush.msra.mxu0 0.0
    %2456 = vmatpush.msra.mxu0 0.0
    %2457 = vmatpush.msra.mxu0 0.0
    %2458 = vmatpush.msra.mxu0 0.0
    %2459 = vmatpush.msra.mxu0 0.0
    %2460 = vmatpush.msra.mxu0 0.0
    %2461 = vmatpush.msra.mxu0 0.0
    %2462 = vmatpush.msra.mxu0 0.0
    %2463 = vmatpush.msra.mxu0 %v115
    %2464 = vmatmul.f32.gmra.mxu0 %v2446
    %v2465 = vpop.f32.mrf.mxu0
    %v2466 = vadd.f32 0.0, %v2465
    %2467 = vdwg.mxu0
    %v2468 = vadd.f32 %v2336, %v502
    %v2469 = vsel %vm505, %v2468, -inf
    %2470 = vmax.xlane.f32.xlu0 %v2469
    %v2471 = vpop.xlane.xlu0 %2470
    %v2472 = vsub.f32 %v2468, %v2471
    %v2473 = vmul.f32 %v2472, 1.442695
    %v2474 = vpow.pop %v2473
    %2476 = vrot.lane.b32.xlu0 %v2474, 95
    %v2477 = vpop.permute.xlu0 %2476
    %v2479 = vsel %vm516, %v2477, 0.0
    %2480 = vadd.xlane.f32.xlu0 %v2479
    %v2481 = vpop.xlane.xlu0 %2480
    %v2482 = vlog2.pop %v2481
    %v2483 = vmul.f32 %v2482, 0.6931472
    %v2484 = vsub.f32 %v2472, %v2483
    %2486 = vrot.lane.b32.xlu0 %v2484, 95
    %v2487 = vpop.permute.xlu0 %2486
    %s2489 = scalar_lea.vmem [#allocation10], 12
    %2490 = vst.msk [vmem:[%s2489] sm:$0x3] %vm516, %v2487
    %v2491 = vsel %vm505, %v2484, -inf
    %2492 = vmax.xlane.f32.xlu0 %v2491
    %v2493 = vpop.xlane.xlu0 %2492
    %vm2494 = vcmp.eq.f32.partialorder %v2484, %v2493
    %v2495 = vsel %vm2494, %v533, 12
    %v2496 = vsel %vm505, %v2495, 2147483647
    %v2497 = vand.u32 %v2496, 65535
    %v2498 = vshra.s32 %v2496, 16
    %v2499 = vcvt.s32.f32 %v2497
    %v2500 = vcvt.s32.f32 %v2498
    %2501 = vmin.xlane.f32.xlu0 %v2500
    %v2502 = vpop.xlane.xlu0 %2501
    %vm2503 = vcmp.eq.f32.partialorder %v2500, %v2502
    %v2504 = vsel %vm2503, %v2499, inf
    %2505 = vmin.xlane.f32.xlu0 %v2504
    %v2506 = vpop.xlane.xlu0 %2505
    %v2507 = vcvt.f32.s32 %v2506
    %v2508 = vcvt.f32.s32 %v2502
    %v2509 = vshll.u32 %v2508, 16
    %v2510 = vadd.s32 %v2509, %v2507
    %vm2511 = vcmp.eq.s32.totalorder %v139, %v2510
    %v2512 = vsel %vm2511, 1, 0
    %v2513 = vcvt.s32.f32 %v2512
    %v2516 = vrot.slane %v2466, 7
    %v2517 = vsel %vm197, %v2516, %v2444
    %v2518 = vsel %vm142, %v2517, 0
    %2520 = vmatpush.msra.mxu0 0.0
    %2521 = vmatpush.msra.mxu0 0.0
    %2522 = vmatpush.msra.mxu0 0.0
    %2523 = vmatpush.msra.mxu0 0.0
    %2524 = vmatpush.msra.mxu0 0.0
    %2525 = vmatpush.msra.mxu0 0.0
    %2526 = vmatpush.msra.mxu0 0.0
    %2527 = vmatpush.msra.mxu0 0.0
    %2528 = vmatpush.msra.mxu0 0.0
    %2529 = vmatpush.msra.mxu0 0.0
    %2530 = vmatpush.msra.mxu0 0.0
    %2531 = vmatpush.msra.mxu0 0.0
    %2532 = vmatpush.msra.mxu0 %v123
    %2533 = vmatpush.msra.mxu0 %v122
    %2534 = vmatpush.msra.mxu0 %v121
    %2535 = vmatpush.msra.mxu0 %v120
    %2536 = vmatmul.f32.gmra.mxu0 %v2518
    %v2537 = vpop.f32.mrf.mxu0
    %v2538 = vadd.f32 0.0, %v2537
    %2539 = vdwg.mxu0
    %v2541 = vsel %vm166, %v2513, 0
    %2543 = vmatpush.msra.mxu0 0.0
    %2544 = vmatpush.msra.mxu0 0.0
    %2545 = vmatpush.msra.mxu0 0.0
    %2546 = vmatpush.msra.mxu0 0.0
    %2547 = vmatpush.msra.mxu0 0.0
    %2548 = vmatpush.msra.mxu0 0.0
    %2549 = vmatpush.msra.mxu0 0.0
    %2550 = vmatpush.msra.mxu0 0.0
    %2551 = vmatpush.msra.mxu0 0.0
    %2552 = vmatpush.msra.mxu0 0.0
    %2553 = vmatpush.msra.mxu0 0.0
    %2554 = vmatpush.msra.mxu0 0.0
    %2555 = vmatpush.msra.mxu0 0.0
    %2556 = vmatpush.msra.mxu0 0.0
    %2557 = vmatpush.msra.mxu0 %v172
    %2558 = vmatpush.msra.mxu0 %v118
    %2559 = vmatmul.f32.gmra.mxu0 %v2541
    %v2560 = vpop.f32.mrf.mxu0
    %v2561 = vadd.f32 %v2538, %v2560
    %2562 = vdwg.mxu0
    %v2563 = vrot.slane %v114, 7
    %v2564 = vrot.slane %v115, 6
    %v2565 = vsel %vm197, %v2564, %v2563
    %v2566 = vsel %vm142, %v2565, 0
    %2568 = vmatpush.msra.mxu0 0.0
    %2569 = vmatpush.msra.mxu0 0.0
    %2570 = vmatpush.msra.mxu0 0.0
    %2571 = vmatpush.msra.mxu0 0.0
    %2572 = vmatpush.msra.mxu0 0.0
    %2573 = vmatpush.msra.mxu0 0.0
    %2574 = vmatpush.msra.mxu0 0.0
    %2575 = vmatpush.msra.mxu0 0.0
    %2576 = vmatpush.msra.mxu0 0.0
    %2577 = vmatpush.msra.mxu0 0.0
    %2578 = vmatpush.msra.mxu0 0.0
    %2579 = vmatpush.msra.mxu0 0.0
    %2580 = vmatpush.msra.mxu0 %v127
    %2581 = vmatpush.msra.mxu0 %v126
    %2582 = vmatpush.msra.mxu0 %v125
    %2583 = vmatpush.msra.mxu0 %v124
    %2584 = vmatmul.f32.gmra.mxu0 %v2566
    %v2585 = vpop.f32.mrf.mxu0
    %v2586 = vadd.f32 0.0, %v2585
    %2587 = vdwg.mxu0
    %v2588 = vadd.f32 %v2561, %v2586
    %v2589 = vadd.f32 %v2588, %v223
    %v2590 = vxor.u32 %v2589, 2147483648
    %v2591 = vmul.f32 %v2590, 1.442695
    %v2592 = vpow.pop %v2591
    %v2593 = vadd.f32 %v2592, 1.0
    %v2594 = vrcp.pop %v2593
    %v2595 = vmul.f32 %v2593, %v2594
    %v2596 = vsub.f32 1.0, %v2595
    %v2597 = vmul.f32 %v2594, %v2596
    %v2598 = vadd.f32 %v2594, %v2597
    %vm2599 = vweird.f32 %v2593
    %vm2600 = vweird.f32 %v2594
    %vm2601 = vmor %vm2599, %vm2600
    %v2602 = vsel %vm2601, %v2594, %v2598
    %v2603 = vand.u32 2147483647, %v2593
    %vm2604 = vcmp.eq.f32.partialorder %v2603, 8.507059e+37
    %v2605 = vand.u32 %v2593, 2147483648
    %v2606 = vor.u32 1.1754944e-38, %v2605
    %v2607 = vsel %vm2604, %v2606, %v2602
    %v2608 = vmul.f32 1.0, %v2607
    %v2609 = vtanh.pop %v2589
    %2611 = vrot.lane.b32.xlu0 %v2609, 96
    %v2612 = vpop.permute.xlu0 %2611
    %v2614 = vmul.f32 %v2608, %v2612
    %v2615 = vtanh.pop %v2614
    %2617 = vrot.lane.b32.xlu0 %v2615, 64
    %v2618 = vpop.permute.xlu0 %2617
    %v2620 = vmul.f32 %v2608, %v2618
    %2621 = vmatpush.msra.mxu0 0.0
    %2622 = vmatpush.msra.mxu0 0.0
    %2623 = vmatpush.msra.mxu0 0.0
    %2624 = vmatpush.msra.mxu0 0.0
    %2625 = vmatpush.msra.mxu0 0.0
    %2626 = vmatpush.msra.mxu0 0.0
    %2627 = vmatpush.msra.mxu0 0.0
    %2628 = vmatpush.msra.mxu0 0.0
    %2629 = vmatpush.msra.mxu0 0.0
    %2630 = vmatpush.msra.mxu0 0.0
    %2631 = vmatpush.msra.mxu0 0.0
    %2632 = vmatpush.msra.mxu0 0.0
    %2633 = vmatpush.msra.mxu0 %v136
    %2634 = vmatpush.msra.mxu0 %v135
    %2635 = vmatpush.msra.mxu0 %v134
    %2636 = vmatpush.msra.mxu0 %v133
    %2637 = vmatmul.f32.gmra.mxu0 %v2518
    %v2638 = vpop.f32.mrf.mxu0
    %v2639 = vadd.f32 0.0, %v2638
    %2640 = vdwg.mxu0
    %2642 = vrot.lane.b32.xlu0 %v2620, 64
    %v2643 = vpop.permute.xlu0 %2642
    %v2644 = vsel %vm142, %v2643, 0
    %2646 = vmatpush.msra.mxu0 0.0
    %2647 = vmatpush.msra.mxu0 0.0
    %2648 = vmatpush.msra.mxu0 0.0
    %2649 = vmatpush.msra.mxu0 0.0
    %2650 = vmatpush.msra.mxu0 0.0
    %2651 = vmatpush.msra.mxu0 0.0
    %2652 = vmatpush.msra.mxu0 0.0
    %2653 = vmatpush.msra.mxu0 0.0
    %2654 = vmatpush.msra.mxu0 0.0
    %2655 = vmatpush.msra.mxu0 0.0
    %2656 = vmatpush.msra.mxu0 0.0
    %2657 = vmatpush.msra.mxu0 0.0
    %2658 = vmatpush.msra.mxu0 %v132
    %2659 = vmatpush.msra.mxu0 %v131
    %2660 = vmatpush.msra.mxu0 %v130
    %2661 = vmatpush.msra.mxu0 %v129
    %2662 = vmatmul.f32.gmra.mxu0 %v2644
    %v2663 = vpop.f32.mrf.mxu0
    %v2664 = vadd.f32 %v2639, %v2663
    %2665 = vdwg.mxu0
    %v2666 = vadd.f32 %v2664, %v502
    %v2667 = vsel %vm505, %v2666, -inf
    %2668 = vmax.xlane.f32.xlu0 %v2667
    %v2669 = vpop.xlane.xlu0 %2668
    %v2670 = vsub.f32 %v2666, %v2669
    %v2671 = vmul.f32 %v2670, 1.442695
    %v2672 = vpow.pop %v2671
    %2674 = vrot.lane.b32.xlu0 %v2672, 95
    %v2675 = vpop.permute.xlu0 %2674
    %v2677 = vsel %vm516, %v2675, 0.0
    %2678 = vadd.xlane.f32.xlu0 %v2677
    %v2679 = vpop.xlane.xlu0 %2678
    %v2680 = vlog2.pop %v2679
    %v2681 = vmul.f32 %v2680, 0.6931472
    %v2682 = vsub.f32 %v2670, %v2681
    %2684 = vrot.lane.b32.xlu0 %v2682, 95
    %v2685 = vpop.permute.xlu0 %2684
    %s2687 = scalar_lea.vmem [#allocation10], 14
    %2688 = vst.msk [vmem:[%s2687] sm:$0x3] %vm516, %v2685
    // Predicated region
    $region74: #{tpu_custom_call.1} parent=1 // pred_check
      _
    $region75: #{tpu_custom_call.1} parent=1 // pred_check_branch
      %2690 = sbr.rel (0) target = $region77
    $region76: #{tpu_custom_call.1} parent=1 // pred_region
      %2692 = vsyncadd [#allocation4], 0
      %s2693 = sshll.u32 [#allocation10], 4
      %s2694 = int_to_ptr.vmem [resolvable:$true] %s2693
      %s2695 = sshll.u32 %s14, 4
      %s2696 = int_to_ptr.hbm [resolvable:$true] %s2695
      %2701 = dma.vmem_to_hbm [thread:$0]  %s2694, 256, %s2696, [#allocation4], 32, 32, 2
    $region77: #{tpu_custom_call.1} parent=1 // pred_fallthru
      _
    // Predicated region
    $region78: #{tpu_custom_call.1} parent=1 // pred_check
      _
    $region79: #{tpu_custom_call.1} parent=1 // pred_check_branch
      %2703 = sbr.rel (0) target = $region81
    $region80: #{tpu_custom_call.1} parent=1 // pred_region
      %2705 = vsyncadd [#allocation12], 0
      %s2707 = sshll.u32 [#allocation11], 4
      %s2708 = int_to_ptr.vmem [resolvable:$true] %s2707
      %s2709 = sshll.u32 %s15, 4
      %s2710 = int_to_ptr.hbm [resolvable:$true] %s2709
      %2712 = dma.vmem_to_hbm [thread:$0]  %s2708, 32, %s2710, [#allocation12]
    $region81: #{tpu_custom_call.1} parent=1 // pred_fallthru
      _
    // Predicated region
    $region82: #{tpu_custom_call.1} parent=1 // pred_check
      _
    $region83: #{tpu_custom_call.1} parent=1 // pred_check_branch
      %2714 = sbr.rel (0) target = $region85
    $region84: #{tpu_custom_call.1} parent=1 // pred_region
      %2716 = dma.done [#allocation4], 256
    $region85: #{tpu_custom_call.1} parent=1 // pred_fallthru
      _
    // Predicated region
    $region86: #{tpu_custom_call.1} parent=1 // pred_check
      _
    $region87: #{tpu_custom_call.1} parent=1 // pred_check_branch
      %2718 = sbr.rel (0) target = $region89
    $region88: #{tpu_custom_call.1} parent=1 // pred_region
      %2720 = dma.done [#allocation12], 32
    $region89: #{tpu_custom_call.1} parent=1 // pred_fallthru
      _
    %2721 = vsyncpa [#allocation3], 1
    %2722 = vsyncpa [#allocation6], 1
    %2723 = vsyncpa [#allocation9], 1
    %2724 = vsyncpa [#allocation4], 1
    %2725 = vsyncpa [#allocation12], 1

</llo_original>
